<compile_context>
chip_gen: v7x
topology: tpu7x:2x2x1
jax: 0.10.0
libtpu: 0.0.40
codegen_flags: <defaults>
</compile_context>

<pallas_src>
import functools

import jax
import jax.numpy as jnp
from jax.experimental import pallas as pl
from jax.experimental.pallas import tpu as pltpu


def _round_up(v, m):
    return (v + m - 1) // m * m


def _shift_rows(v, r):
    """result[m] = v[(m + r) % n] for a static int r (flat-row alignment shift).

    Implemented as two static slices + a concatenate along the sublane axis,
    which Mosaic lowers unconditionally.  Wrap-around rows only ever land in
    columns >= Wo, which are masked / discarded by construction.
    """
    n = v.shape[0]
    r = r % n
    if r == 0:
        return v
    return jnp.concatenate([v[r:, :], v[:r, :]], axis=0)


# ----------------------------------------------------------------------------
# Fused kernel: conv1 + bn1 + relu + conv2 + bn2 + shortcut + relu
# (one grid step == one batch image)
# ----------------------------------------------------------------------------
def _make_block_kernel(k, s, Ho, Wc, pad, Cin, Cout, proj):
    n_rows = Ho * Wc  # flat rows of the (Ho, Wc) working frame

    def kernel(*refs):
        if proj:
            (xph_ref, mask_ref, w1_ref, b1_ref, w2_ref, b2_ref,
             wsc_ref, bsc_ref, o_ref, out1_ref) = refs
        else:
            (xph_ref, mask_ref, w1_ref, b1_ref, w2_ref, b2_ref,
             o_ref, out1_ref) = refs

        # ---- conv1 (bn1 scale folded into w1) + bias + ReLU -----------------
        # Each tap: contiguous full-width bf16 row slab -> MXU matmul (f32 acc)
        # -> flat-row shift.  No windowed reshapes, no per-tap casts.
        acc1 = jnp.zeros((n_rows, Cout), jnp.float32)
        for dh in range(k):
            qh = dh // s
            for dw in range(k):
                qw = dw // s
                phase = (dh % s) * s + (dw % s)
                lhs = xph_ref[phase, pl.ds(qh * Wc, n_rows), :]        # bf16
                prod = jnp.dot(lhs, w1_ref[dh * k + dw],
                               preferred_element_type=jnp.float32)
                acc1 = acc1 + _shift_rows(prod, qw)
        # Columns >= Wo are out-of-frame garbage and must read back as zero
        # (they double as conv2's left/right zero padding).
        out1 = jnp.maximum(acc1 + b1_ref[...], 0.0) * mask_ref[...]

        # bf16 halo scratch: only the 2*pad halo row-bands are (re)zeroed each
        # step (cheap; a program_id==0-only init would be unsafe with the
        # "parallel" batch axis sharded across cores).  The interior is fully
        # overwritten below, so there is no cross-iteration carry.
        if pad:
            zband = jnp.zeros((pad * Wc, Cout), jnp.bfloat16)
            out1_ref[pl.ds(0, pad * Wc), :] = zband
            out1_ref[pl.ds((pad + Ho) * Wc, pad * Wc), :] = zband
        out1_ref[pl.ds(pad * Wc, n_rows), :] = out1.astype(jnp.bfloat16)

        # ---- conv2 (bn2 scale folded into w2) + bias -------------------------
        acc2 = jnp.zeros((n_rows, Cout), jnp.float32)
        for dh in range(k):
            slab = out1_ref[pl.ds(dh * Wc, n_rows), :]                 # bf16
            for dw in range(k):
                prod = jnp.dot(slab, w2_ref[dh * k + dw],
                               preferred_element_type=jnp.float32)
                acc2 = acc2 + _shift_rows(prod, dw - pad)
        res = acc2 + b2_ref[...]

        # ---- shortcut from the already-resident input (no extra HBM read) ----
        # The centre tap (dh = dw = pad) of the phase decomposition is exactly
        # x[:, ::s, ::s, :].
        qc = pad // s
        phase_c = (pad % s) * s + (pad % s)
        ctr = xph_ref[phase_c, pl.ds(qc * Wc, n_rows), :]              # bf16
        if proj:
            sc = _shift_rows(
                jnp.dot(ctr, wsc_ref[...], preferred_element_type=jnp.float32),
                qc) + bsc_ref[...]
        else:
            sc = _shift_rows(ctr.astype(jnp.float32), qc)

        o_ref[0] = jnp.maximum(res + sc, 0.0).astype(o_ref.dtype)

    return kernel


# ----------------------------------------------------------------------------
# Host-side glue: BN folding, weight layout, phase decomposition, pallas_call
# ----------------------------------------------------------------------------
def _fold_bn(gamma, beta, mean, var, eps=1e-5):
    scale = gamma / jnp.sqrt(var + eps)
    return scale, beta - mean * scale


def _conv_w_taps(w_oihw):
    # (Cout, Cin, kh, kw) -> (kh*kw, Cin, Cout), bf16 MXU operand
    cout, cin, kh, kw = w_oihw.shape
    return (jnp.transpose(w_oihw, (2, 3, 1, 0))
            .reshape(kh * kw, cin, cout).astype(jnp.bfloat16))


def basic_block_forward(x_nchw, params, kernel_size, stride):
    """Pallas implementation of BasicBlockConvKSize.forward (NCHW in/out)."""
    k, s = int(kernel_size), int(stride)
    assert k % 2 == 1, "odd kernel_size expected (ResNet-style 'same' padding)"
    pad = k // 2
    N, Cin, H, W = x_nchw.shape
    Cout = params["w1"].shape[0]
    proj = "wsc" in params
    if not proj:
        assert s == 1 and Cin == Cout, \
            "identity shortcut requires stride == 1 and in_planes == planes"

    Ho = (H + 2 * pad - k) // s + 1
    Wo = (W + 2 * pad - k) // s + 1

    # Phase-decomposed (space-to-depth by the stride) padded-input geometry.
    Hq = -(-(H + 2 * pad) // s)
    Wq = -(-(W + 2 * pad) // s)
    # Shared column budget for the input phases, the conv1->conv2 scratch and
    # the (pre-crop) output frame: must cover the conv1 taps (>= Wq) and the
    # conv2 right zero padding (>= Wo + pad); rounded to the bf16 sublane tile
    # so every in-kernel row slab starts on an aligned offset.
    Wc = _round_up(max(Wq, Wo + pad), 16)

    x = jnp.transpose(x_nchw, (0, 2, 3, 1))                           # NHWC f32

    # Inference BatchNorm folded: scale -> conv weights, shift -> bias.
    s1, b1 = _fold_bn(*params["bn1"])
    s2, b2 = _fold_bn(*params["bn2"])
    w1 = _conv_w_taps(params["w1"] * s1[:, None, None, None])         # (k*k, Cin, Cout) bf16
    w2 = _conv_w_taps(params["w2"] * s2[:, None, None, None])         # (k*k, Cout, Cout) bf16
    b1 = b1.reshape(1, Cout).astype(jnp.float32)
    b2 = b2.reshape(1, Cout).astype(jnp.float32)

    # Zero-padded, phase-decomposed input, streamed to the kernel in bf16.
    #   xph[n*s*s + p*s + q, a*Wc + b, c] == xpad[n, a*s + p, b*s + q, c]
    xpad = jnp.pad(x, ((0, 0),
                       (pad, Hq * s - H - pad),
                       (pad, Wc * s - W - pad),
                       (0, 0)))
    xph = (xpad.reshape(N, Hq, s, Wc, s, Cin)
               .transpose(0, 2, 4, 1, 3, 5)
               .reshape(N * s * s, Hq * Wc, Cin)
               .astype(jnp.bfloat16))

    # 0/1 column mask: columns >= Wo of the working frame are out-of-frame.
    colmask = jnp.broadcast_to((jnp.arange(Wc) < Wo)[None, :], (Ho, Wc)) \
                 .astype(jnp.float32).reshape(Ho * Wc, 1)

    in_specs = [
        pl.BlockSpec((s * s, Hq * Wc, Cin), lambda n: (n, 0, 0)),
        pl.BlockSpec((Ho * Wc, 1), lambda n: (0, 0)),
        pl.BlockSpec((k * k, Cin, Cout), lambda n: (0, 0, 0)),
        pl.BlockSpec((1, Cout), lambda n: (0, 0)),
        pl.BlockSpec((k * k, Cout, Cout), lambda n: (0, 0, 0)),
        pl.BlockSpec((1, Cout), lambda n: (0, 0)),
    ]
    inputs = [xph, colmask, w1, b1, w2, b2]

    if proj:
        ssc, bsc = _fold_bn(*params["bnsc"])
        wsc = (params["wsc"].reshape(Cout, Cin) * ssc[:, None]).T \
                  .astype(jnp.bfloat16)                               # (Cin, Cout)
        bsc = bsc.reshape(1, Cout).astype(jnp.float32)
        in_specs += [pl.BlockSpec((Cin, Cout), lambda n: (0, 0)),
                     pl.BlockSpec((1, Cout), lambda n: (0, 0))]
        inputs += [wsc, bsc]

    # Advisory cost + VMEM budget (query the part, leave 1/8 headroom instead of
    # a hard-coded 64 MiB clamp).
    n_rows = Ho * Wc
    flops = 2 * N * n_rows * (k * k * Cin * Cout + k * k * Cout * Cout
                              + (Cin * Cout if proj else 0))
    out_bytes = N * n_rows * Cout * 2
    bytes_accessed = int(sum(int(a.size) * a.dtype.itemsize for a in inputs)
                         + out_bytes)
    try:
        vmem_cap = int(getattr(pltpu.get_tpu_info(), "vmem_capacity_bytes",
                               128 * 2 ** 20))
    except Exception:
        vmem_cap = 128 * 2 ** 20
    vmem_est = int(
        2 * (s * s * Hq * Wc * Cin * 2          # xph block (double-buffered, bf16)
             + n_rows * Cout * 2)               # output block (double-buffered, bf16)
        + 2 * sum(int(a.size) * a.dtype.itemsize for a in inputs[1:])
        + (Ho + 2 * pad) * Wc * Cout * 2)       # bf16 halo scratch
    vmem_limit = int(min(max(32 * 2 ** 20, 2 * vmem_est),
                         vmem_cap - vmem_cap // 8))

    out = pl.pallas_call(
        _make_block_kernel(k, s, Ho, Wc, pad, Cin, Cout, proj),
        out_shape=jax.ShapeDtypeStruct((N, n_rows, Cout), jnp.bfloat16),
        grid=(N,),
        in_specs=in_specs,
        out_specs=pl.BlockSpec((1, n_rows, Cout), lambda n: (n, 0, 0)),
        scratch_shapes=[pltpu.VMEM(((Ho + 2 * pad) * Wc, Cout), jnp.bfloat16)],
        compiler_params=pltpu.CompilerParams(
            dimension_semantics=("parallel",),
            vmem_limit_bytes=vmem_limit),
        cost_estimate=pl.CostEstimate(flops=flops, transcendentals=0,
                                      bytes_accessed=bytes_accessed),
    )(*inputs)

    # Crop the alignment / out-of-frame columns, back to NCHW f32.
    out = out.reshape(N, Ho, Wc, Cout)[:, :, :Wo, :]
    return jnp.transpose(out, (0, 3, 1, 2)).astype(jnp.float32)


# ----------------------------------------------------------------------------
# Parameter init + pure-JAX reference (correctness check)
# ----------------------------------------------------------------------------
def init_params(key, in_planes, planes, kernel_size, stride):
    ks = list(jax.random.split(key, 12))

    def bn(k):
        k1, k2, k3, k4 = jax.random.split(k, 4)
        gamma = 1.0 + 0.1 * jax.random.normal(k1, (planes,), jnp.float32)
        beta = 0.1 * jax.random.normal(k2, (planes,), jnp.float32)
        mean = 0.1 * jax.random.normal(k3, (planes,), jnp.float32)
        var = 0.5 + 0.5 * jnp.abs(jax.random.normal(k4, (planes,), jnp.float32))
        return gamma, beta, mean, var

    params = {
        "w1": jax.random.normal(ks[0], (planes, in_planes, kernel_size, kernel_size),
                                jnp.float32) / (kernel_size * jnp.sqrt(float(in_planes))),
        "bn1": bn(ks[1]),
        "w2": jax.random.normal(ks[2], (planes, planes, kernel_size, kernel_size),
                                jnp.float32) / (kernel_size * jnp.sqrt(float(planes))),
        "bn2": bn(ks[3]),
    }
    if stride != 1 or in_planes != planes:
        params["wsc"] = jax.random.normal(ks[4], (planes, in_planes, 1, 1),
                                          jnp.float32) / jnp.sqrt(float(in_planes))
        params["bnsc"] = bn(ks[5])
    return params


def reference_forward(x_nchw, params, kernel_size, stride):
    pad = kernel_size // 2

    def conv(x, w, st, p):
        return jax.lax.conv_general_dilated(
            x, w, (st, st), [(p, p), (p, p)],
            dimension_numbers=("NCHW", "OIHW", "NCHW"))

    def bn(x, prm):
        sc, b = _fold_bn(*prm)
        return x * sc[None, :, None, None] + b[None, :, None, None]

    out = jnp.maximum(bn(conv(x_nchw, params["w1"], stride, pad), params["bn1"]), 0.0)
    out = bn(conv(out, params["w2"], 1, pad), params["bn2"])
    if "wsc" in params:
        sc = bn(conv(x_nchw, params["wsc"], stride, 0), params["bnsc"])
    else:
        sc = x_nchw
    return jnp.maximum(out + sc, 0.0)


# ----------------------------------------------------------------------------
if __name__ == "__main__":
    key = jax.random.PRNGKey(0)
    k_x, k_p, k_x2, k_p2 = jax.random.split(key, 4)

    # Case 1: projection shortcut (stride 2, channel expansion), k = 3.
    N, in_planes, H, W = 2, 4, 16, 16
    planes, kernel_size, stride = 8, 3, 2
    x = jax.random.normal(k_x, (N, in_planes, H, W), jnp.float32)
    params = init_params(k_p, in_planes, planes, kernel_size, stride)
    fwd = jax.jit(functools.partial(basic_block_forward,
                                    kernel_size=kernel_size, stride=stride))
    out = jax.block_until_ready(fwd(x, params))
    ref = jax.block_until_ready(reference_forward(x, params, kernel_size, stride))
    assert out.shape == ref.shape, (out.shape, ref.shape)
    assert bool(jnp.all(jnp.isfinite(out)))
    assert jnp.allclose(out, ref, rtol=5e-2, atol=5e-2), \
        float(jnp.max(jnp.abs(out - ref)))

    # Case 2: identity shortcut (stride 1, same width), k = 3.
    N2, planes2, H2, W2 = 2, 8, 16, 16
    x2 = jax.random.normal(k_x2, (N2, planes2, H2, W2), jnp.float32)
    params2 = init_params(k_p2, planes2, planes2, 3, 1)
    fwd2 = jax.jit(functools.partial(basic_block_forward, kernel_size=3, stride=1))
    out2 = jax.block_until_ready(fwd2(x2, params2))
    ref2 = jax.block_until_ready(reference_forward(x2, params2, 3, 1))
    assert out2.shape == ref2.shape, (out2.shape, ref2.shape)
    assert bool(jnp.all(jnp.isfinite(out2)))
    assert jnp.allclose(out2, ref2, rtol=5e-2, atol=5e-2), \
        float(jnp.max(jnp.abs(out2 - ref2)))

    print("KERNEL_OK")
</pallas_src>

<mosaic_0001>
module attributes {stable_mosaic.version = 11 : i64} {
  func.func @kernel(%arg0: i32, %arg1: memref<4x144x4xbf16, #tpu.memory_space<vmem>>, %arg2: memref<128x1xf32, #tpu.memory_space<vmem>>, %arg3: memref<9x4x8xbf16, #tpu.memory_space<vmem>>, %arg4: memref<1x8xf32, #tpu.memory_space<vmem>>, %arg5: memref<9x8x8xbf16, #tpu.memory_space<vmem>>, %arg6: memref<1x8xf32, #tpu.memory_space<vmem>>, %arg7: memref<4x8xbf16, #tpu.memory_space<vmem>>, %arg8: memref<1x8xf32, #tpu.memory_space<vmem>>, %arg9: memref<1x128x8xbf16, #tpu.memory_space<vmem>>, %arg10: memref<160x8xbf16, #tpu.memory_space<vmem>>) attributes {dimension_semantics = [#tpu.dimension_semantics<parallel>], iteration_bounds = array<i64: 2>, scalar_prefetch = 0 : i64, scratch_operands = 1 : i64, tpu.core_type = #tpu.core_type<tc>, window_params = [{transform_indices = @transform_0, window_bounds = array<i64: 4, 144, 4>}, {pipeline_mode = #tpu.pipeline_mode<synchronous>, transform_indices = @transform_1, window_bounds = array<i64: 128, 1>}, {pipeline_mode = #tpu.pipeline_mode<synchronous>, transform_indices = @transform_2, window_bounds = array<i64: 9, 4, 8>}, {pipeline_mode = #tpu.pipeline_mode<synchronous>, transform_indices = @transform_3, window_bounds = array<i64: 1, 8>}, {pipeline_mode = #tpu.pipeline_mode<synchronous>, transform_indices = @transform_4, window_bounds = array<i64: 9, 8, 8>}, {pipeline_mode = #tpu.pipeline_mode<synchronous>, transform_indices = @transform_5, window_bounds = array<i64: 1, 8>}, {pipeline_mode = #tpu.pipeline_mode<synchronous>, transform_indices = @transform_6, window_bounds = array<i64: 4, 8>}, {pipeline_mode = #tpu.pipeline_mode<synchronous>, transform_indices = @transform_7, window_bounds = array<i64: 1, 8>}, {transform_indices = @transform_8, window_bounds = array<i64: 1, 128, 8>}]} {
    %cst = arith.constant 0.000000e+00 : f32
    %0 = vector.broadcast %cst : f32 to vector<128x8xf32>
    %c0 = arith.constant 0 : index
    %c0_0 = arith.constant 0 : index
    %c0_1 = arith.constant 0 : index
    %1 = vector.load %arg1[%c0, %c0_0, %c0_1] : memref<4x144x4xbf16, #tpu.memory_space<vmem>>, vector<1x128x4xbf16>
    %2 = vector.shape_cast %1 : vector<1x128x4xbf16> to vector<128x4xbf16>
    %c0_2 = arith.constant 0 : index
    %c0_3 = arith.constant 0 : index
    %c0_4 = arith.constant 0 : index
    %3 = vector.load %arg3[%c0_2, %c0_3, %c0_4] : memref<9x4x8xbf16, #tpu.memory_space<vmem>>, vector<1x4x8xbf16>
    %4 = vector.shape_cast %3 : vector<1x4x8xbf16> to vector<4x8xbf16>
    %cst_5 = arith.constant dense<0.000000e+00> : vector<128x8xf32>
    %5 = tpu.matmul %2, %4, %cst_5 {dimension_numbers = #tpu.dot_dimension_numbers<[1], [0], [0], [1], [0, 0, 1, 1], [], []>} : vector<128x4xbf16>, vector<4x8xbf16>, vector<128x8xf32> -> vector<128x8xf32>
    %6 = arith.addf %0, %5 : vector<128x8xf32>
    %c1 = arith.constant 1 : index
    %c0_6 = arith.constant 0 : index
    %c0_7 = arith.constant 0 : index
    %7 = vector.load %arg1[%c1, %c0_6, %c0_7] : memref<4x144x4xbf16, #tpu.memory_space<vmem>>, vector<1x128x4xbf16>
    %8 = vector.shape_cast %7 : vector<1x128x4xbf16> to vector<128x4xbf16>
    %c1_8 = arith.constant 1 : index
    %c0_9 = arith.constant 0 : index
    %c0_10 = arith.constant 0 : index
    %9 = vector.load %arg3[%c1_8, %c0_9, %c0_10] : memref<9x4x8xbf16, #tpu.memory_space<vmem>>, vector<1x4x8xbf16>
    %10 = vector.shape_cast %9 : vector<1x4x8xbf16> to vector<4x8xbf16>
    %cst_11 = arith.constant dense<0.000000e+00> : vector<128x8xf32>
    %11 = tpu.matmul %8, %10, %cst_11 {dimension_numbers = #tpu.dot_dimension_numbers<[1], [0], [0], [1], [0, 0, 1, 1], [], []>} : vector<128x4xbf16>, vector<4x8xbf16>, vector<128x8xf32> -> vector<128x8xf32>
    %12 = arith.addf %6, %11 : vector<128x8xf32>
    %c0_12 = arith.constant 0 : index
    %c0_13 = arith.constant 0 : index
    %c0_14 = arith.constant 0 : index
    %13 = vector.load %arg1[%c0_12, %c0_13, %c0_14] : memref<4x144x4xbf16, #tpu.memory_space<vmem>>, vector<1x128x4xbf16>
    %14 = vector.shape_cast %13 : vector<1x128x4xbf16> to vector<128x4xbf16>
    %c2 = arith.constant 2 : index
    %c0_15 = arith.constant 0 : index
    %c0_16 = arith.constant 0 : index
    %15 = vector.load %arg3[%c2, %c0_15, %c0_16] : memref<9x4x8xbf16, #tpu.memory_space<vmem>>, vector<1x4x8xbf16>
    %16 = vector.shape_cast %15 : vector<1x4x8xbf16> to vector<4x8xbf16>
    %cst_17 = arith.constant dense<0.000000e+00> : vector<128x8xf32>
    %17 = tpu.matmul %14, %16, %cst_17 {dimension_numbers = #tpu.dot_dimension_numbers<[1], [0], [0], [1], [0, 0, 1, 1], [], []>} : vector<128x4xbf16>, vector<4x8xbf16>, vector<128x8xf32> -> vector<128x8xf32>
    %18 = vector.extract_strided_slice %17 {offsets = [1, 0], sizes = [127, 8], strides = [1, 1]} : vector<128x8xf32> to vector<127x8xf32>
    %19 = vector.extract_strided_slice %17 {offsets = [0, 0], sizes = [1, 8], strides = [1, 1]} : vector<128x8xf32> to vector<1x8xf32>
    %20 = tpu.concatenate %18, %19 in 0 : vector<127x8xf32>, vector<1x8xf32> -> vector<128x8xf32>
    %21 = arith.addf %12, %20 : vector<128x8xf32>
    %c2_18 = arith.constant 2 : index
    %c0_19 = arith.constant 0 : index
    %c0_20 = arith.constant 0 : index
    %22 = vector.load %arg1[%c2_18, %c0_19, %c0_20] : memref<4x144x4xbf16, #tpu.memory_space<vmem>>, vector<1x128x4xbf16>
    %23 = vector.shape_cast %22 : vector<1x128x4xbf16> to vector<128x4xbf16>
    %c3 = arith.constant 3 : index
    %c0_21 = arith.constant 0 : index
    %c0_22 = arith.constant 0 : index
    %24 = vector.load %arg3[%c3, %c0_21, %c0_22] : memref<9x4x8xbf16, #tpu.memory_space<vmem>>, vector<1x4x8xbf16>
    %25 = vector.shape_cast %24 : vector<1x4x8xbf16> to vector<4x8xbf16>
    %cst_23 = arith.constant dense<0.000000e+00> : vector<128x8xf32>
    %26 = tpu.matmul %23, %25, %cst_23 {dimension_numbers = #tpu.dot_dimension_numbers<[1], [0], [0], [1], [0, 0, 1, 1], [], []>} : vector<128x4xbf16>, vector<4x8xbf16>, vector<128x8xf32> -> vector<128x8xf32>
    %27 = arith.addf %21, %26 : vector<128x8xf32>
    %c3_24 = arith.constant 3 : index
    %c0_25 = arith.constant 0 : index
    %c0_26 = arith.constant 0 : index
    %28 = vector.load %arg1[%c3_24, %c0_25, %c0_26] : memref<4x144x4xbf16, #tpu.memory_space<vmem>>, vector<1x128x4xbf16>
    %29 = vector.shape_cast %28 : vector<1x128x4xbf16> to vector<128x4xbf16>
    %c4 = arith.constant 4 : index
    %c0_27 = arith.constant 0 : index
    %c0_28 = arith.constant 0 : index
    %30 = vector.load %arg3[%c4, %c0_27, %c0_28] : memref<9x4x8xbf16, #tpu.memory_space<vmem>>, vector<1x4x8xbf16>
    %31 = vector.shape_cast %30 : vector<1x4x8xbf16> to vector<4x8xbf16>
    %cst_29 = arith.constant dense<0.000000e+00> : vector<128x8xf32>
    %32 = tpu.matmul %29, %31, %cst_29 {dimension_numbers = #tpu.dot_dimension_numbers<[1], [0], [0], [1], [0, 0, 1, 1], [], []>} : vector<128x4xbf16>, vector<4x8xbf16>, vector<128x8xf32> -> vector<128x8xf32>
    %33 = arith.addf %27, %32 : vector<128x8xf32>
    %c2_30 = arith.constant 2 : index
    %c0_31 = arith.constant 0 : index
    %c0_32 = arith.constant 0 : index
    %34 = vector.load %arg1[%c2_30, %c0_31, %c0_32] : memref<4x144x4xbf16, #tpu.memory_space<vmem>>, vector<1x128x4xbf16>
    %35 = vector.shape_cast %34 : vector<1x128x4xbf16> to vector<128x4xbf16>
    %c5 = arith.constant 5 : index
    %c0_33 = arith.constant 0 : index
    %c0_34 = arith.constant 0 : index
    %36 = vector.load %arg3[%c5, %c0_33, %c0_34] : memref<9x4x8xbf16, #tpu.memory_space<vmem>>, vector<1x4x8xbf16>
    %37 = vector.shape_cast %36 : vector<1x4x8xbf16> to vector<4x8xbf16>
    %cst_35 = arith.constant dense<0.000000e+00> : vector<128x8xf32>
    %38 = tpu.matmul %35, %37, %cst_35 {dimension_numbers = #tpu.dot_dimension_numbers<[1], [0], [0], [1], [0, 0, 1, 1], [], []>} : vector<128x4xbf16>, vector<4x8xbf16>, vector<128x8xf32> -> vector<128x8xf32>
    %39 = vector.extract_strided_slice %38 {offsets = [1, 0], sizes = [127, 8], strides = [1, 1]} : vector<128x8xf32> to vector<127x8xf32>
    %40 = vector.extract_strided_slice %38 {offsets = [0, 0], sizes = [1, 8], strides = [1, 1]} : vector<128x8xf32> to vector<1x8xf32>
    %41 = tpu.concatenate %39, %40 in 0 : vector<127x8xf32>, vector<1x8xf32> -> vector<128x8xf32>
    %42 = arith.addf %33, %41 : vector<128x8xf32>
    %c0_36 = arith.constant 0 : index
    %c16 = arith.constant 16 : index
    %c0_37 = arith.constant 0 : index
    %43 = vector.load %arg1[%c0_36, %c16, %c0_37] : memref<4x144x4xbf16, #tpu.memory_space<vmem>>, vector<1x128x4xbf16>
    %44 = vector.shape_cast %43 : vector<1x128x4xbf16> to vector<128x4xbf16>
    %c6 = arith.constant 6 : index
    %c0_38 = arith.constant 0 : index
    %c0_39 = arith.constant 0 : index
    %45 = vector.load %arg3[%c6, %c0_38, %c0_39] : memref<9x4x8xbf16, #tpu.memory_space<vmem>>, vector<1x4x8xbf16>
    %46 = vector.shape_cast %45 : vector<1x4x8xbf16> to vector<4x8xbf16>
    %cst_40 = arith.constant dense<0.000000e+00> : vector<128x8xf32>
    %47 = tpu.matmul %44, %46, %cst_40 {dimension_numbers = #tpu.dot_dimension_numbers<[1], [0], [0], [1], [0, 0, 1, 1], [], []>} : vector<128x4xbf16>, vector<4x8xbf16>, vector<128x8xf32> -> vector<128x8xf32>
    %48 = arith.addf %42, %47 : vector<128x8xf32>
    %c1_41 = arith.constant 1 : index
    %c16_42 = arith.constant 16 : index
    %c0_43 = arith.constant 0 : index
    %49 = vector.load %arg1[%c1_41, %c16_42, %c0_43] : memref<4x144x4xbf16, #tpu.memory_space<vmem>>, vector<1x128x4xbf16>
    %50 = vector.shape_cast %49 : vector<1x128x4xbf16> to vector<128x4xbf16>
    %c7 = arith.constant 7 : index
    %c0_44 = arith.constant 0 : index
    %c0_45 = arith.constant 0 : index
    %51 = vector.load %arg3[%c7, %c0_44, %c0_45] : memref<9x4x8xbf16, #tpu.memory_space<vmem>>, vector<1x4x8xbf16>
    %52 = vector.shape_cast %51 : vector<1x4x8xbf16> to vector<4x8xbf16>
    %cst_46 = arith.constant dense<0.000000e+00> : vector<128x8xf32>
    %53 = tpu.matmul %50, %52, %cst_46 {dimension_numbers = #tpu.dot_dimension_numbers<[1], [0], [0], [1], [0, 0, 1, 1], [], []>} : vector<128x4xbf16>, vector<4x8xbf16>, vector<128x8xf32> -> vector<128x8xf32>
    %54 = arith.addf %48, %53 : vector<128x8xf32>
    %c0_47 = arith.constant 0 : index
    %c16_48 = arith.constant 16 : index
    %c0_49 = arith.constant 0 : index
    %55 = vector.load %arg1[%c0_47, %c16_48, %c0_49] : memref<4x144x4xbf16, #tpu.memory_space<vmem>>, vector<1x128x4xbf16>
    %56 = vector.shape_cast %55 : vector<1x128x4xbf16> to vector<128x4xbf16>
    %c8 = arith.constant 8 : index
    %c0_50 = arith.constant 0 : index
    %c0_51 = arith.constant 0 : index
    %57 = vector.load %arg3[%c8, %c0_50, %c0_51] : memref<9x4x8xbf16, #tpu.memory_space<vmem>>, vector<1x4x8xbf16>
    %58 = vector.shape_cast %57 : vector<1x4x8xbf16> to vector<4x8xbf16>
    %cst_52 = arith.constant dense<0.000000e+00> : vector<128x8xf32>
    %59 = tpu.matmul %56, %58, %cst_52 {dimension_numbers = #tpu.dot_dimension_numbers<[1], [0], [0], [1], [0, 0, 1, 1], [], []>} : vector<128x4xbf16>, vector<4x8xbf16>, vector<128x8xf32> -> vector<128x8xf32>
    %60 = vector.extract_strided_slice %59 {offsets = [1, 0], sizes = [127, 8], strides = [1, 1]} : vector<128x8xf32> to vector<127x8xf32>
    %61 = vector.extract_strided_slice %59 {offsets = [0, 0], sizes = [1, 8], strides = [1, 1]} : vector<128x8xf32> to vector<1x8xf32>
    %62 = tpu.concatenate %60, %61 in 0 : vector<127x8xf32>, vector<1x8xf32> -> vector<128x8xf32>
    %63 = arith.addf %54, %62 : vector<128x8xf32>
    %c0_53 = arith.constant 0 : index
    %c0_54 = arith.constant 0 : index
    %64 = vector.load %arg4[%c0_53, %c0_54] : memref<1x8xf32, #tpu.memory_space<vmem>>, vector<1x8xf32>
    %65 = vector.broadcast %64 : vector<1x8xf32> to vector<128x8xf32>
    %66 = arith.addf %63, %65 : vector<128x8xf32>
    %cst_55 = arith.constant 0.000000e+00 : f32
    %67 = vector.broadcast %cst_55 : f32 to vector<128x8xf32>
    %68 = arith.maximumf %66, %67 : vector<128x8xf32>
    %c0_56 = arith.constant 0 : index
    %c0_57 = arith.constant 0 : index
    %69 = vector.load %arg2[%c0_56, %c0_57] : memref<128x1xf32, #tpu.memory_space<vmem>>, vector<128x1xf32>
    %70 = vector.broadcast %69 : vector<128x1xf32> to vector<128x8xf32>
    %71 = arith.mulf %68, %70 : vector<128x8xf32>
    %cst_58 = arith.constant 0.000000e+00 : bf16
    %72 = vector.broadcast %cst_58 : bf16 to vector<16x8xbf16>
    %c0_59 = arith.constant 0 : index
    %c0_60 = arith.constant 0 : index
    %73 = vector.load %arg10[%c0_59, %c0_60] : memref<160x8xbf16, #tpu.memory_space<vmem>>, vector<16x8xbf16>
    tpu.vector_store %arg10[%c0_59, %c0_60], %72 {strides = array<i32>} : memref<160x8xbf16, #tpu.memory_space<vmem>>, vector<16x8xbf16>,
    %c144 = arith.constant 144 : index
    %c0_61 = arith.constant 0 : index
    %74 = vector.load %arg10[%c144, %c0_61] : memref<160x8xbf16, #tpu.memory_space<vmem>>, vector<16x8xbf16>
    tpu.vector_store %arg10[%c144, %c0_61], %72 {strides = array<i32>} : memref<160x8xbf16, #tpu.memory_space<vmem>>, vector<16x8xbf16>,
    %75 = arith.truncf %71 : vector<128x8xf32> to vector<128x8xbf16>
    %c16_62 = arith.constant 16 : index
    %c0_63 = arith.constant 0 : index
    %76 = vector.load %arg10[%c16_62, %c0_63] : memref<160x8xbf16, #tpu.memory_space<vmem>>, vector<128x8xbf16>
    tpu.vector_store %arg10[%c16_62, %c0_63], %75 {strides = array<i32>} : memref<160x8xbf16, #tpu.memory_space<vmem>>, vector<128x8xbf16>,
    %cst_64 = arith.constant 0.000000e+00 : f32
    %77 = vector.broadcast %cst_64 : f32 to vector<128x8xf32>
    %c0_65 = arith.constant 0 : index
    %c0_66 = arith.constant 0 : index
    %78 = vector.load %arg10[%c0_65, %c0_66] : memref<160x8xbf16, #tpu.memory_space<vmem>>, vector<128x8xbf16>
    %c0_67 = arith.constant 0 : index
    %c0_68 = arith.constant 0 : index
    %c0_69 = arith.constant 0 : index
    %79 = vector.load %arg5[%c0_67, %c0_68, %c0_69] : memref<9x8x8xbf16, #tpu.memory_space<vmem>>, vector<1x8x8xbf16>
    %80 = vector.shape_cast %79 : vector<1x8x8xbf16> to vector<8x8xbf16>
    %cst_70 = arith.constant dense<0.000000e+00> : vector<128x8xf32>
    %81 = tpu.matmul %78, %80, %cst_70 {dimension_numbers = #tpu.dot_dimension_numbers<[1], [0], [0], [1], [0, 0, 1, 1], [], []>} : vector<128x8xbf16>, vector<8x8xbf16>, vector<128x8xf32> -> vector<128x8xf32>
    %82 = vector.extract_strided_slice %81 {offsets = [127, 0], sizes = [1, 8], strides = [1, 1]} : vector<128x8xf32> to vector<1x8xf32>
    %83 = vector.extract_strided_slice %81 {offsets = [0, 0], sizes = [127, 8], strides = [1, 1]} : vector<128x8xf32> to vector<127x8xf32>
    %84 = tpu.concatenate %82, %83 in 0 : vector<1x8xf32>, vector<127x8xf32> -> vector<128x8xf32>
    %85 = arith.addf %77, %84 : vector<128x8xf32>
    %c1_71 = arith.constant 1 : index
    %c0_72 = arith.constant 0 : index
    %c0_73 = arith.constant 0 : index
    %86 = vector.load %arg5[%c1_71, %c0_72, %c0_73] : memref<9x8x8xbf16, #tpu.memory_space<vmem>>, vector<1x8x8xbf16>
    %87 = vector.shape_cast %86 : vector<1x8x8xbf16> to vector<8x8xbf16>
    %cst_74 = arith.constant dense<0.000000e+00> : vector<128x8xf32>
    %88 = tpu.matmul %78, %87, %cst_74 {dimension_numbers = #tpu.dot_dimension_numbers<[1], [0], [0], [1], [0, 0, 1, 1], [], []>} : vector<128x8xbf16>, vector<8x8xbf16>, vector<128x8xf32> -> vector<128x8xf32>
    %89 = arith.addf %85, %88 : vector<128x8xf32>
    %c2_75 = arith.constant 2 : index
    %c0_76 = arith.constant 0 : index
    %c0_77 = arith.constant 0 : index
    %90 = vector.load %arg5[%c2_75, %c0_76, %c0_77] : memref<9x8x8xbf16, #tpu.memory_space<vmem>>, vector<1x8x8xbf16>
    %91 = vector.shape_cast %90 : vector<1x8x8xbf16> to vector<8x8xbf16>
    %cst_78 = arith.constant dense<0.000000e+00> : vector<128x8xf32>
    %92 = tpu.matmul %78, %91, %cst_78 {dimension_numbers = #tpu.dot_dimension_numbers<[1], [0], [0], [1], [0, 0, 1, 1], [], []>} : vector<128x8xbf16>, vector<8x8xbf16>, vector<128x8xf32> -> vector<128x8xf32>
    %93 = vector.extract_strided_slice %92 {offsets = [1, 0], sizes = [127, 8], strides = [1, 1]} : vector<128x8xf32> to vector<127x8xf32>
    %94 = vector.extract_strided_slice %92 {offsets = [0, 0], sizes = [1, 8], strides = [1, 1]} : vector<128x8xf32> to vector<1x8xf32>
    %95 = tpu.concatenate %93, %94 in 0 : vector<127x8xf32>, vector<1x8xf32> -> vector<128x8xf32>
    %96 = arith.addf %89, %95 : vector<128x8xf32>
    %c16_79 = arith.constant 16 : index
    %c0_80 = arith.constant 0 : index
    %97 = vector.load %arg10[%c16_79, %c0_80] : memref<160x8xbf16, #tpu.memory_space<vmem>>, vector<128x8xbf16>
    %c3_81 = arith.constant 3 : index
    %c0_82 = arith.constant 0 : index
    %c0_83 = arith.constant 0 : index
    %98 = vector.load %arg5[%c3_81, %c0_82, %c0_83] : memref<9x8x8xbf16, #tpu.memory_space<vmem>>, vector<1x8x8xbf16>
    %99 = vector.shape_cast %98 : vector<1x8x8xbf16> to vector<8x8xbf16>
    %cst_84 = arith.constant dense<0.000000e+00> : vector<128x8xf32>
    %100 = tpu.matmul %97, %99, %cst_84 {dimension_numbers = #tpu.dot_dimension_numbers<[1], [0], [0], [1], [0, 0, 1, 1], [], []>} : vector<128x8xbf16>, vector<8x8xbf16>, vector<128x8xf32> -> vector<128x8xf32>
    %101 = vector.extract_strided_slice %100 {offsets = [127, 0], sizes = [1, 8], strides = [1, 1]} : vector<128x8xf32> to vector<1x8xf32>
    %102 = vector.extract_strided_slice %100 {offsets = [0, 0], sizes = [127, 8], strides = [1, 1]} : vector<128x8xf32> to vector<127x8xf32>
    %103 = tpu.concatenate %101, %102 in 0 : vector<1x8xf32>, vector<127x8xf32> -> vector<128x8xf32>
    %104 = arith.addf %96, %103 : vector<128x8xf32>
    %c4_85 = arith.constant 4 : index
    %c0_86 = arith.constant 0 : index
    %c0_87 = arith.constant 0 : index
    %105 = vector.load %arg5[%c4_85, %c0_86, %c0_87] : memref<9x8x8xbf16, #tpu.memory_space<vmem>>, vector<1x8x8xbf16>
    %106 = vector.shape_cast %105 : vector<1x8x8xbf16> to vector<8x8xbf16>
    %cst_88 = arith.constant dense<0.000000e+00> : vector<128x8xf32>
    %107 = tpu.matmul %97, %106, %cst_88 {dimension_numbers = #tpu.dot_dimension_numbers<[1], [0], [0], [1], [0, 0, 1, 1], [], []>} : vector<128x8xbf16>, vector<8x8xbf16>, vector<128x8xf32> -> vector<128x8xf32>
    %108 = arith.addf %104, %107 : vector<128x8xf32>
    %c5_89 = arith.constant 5 : index
    %c0_90 = arith.constant 0 : index
    %c0_91 = arith.constant 0 : index
    %109 = vector.load %arg5[%c5_89, %c0_90, %c0_91] : memref<9x8x8xbf16, #tpu.memory_space<vmem>>, vector<1x8x8xbf16>
    %110 = vector.shape_cast %109 : vector<1x8x8xbf16> to vector<8x8xbf16>
    %cst_92 = arith.constant dense<0.000000e+00> : vector<128x8xf32>
    %111 = tpu.matmul %97, %110, %cst_92 {dimension_numbers = #tpu.dot_dimension_numbers<[1], [0], [0], [1], [0, 0, 1, 1], [], []>} : vector<128x8xbf16>, vector<8x8xbf16>, vector<128x8xf32> -> vector<128x8xf32>
    %112 = vector.extract_strided_slice %111 {offsets = [1, 0], sizes = [127, 8], strides = [1, 1]} : vector<128x8xf32> to vector<127x8xf32>
    %113 = vector.extract_strided_slice %111 {offsets = [0, 0], sizes = [1, 8], strides = [1, 1]} : vector<128x8xf32> to vector<1x8xf32>
    %114 = tpu.concatenate %112, %113 in 0 : vector<127x8xf32>, vector<1x8xf32> -> vector<128x8xf32>
    %115 = arith.addf %108, %114 : vector<128x8xf32>
    %c32 = arith.constant 32 : index
    %c0_93 = arith.constant 0 : index
    %116 = vector.load %arg10[%c32, %c0_93] : memref<160x8xbf16, #tpu.memory_space<vmem>>, vector<128x8xbf16>
    %c6_94 = arith.constant 6 : index
    %c0_95 = arith.constant 0 : index
    %c0_96 = arith.constant 0 : index
    %117 = vector.load %arg5[%c6_94, %c0_95, %c0_96] : memref<9x8x8xbf16, #tpu.memory_space<vmem>>, vector<1x8x8xbf16>
    %118 = vector.shape_cast %117 : vector<1x8x8xbf16> to vector<8x8xbf16>
    %cst_97 = arith.constant dense<0.000000e+00> : vector<128x8xf32>
    %119 = tpu.matmul %116, %118, %cst_97 {dimension_numbers = #tpu.dot_dimension_numbers<[1], [0], [0], [1], [0, 0, 1, 1], [], []>} : vector<128x8xbf16>, vector<8x8xbf16>, vector<128x8xf32> -> vector<128x8xf32>
    %120 = vector.extract_strided_slice %119 {offsets = [127, 0], sizes = [1, 8], strides = [1, 1]} : vector<128x8xf32> to vector<1x8xf32>
    %121 = vector.extract_strided_slice %119 {offsets = [0, 0], sizes = [127, 8], strides = [1, 1]} : vector<128x8xf32> to vector<127x8xf32>
    %122 = tpu.concatenate %120, %121 in 0 : vector<1x8xf32>, vector<127x8xf32> -> vector<128x8xf32>
    %123 = arith.addf %115, %122 : vector<128x8xf32>
    %c7_98 = arith.constant 7 : index
    %c0_99 = arith.constant 0 : index
    %c0_100 = arith.constant 0 : index
    %124 = vector.load %arg5[%c7_98, %c0_99, %c0_100] : memref<9x8x8xbf16, #tpu.memory_space<vmem>>, vector<1x8x8xbf16>
    %125 = vector.shape_cast %124 : vector<1x8x8xbf16> to vector<8x8xbf16>
    %cst_101 = arith.constant dense<0.000000e+00> : vector<128x8xf32>
    %126 = tpu.matmul %116, %125, %cst_101 {dimension_numbers = #tpu.dot_dimension_numbers<[1], [0], [0], [1], [0, 0, 1, 1], [], []>} : vector<128x8xbf16>, vector<8x8xbf16>, vector<128x8xf32> -> vector<128x8xf32>
    %127 = arith.addf %123, %126 : vector<128x8xf32>
    %c8_102 = arith.constant 8 : index
    %c0_103 = arith.constant 0 : index
    %c0_104 = arith.constant 0 : index
    %128 = vector.load %arg5[%c8_102, %c0_103, %c0_104] : memref<9x8x8xbf16, #tpu.memory_space<vmem>>, vector<1x8x8xbf16>
    %129 = vector.shape_cast %128 : vector<1x8x8xbf16> to vector<8x8xbf16>
    %cst_105 = arith.constant dense<0.000000e+00> : vector<128x8xf32>
    %130 = tpu.matmul %116, %129, %cst_105 {dimension_numbers = #tpu.dot_dimension_numbers<[1], [0], [0], [1], [0, 0, 1, 1], [], []>} : vector<128x8xbf16>, vector<8x8xbf16>, vector<128x8xf32> -> vector<128x8xf32>
    %131 = vector.extract_strided_slice %130 {offsets = [1, 0], sizes = [127, 8], strides = [1, 1]} : vector<128x8xf32> to vector<127x8xf32>
    %132 = vector.extract_strided_slice %130 {offsets = [0, 0], sizes = [1, 8], strides = [1, 1]} : vector<128x8xf32> to vector<1x8xf32>
    %133 = tpu.concatenate %131, %132 in 0 : vector<127x8xf32>, vector<1x8xf32> -> vector<128x8xf32>
    %134 = arith.addf %127, %133 : vector<128x8xf32>
    %c0_106 = arith.constant 0 : index
    %c0_107 = arith.constant 0 : index
    %135 = vector.load %arg6[%c0_106, %c0_107] : memref<1x8xf32, #tpu.memory_space<vmem>>, vector<1x8xf32>
    %136 = vector.broadcast %135 : vector<1x8xf32> to vector<128x8xf32>
    %137 = arith.addf %134, %136 : vector<128x8xf32>
    %c3_108 = arith.constant 3 : index
    %c0_109 = arith.constant 0 : index
    %c0_110 = arith.constant 0 : index
    %138 = vector.load %arg1[%c3_108, %c0_109, %c0_110] : memref<4x144x4xbf16, #tpu.memory_space<vmem>>, vector<1x128x4xbf16>
    %139 = vector.shape_cast %138 : vector<1x128x4xbf16> to vector<128x4xbf16>
    %c0_111 = arith.constant 0 : index
    %c0_112 = arith.constant 0 : index
    %140 = vector.load %arg7[%c0_111, %c0_112] : memref<4x8xbf16, #tpu.memory_space<vmem>>, vector<4x8xbf16>
    %cst_113 = arith.constant dense<0.000000e+00> : vector<128x8xf32>
    %141 = tpu.matmul %139, %140, %cst_113 {dimension_numbers = #tpu.dot_dimension_numbers<[1], [0], [0], [1], [0, 0, 1, 1], [], []>} : vector<128x4xbf16>, vector<4x8xbf16>, vector<128x8xf32> -> vector<128x8xf32>
    %c0_114 = arith.constant 0 : index
    %c0_115 = arith.constant 0 : index
    %142 = vector.load %arg8[%c0_114, %c0_115] : memref<1x8xf32, #tpu.memory_space<vmem>>, vector<1x8xf32>
    %143 = vector.broadcast %142 : vector<1x8xf32> to vector<128x8xf32>
    %144 = arith.addf %141, %143 : vector<128x8xf32>
    %145 = arith.addf %137, %144 : vector<128x8xf32>
    %cst_116 = arith.constant 0.000000e+00 : f32
    %146 = vector.broadcast %cst_116 : f32 to vector<128x8xf32>
    %147 = arith.maximumf %145, %146 : vector<128x8xf32>
    %148 = arith.truncf %147 : vector<128x8xf32> to vector<128x8xbf16>
    %c0_117 = arith.constant 0 : index
    %c0_118 = arith.constant 0 : index
    %c0_119 = arith.constant 0 : index
    %149 = vector.load %arg9[%c0_117, %c0_118, %c0_119] : memref<1x128x8xbf16, #tpu.memory_space<vmem>>, vector<1x128x8xbf16>
    %150 = vector.shape_cast %149 : vector<1x128x8xbf16> to vector<128x8xbf16>
    %151 = vector.shape_cast %148 : vector<128x8xbf16> to vector<1x128x8xbf16>
    tpu.vector_store %arg9[%c0_117, %c0_118, %c0_119], %151 {strides = array<i32>} : memref<1x128x8xbf16, #tpu.memory_space<vmem>>, vector<1x128x8xbf16>,
    return
  }
  func.func @transform_0(%arg0: i32) -> (i32, i32, i32) {
    %c0_i32 = arith.constant 0 : i32
    %c0_i32_0 = arith.constant 0 : i32
    %c0_i32_1 = arith.constant 0 : i32
    return %arg0, %c0_i32, %c0_i32_0 : i32, i32, i32
  }
  func.func @transform_1(%arg0: i32) -> (i32, i32) {
    %c0_i32 = arith.constant 0 : i32
    %c0_i32_0 = arith.constant 0 : i32
    %c0_i32_1 = arith.constant 0 : i32
    return %c0_i32, %c0_i32_0 : i32, i32
  }
  func.func @transform_2(%arg0: i32) -> (i32, i32, i32) {
    %c0_i32 = arith.constant 0 : i32
    %c0_i32_0 = arith.constant 0 : i32
    %c0_i32_1 = arith.constant 0 : i32
    %c0_i32_2 = arith.constant 0 : i32
    return %c0_i32, %c0_i32_0, %c0_i32_1 : i32, i32, i32
  }
  func.func @transform_3(%arg0: i32) -> (i32, i32) {
    %c0_i32 = arith.constant 0 : i32
    %c0_i32_0 = arith.constant 0 : i32
    %c0_i32_1 = arith.constant 0 : i32
    return %c0_i32, %c0_i32_0 : i32, i32
  }
  func.func @transform_4(%arg0: i32) -> (i32, i32, i32) {
    %c0_i32 = arith.constant 0 : i32
    %c0_i32_0 = arith.constant 0 : i32
    %c0_i32_1 = arith.constant 0 : i32
    %c0_i32_2 = arith.constant 0 : i32
    return %c0_i32, %c0_i32_0, %c0_i32_1 : i32, i32, i32
  }
  func.func @transform_5(%arg0: i32) -> (i32, i32) {
    %c0_i32 = arith.constant 0 : i32
    %c0_i32_0 = arith.constant 0 : i32
    %c0_i32_1 = arith.constant 0 : i32
    return %c0_i32, %c0_i32_0 : i32, i32
  }
  func.func @transform_6(%arg0: i32) -> (i32, i32) {
    %c0_i32 = arith.constant 0 : i32
    %c0_i32_0 = arith.constant 0 : i32
    %c0_i32_1 = arith.constant 0 : i32
    return %c0_i32, %c0_i32_0 : i32, i32
  }
  func.func @transform_7(%arg0: i32) -> (i32, i32) {
    %c0_i32 = arith.constant 0 : i32
    %c0_i32_0 = arith.constant 0 : i32
    %c0_i32_1 = arith.constant 0 : i32
    return %c0_i32, %c0_i32_0 : i32, i32
  }
  func.func @transform_8(%arg0: i32) -> (i32, i32, i32) {
    %c0_i32 = arith.constant 0 : i32
    %c0_i32_0 = arith.constant 0 : i32
    %c0_i32_1 = arith.constant 0 : i32
    return %arg0, %c0_i32, %c0_i32_0 : i32, i32, i32
  }
}

</mosaic_0001>

<llo_original>
// kernel: basic_block_forward.1
$region0: #{basic_block_forward.1}
  #allocation0 [shape = 'u32[]', space=smem, size = 0x4, offset = 0x4, fixed_abs, tag = 'smem constant byte address 0x4 - core index']
  #allocation1 [shape = 'u32[144,128]{1,0:T(1,128)}', space=vmem, size = 0x12000, scoped, tag = 'internal scratch']
  #allocation2 [shape = 'bf16[160,8]{1,0:T(16,128)(2,1)}', space=vmem, size = 0xa000, scoped, tag = 'scratch operand']
  %s0 = inlined_call_operand.vmem [shape: bf16[8,144,4], index: 0, kind: input, shape index: {}]
  %s1 = inlined_call_operand.vmem [shape: f32[128,1], index: 1, kind: input, shape index: {}]
  %s2 = inlined_call_operand.vmem [shape: bf16[9,4,8], index: 2, kind: input, shape index: {}]
  %s3 = inlined_call_operand.vmem [shape: f32[1,8], index: 3, kind: input, shape index: {}]
  %s4 = inlined_call_operand.vmem [shape: bf16[9,8,8], index: 4, kind: input, shape index: {}]
  %s5 = inlined_call_operand.vmem [shape: f32[1,8], index: 5, kind: input, shape index: {}]
  %s6 = inlined_call_operand.vmem [shape: bf16[4,8], index: 6, kind: input, shape index: {}]
  %s7 = inlined_call_operand.vmem [shape: f32[1,8], index: 7, kind: input, shape index: {}]
  %s8 = inlined_call_operand.vmem [shape: bf16[2,128,8], index: 8, kind: output, shape index: {}]
  %s9 = sld [smem:[#allocation0]]
  $region65: #{basic_block_forward.1} parent=0
    _
  %s11 = ssub.s32 1, %s9
  %s12 = scalar_select 0, %s11, %s9
  loop: start=0, step=1, limit=4
  $region2: #{basic_block_forward.1} parent=0 // loop_pre_header
    _
  $region3: #{basic_block_forward.1} parent=0 // loop_header
    %s14 = sphi 0, %s18
    %p15 = scmp.ge.s32.totalorder %s14, 4
    %s24 = sphi 0, %s26
    %s27 = sphi 0, %s24
    %s28 = sphi 0, %s27
    %s44 = sphi 0, %s28
    %s48 = sphi 0, %s48
    %s50 = sphi 0, %s48
    %s51 = sphi 0, %s50
    %s65 = sphi 0, %s51
    %s69 = sphi 0, %s69
    %s71 = sphi 0, %s69
    %s72 = sphi 0, %s71
    %s86 = sphi 0, %s72
    %s90 = sphi 0, %s90
    %s92 = sphi 0, %s90
    %s93 = sphi 0, %s92
    %s107 = sphi 0, %s93
    %s111 = sphi 0, %s111
    %s113 = sphi 0, %s111
    %s114 = sphi 0, %s113
    %s128 = sphi 0, %s114
    %s132 = sphi 0, %s132
    %s134 = sphi 0, %s132
    %s135 = sphi 0, %s134
    %s149 = sphi 0, %s135
    %s153 = sphi 0, %s153
    %s155 = sphi 0, %s153
    %s156 = sphi 0, %s155
    %s170 = sphi 0, %s156
    %s174 = sphi 0, %s174
    %s176 = sphi 0, %s174
    %s177 = sphi 0, %s176
    %s191 = sphi 0, %s177
    %s197 = sphi 0, %s199
    %s200 = sphi 0, %s197
    %s201 = sphi 0, %s200
    %s217 = sphi 0, %s201
  $region4: #{basic_block_forward.1} parent=0 // loop_header_branch
    %17 = sbr.rel (%p15) target = $region8
  $region5: #{basic_block_forward.1} parent=0 // loop_body
    %s19 = ssub.s32 %s14, 1
    %s20 = ssub.s32 %s14, 2
    %s21 = sadd.s32 %s14, 1
    %s22 = ssub.s32 %s14, %s21
    %p23 = scmp.eq.s32.totalorder %s22, 0
    %s25 = sadd.s32 %s24, 1
    %s26 = scalar_select %p23, %s24, %s25
    %p29 = pneg %p23
    %p30 = scmp.eq.s32.totalorder %s14, 1
    %p31 = por %p29, %p30
    %p32 = scmp.ne.s32.totalorder %s24, %s27
    %p33 = scmp.eq.s32.totalorder %s14, 0
    %p34 = por %p32, %p33
    %p35 = scmp.ne.s32.totalorder %s24, %s27
    %p36 = scmp.eq.s32.totalorder %s19, 1
    %p37 = por %p35, %p36
    %p38 = scmp.ne.s32.totalorder %s27, %s28
    %p39 = scmp.eq.s32.totalorder %s19, 0
    %p40 = por %p38, %p39
    %p41 = scmp.ne.s32.totalorder %s27, %s28
    %p42 = scmp.eq.s32.totalorder %s20, 1
    %p43 = por %p41, %p42
    %p45 = scmp.ne.s32.totalorder %s28, %s44
    %p46 = scmp.eq.s32.totalorder %s20, 0
    %p47 = por %p45, %p46
    %s49 = sadd.s32 %s48, 1
    %p52 = scmp.eq.s32.totalorder %s14, 1
    %p53 = scmp.ne.s32.totalorder %s48, %s50
    %p54 = scmp.eq.s32.totalorder %s14, 0
    %p55 = por %p53, %p54
    %p56 = scmp.ne.s32.totalorder %s48, %s50
    %p57 = scmp.eq.s32.totalorder %s19, 1
    %p58 = por %p56, %p57
    %p59 = scmp.ne.s32.totalorder %s50, %s51
    %p60 = scmp.eq.s32.totalorder %s19, 0
    %p61 = por %p59, %p60
    %p62 = scmp.ne.s32.totalorder %s50, %s51
    %p63 = scmp.eq.s32.totalorder %s20, 1
    %p64 = por %p62, %p63
    %p66 = scmp.ne.s32.totalorder %s51, %s65
    %p67 = scmp.eq.s32.totalorder %s20, 0
    %p68 = por %p66, %p67
    %s70 = sadd.s32 %s69, 1
    %p73 = scmp.eq.s32.totalorder %s14, 1
    %p74 = scmp.ne.s32.totalorder %s69, %s71
    %p75 = scmp.eq.s32.totalorder %s14, 0
    %p76 = por %p74, %p75
    %p77 = scmp.ne.s32.totalorder %s69, %s71
    %p78 = scmp.eq.s32.totalorder %s19, 1
    %p79 = por %p77, %p78
    %p80 = scmp.ne.s32.totalorder %s71, %s72
    %p81 = scmp.eq.s32.totalorder %s19, 0
    %p82 = por %p80, %p81
    %p83 = scmp.ne.s32.totalorder %s71, %s72
    %p84 = scmp.eq.s32.totalorder %s20, 1
    %p85 = por %p83, %p84
    %p87 = scmp.ne.s32.totalorder %s72, %s86
    %p88 = scmp.eq.s32.totalorder %s20, 0
    %p89 = por %p87, %p88
    %s91 = sadd.s32 %s90, 1
    %p94 = scmp.eq.s32.totalorder %s14, 1
    %p95 = scmp.ne.s32.totalorder %s90, %s92
    %p96 = scmp.eq.s32.totalorder %s14, 0
    %p97 = por %p95, %p96
    %p98 = scmp.ne.s32.totalorder %s90, %s92
    %p99 = scmp.eq.s32.totalorder %s19, 1
    %p100 = por %p98, %p99
    %p101 = scmp.ne.s32.totalorder %s92, %s93
    %p102 = scmp.eq.s32.totalorder %s19, 0
    %p103 = por %p101, %p102
    %p104 = scmp.ne.s32.totalorder %s92, %s93
    %p105 = scmp.eq.s32.totalorder %s20, 1
    %p106 = por %p104, %p105
    %p108 = scmp.ne.s32.totalorder %s93, %s107
    %p109 = scmp.eq.s32.totalorder %s20, 0
    %p110 = por %p108, %p109
    %s112 = sadd.s32 %s111, 1
    %p115 = scmp.eq.s32.totalorder %s14, 1
    %p116 = scmp.ne.s32.totalorder %s111, %s113
    %p117 = scmp.eq.s32.totalorder %s14, 0
    %p118 = por %p116, %p117
    %p119 = scmp.ne.s32.totalorder %s111, %s113
    %p120 = scmp.eq.s32.totalorder %s19, 1
    %p121 = por %p119, %p120
    %p122 = scmp.ne.s32.totalorder %s113, %s114
    %p123 = scmp.eq.s32.totalorder %s19, 0
    %p124 = por %p122, %p123
    %p125 = scmp.ne.s32.totalorder %s113, %s114
    %p126 = scmp.eq.s32.totalorder %s20, 1
    %p127 = por %p125, %p126
    %p129 = scmp.ne.s32.totalorder %s114, %s128
    %p130 = scmp.eq.s32.totalorder %s20, 0
    %p131 = por %p129, %p130
    %s133 = sadd.s32 %s132, 1
    %p136 = scmp.eq.s32.totalorder %s14, 1
    %p137 = scmp.ne.s32.totalorder %s132, %s134
    %p138 = scmp.eq.s32.totalorder %s14, 0
    %p139 = por %p137, %p138
    %p140 = scmp.ne.s32.totalorder %s132, %s134
    %p141 = scmp.eq.s32.totalorder %s19, 1
    %p142 = por %p140, %p141
    %p143 = scmp.ne.s32.totalorder %s134, %s135
    %p144 = scmp.eq.s32.totalorder %s19, 0
    %p145 = por %p143, %p144
    %p146 = scmp.ne.s32.totalorder %s134, %s135
    %p147 = scmp.eq.s32.totalorder %s20, 1
    %p148 = por %p146, %p147
    %p150 = scmp.ne.s32.totalorder %s135, %s149
    %p151 = scmp.eq.s32.totalorder %s20, 0
    %p152 = por %p150, %p151
    %s154 = sadd.s32 %s153, 1
    %p157 = scmp.eq.s32.totalorder %s14, 1
    %p158 = scmp.ne.s32.totalorder %s153, %s155
    %p159 = scmp.eq.s32.totalorder %s14, 0
    %p160 = por %p158, %p159
    %p161 = scmp.ne.s32.totalorder %s153, %s155
    %p162 = scmp.eq.s32.totalorder %s19, 1
    %p163 = por %p161, %p162
    %p164 = scmp.ne.s32.totalorder %s155, %s156
    %p165 = scmp.eq.s32.totalorder %s19, 0
    %p166 = por %p164, %p165
    %p167 = scmp.ne.s32.totalorder %s155, %s156
    %p168 = scmp.eq.s32.totalorder %s20, 1
    %p169 = por %p167, %p168
    %p171 = scmp.ne.s32.totalorder %s156, %s170
    %p172 = scmp.eq.s32.totalorder %s20, 0
    %p173 = por %p171, %p172
    %s175 = sadd.s32 %s174, 1
    %p178 = scmp.eq.s32.totalorder %s14, 1
    %p179 = scmp.ne.s32.totalorder %s174, %s176
    %p180 = scmp.eq.s32.totalorder %s14, 0
    %p181 = por %p179, %p180
    %p182 = scmp.ne.s32.totalorder %s174, %s176
    %p183 = scmp.eq.s32.totalorder %s19, 1
    %p184 = por %p182, %p183
    %p185 = scmp.ne.s32.totalorder %s176, %s177
    %p186 = scmp.eq.s32.totalorder %s19, 0
    %p187 = por %p185, %p186
    %p188 = scmp.ne.s32.totalorder %s176, %s177
    %p189 = scmp.eq.s32.totalorder %s20, 1
    %p190 = por %p188, %p189
    %p192 = scmp.ne.s32.totalorder %s177, %s191
    %p193 = scmp.eq.s32.totalorder %s20, 0
    %p194 = por %p192, %p193
    %s195 = ssub.s32 %s14, %s21
    %p196 = scmp.eq.s32.totalorder %s195, 0
    %s198 = sadd.s32 %s197, 1
    %s199 = scalar_select %p196, %s197, %s198
    %p202 = pneg %p196
    %p203 = scmp.eq.s32.totalorder %s14, 1
    %p204 = por %p202, %p203
    %p205 = scmp.ne.s32.totalorder %s197, %s200
    %p206 = scmp.eq.s32.totalorder %s14, 0
    %p207 = por %p205, %p206
    %p208 = scmp.ne.s32.totalorder %s197, %s200
    %p209 = scmp.eq.s32.totalorder %s19, 1
    %p210 = por %p208, %p209
    %p211 = scmp.ne.s32.totalorder %s200, %s201
    %p212 = scmp.eq.s32.totalorder %s19, 0
    %p213 = por %p211, %p212
    %p214 = scmp.ne.s32.totalorder %s200, %s201
    %p215 = scmp.eq.s32.totalorder %s20, 1
    %p216 = por %p214, %p215
    %p218 = scmp.ne.s32.totalorder %s201, %s217
    %p219 = scmp.eq.s32.totalorder %s20, 0
    %p220 = por %p218, %p219
    %p221 = scmp.le.s32.totalorder 1, %s14
    %p222 = scmp.lt.s32.totalorder %s14, 3
    %p223 = pnand %p221, %p222
    %p224 = pneg %p223
    // Predicated region
    $region9: #{basic_block_forward.1} parent=5 // pred_check
      _
    $region10: #{basic_block_forward.1} parent=5 // pred_check_branch
      %226 = sbr.rel (%p223) target = $region12
    $region11: #{basic_block_forward.1} parent=5 // pred_region
      %s227 = ssub.s32 %s14, 1
      // Predicated region
      $region13: #{basic_block_forward.1} parent=11 // pred_check
        %p228 = pneg %p61
      $region14: #{basic_block_forward.1} parent=11 // pred_check_branch
        %230 = sbr.rel (%p228) target = $region16
      $region15: #{basic_block_forward.1} parent=11 // pred_region
        _
      $region16: #{basic_block_forward.1} parent=11 // pred_fallthru
        _
      // Predicated region
      $region17: #{basic_block_forward.1} parent=11 // pred_check
        %p231 = pneg %p82
      $region18: #{basic_block_forward.1} parent=11 // pred_check_branch
        %233 = sbr.rel (%p231) target = $region20
      $region19: #{basic_block_forward.1} parent=11 // pred_region
        _
      $region20: #{basic_block_forward.1} parent=11 // pred_fallthru
        _
      // Predicated region
      $region21: #{basic_block_forward.1} parent=11 // pred_check
        %p234 = pneg %p103
      $region22: #{basic_block_forward.1} parent=11 // pred_check_branch
        %236 = sbr.rel (%p234) target = $region24
      $region23: #{basic_block_forward.1} parent=11 // pred_region
        _
      $region24: #{basic_block_forward.1} parent=11 // pred_fallthru
        _
      // Predicated region
      $region25: #{basic_block_forward.1} parent=11 // pred_check
        %p237 = pneg %p124
      $region26: #{basic_block_forward.1} parent=11 // pred_check_branch
        %239 = sbr.rel (%p237) target = $region28
      $region27: #{basic_block_forward.1} parent=11 // pred_region
        _
      $region28: #{basic_block_forward.1} parent=11 // pred_fallthru
        _
      // Predicated region
      $region29: #{basic_block_forward.1} parent=11 // pred_check
        %p240 = pneg %p145
      $region30: #{basic_block_forward.1} parent=11 // pred_check_branch
        %242 = sbr.rel (%p240) target = $region32
      $region31: #{basic_block_forward.1} parent=11 // pred_region
        _
      $region32: #{basic_block_forward.1} parent=11 // pred_fallthru
        _
      // Predicated region
      $region33: #{basic_block_forward.1} parent=11 // pred_check
        %p243 = pneg %p166
      $region34: #{basic_block_forward.1} parent=11 // pred_check_branch
        %245 = sbr.rel (%p243) target = $region36
      $region35: #{basic_block_forward.1} parent=11 // pred_region
        _
      $region36: #{basic_block_forward.1} parent=11 // pred_fallthru
        _
      // Predicated region
      $region37: #{basic_block_forward.1} parent=11 // pred_check
        %p246 = pneg %p187
      $region38: #{basic_block_forward.1} parent=11 // pred_check_branch
        %248 = sbr.rel (%p246) target = $region40
      $region39: #{basic_block_forward.1} parent=11 // pred_region
        _
      $region40: #{basic_block_forward.1} parent=11 // pred_fallthru
        _
    $region12: #{basic_block_forward.1} parent=5 // pred_fallthru
      _
    %p249 = scmp.lt.s32.totalorder %s14, 2
    // Predicated region
    $region41: #{basic_block_forward.1} parent=5 // pred_check
      %p250 = pneg %p249
    $region42: #{basic_block_forward.1} parent=5 // pred_check_branch
      %252 = sbr.rel (%p250) target = $region44
    $region43: #{basic_block_forward.1} parent=5 // pred_region
      // Predicated region
      $region45: #{basic_block_forward.1} parent=43 // pred_check
        %p253 = pneg %p34
      $region46: #{basic_block_forward.1} parent=43 // pred_check_branch
        %255 = sbr.rel (%p253) target = $region48
      $region47: #{basic_block_forward.1} parent=43 // pred_region
        %s256 = smul.u32 4, %s14
        %p257 = scmp.lt.s32.totalorder %s256, 7
        %s258 = scalar_select %p257, %s256, 7
        %s259 = smul.addr %s258, 18
        %s260 = smul.addr %s259, 4
        %s261 = scalar_lea.vmem %s0, %s260
        %s262 = smul.u32 4, %s14
      $region48: #{basic_block_forward.1} parent=43 // pred_fallthru
        _
    $region44: #{basic_block_forward.1} parent=5 // pred_fallthru
      _
    %p263 = scmp.le.s32.totalorder 1, %s14
    %p264 = scmp.lt.s32.totalorder %s14, 3
    %p265 = pnand %p263, %p264
    %p266 = pneg %p265
    // Predicated region
    $region49: #{basic_block_forward.1} parent=5 // pred_check
      _
    $region50: #{basic_block_forward.1} parent=5 // pred_check_branch
      %268 = sbr.rel (%p265) target = $region52
    $region51: #{basic_block_forward.1} parent=5 // pred_region
      %s269 = ssub.s32 %s14, 1
      %s270 = smul.u32 4, %s19
      %p271 = scmp.lt.s32.totalorder %s270, 7
      %s272 = scalar_select %p271, %s270, 7
      %s273 = smul.addr %s272, 18
      %s274 = smul.addr %s273, 4
      %s275 = scalar_lea.vmem %s0, %s274
      %p276 = pneg %p40
      %p277 = pneg %p37
      %p278 = pneg %p61
      %p279 = pneg %p58
      %p280 = pneg %p82
      %p281 = pneg %p79
      %p282 = pneg %p103
      %p283 = pneg %p100
      %p284 = pneg %p124
      %p285 = pneg %p121
      %p286 = pneg %p145
      %p287 = pneg %p142
      %p288 = pneg %p166
      %p289 = pneg %p163
      %p290 = pneg %p187
      %p291 = pneg %p184
      %p292 = pneg %p213
      %p293 = pneg %p210
      %p294 = scmp.lt.s32.totalorder %s19, 1
      %s295 = scalar_select %p294, %s19, 1
      %s296 = smul.addr %s295, 16
      %s297 = smul.addr %s296, 4
      %s298 = scalar_lea.vmem %s8, %s297
      %s299 = smul.u32 4, %s19
      %p300 = scmp.lt.s32.totalorder %s299, 7
      %s301 = scalar_select %p300, %s299, 7
      %s302 = smul.addr %s301, 18
      %s303 = smul.addr %s302, 4
      %s304 = scalar_lea.vmem %s0, %s303
      %s305 = smul.u32 4, %s19
      %p306 = scmp.lt.s32.totalorder %s19, 1
      %s307 = scalar_select %p306, %s19, 1
      %s308 = smul.addr %s307, 16
      %s309 = smul.addr %s308, 4
      %s310 = scalar_lea.vmem %s8, %s309
      %v312 = vld [vmem:[%s304] sm:$0xf]
      %v313 = vld [vmem:[%s304 + $0x4] sm:$0xf]
      %v314 = vld [vmem:[%s304 + $0x8] sm:$0xf]
      %v315 = vld [vmem:[%s304 + $0xc] sm:$0xf]
      %v316 = vld [vmem:[%s304 + $0x10] sm:$0xf]
      %v317 = vld [vmem:[%s304 + $0x14] sm:$0xf]
      %v318 = vld [vmem:[%s304 + $0x18] sm:$0xf]
      %v319 = vld [vmem:[%s304 + $0x1c] sm:$0xf]
      %v320 = vld [vmem:[%s304 + $0x20] sm:$0xf]
      %v321 = vld [vmem:[%s304 + $0x24] sm:$0xf]
      %v322 = vld [vmem:[%s304 + $0x28] sm:$0xf]
      %v323 = vld [vmem:[%s304 + $0x2c] sm:$0xf]
      %v324 = vld [vmem:[%s304 + $0x30] sm:$0xf]
      %v325 = vld [vmem:[%s304 + $0x34] sm:$0xf]
      %v326 = vld [vmem:[%s304 + $0x38] sm:$0xf]
      %v327 = vld [vmem:[%s304 + $0x3c] sm:$0xf]
      %v328 = vld [vmem:[%s2] sm:$0x3]
      %s329 = scalar_lea.vmem %s304, 72
      %v330 = vld [vmem:[%s329] sm:$0xf]
      %v331 = vld [vmem:[%s329 + $0x4] sm:$0xf]
      %v332 = vld [vmem:[%s329 + $0x8] sm:$0xf]
      %v333 = vld [vmem:[%s329 + $0xc] sm:$0xf]
      %v334 = vld [vmem:[%s329 + $0x10] sm:$0xf]
      %v335 = vld [vmem:[%s329 + $0x14] sm:$0xf]
      %v336 = vld [vmem:[%s329 + $0x18] sm:$0xf]
      %v337 = vld [vmem:[%s329 + $0x1c] sm:$0xf]
      %v338 = vld [vmem:[%s329 + $0x20] sm:$0xf]
      %v339 = vld [vmem:[%s329 + $0x24] sm:$0xf]
      %v340 = vld [vmem:[%s329 + $0x28] sm:$0xf]
      %v341 = vld [vmem:[%s329 + $0x2c] sm:$0xf]
      %v342 = vld [vmem:[%s329 + $0x30] sm:$0xf]
      %v343 = vld [vmem:[%s329 + $0x34] sm:$0xf]
      %v344 = vld [vmem:[%s329 + $0x38] sm:$0xf]
      %v345 = vld [vmem:[%s329 + $0x3c] sm:$0xf]
      %s346 = scalar_lea.vmem %s2, 2
      %v347 = vld [vmem:[%s346] sm:$0x3]
      %v364 = vunpack.c.l.b16 %v330
      %v365 = vunpack.c.l.b16 %v331
      %v366 = vunpack.c.l.b16 %v332
      %v367 = vunpack.c.l.b16 %v333
      %v368 = vunpack.c.l.b16 %v334
      %v369 = vunpack.c.l.b16 %v335
      %v370 = vunpack.c.l.b16 %v336
      %v371 = vunpack.c.l.b16 %v337
      %v372 = vunpack.c.l.b16 %v338
      %v373 = vunpack.c.l.b16 %v339
      %v374 = vunpack.c.l.b16 %v340
      %v375 = vunpack.c.l.b16 %v341
      %v376 = vunpack.c.l.b16 %v342
      %v377 = vunpack.c.l.b16 %v343
      %v378 = vunpack.c.l.b16 %v344
      %v379 = vunpack.c.l.b16 %v345
      %v380 = vpack.c.b16 %v365, %v364
      %v381 = vpack.c.b16 %v367, %v366
      %v382 = vpack.c.b16 %v369, %v368
      %v383 = vpack.c.b16 %v371, %v370
      %v384 = vpack.c.b16 %v373, %v372
      %v385 = vpack.c.b16 %v375, %v374
      %v386 = vpack.c.b16 %v377, %v376
      %v387 = vpack.c.b16 %v379, %v378
      %vm388 = vcmask 31744
      %v390 = vsel %vm388, %v380, 0
      %v393 = vsel %vm388, %v381, 0
      %v396 = vsel %vm388, %v382, 0
      %v399 = vsel %vm388, %v383, 0
      %v402 = vsel %vm388, %v384, 0
      %v405 = vsel %vm388, %v385, 0
      %v408 = vsel %vm388, %v386, 0
      %v411 = vsel %vm388, %v387, 0
      %vm413 = vcmask 1041408
      %v415 = vsel %vm413, %v347, 0
      %417 = vmatprep.subr.bf16.mxu0 0
      %418 = vmatpush1.bf16.msra.mxu0 %v415
      %419 = vmatprep.subr.bf16.mxu0 0
      %420 = vmatpush1.bf16.msra.mxu0 0
      %421 = vmatprep.subr.bf16.mxu0 0
      %422 = vmatpush1.bf16.msra.mxu0 0
      %423 = vmatprep.subr.bf16.mxu0 0
      %424 = vmatpush1.bf16.msra.mxu0 0
      %425 = vmatprep.subr.bf16.mxu0 0
      %426 = vmatpush1.bf16.msra.mxu0 0
      %427 = vmatprep.subr.bf16.mxu0 0
      %428 = vmatpush1.bf16.msra.mxu0 0
      %429 = vmatprep.subr.bf16.mxu0 0
      %430 = vmatpush1.bf16.msra.mxu0 0
      %431 = vmatprep.subr.bf16.mxu0 0
      %432 = vmatpush1.bf16.msra.mxu0 0
      %433 = vmatprep.subr.bf16.mxu0 0
      %434 = vmatpush1.bf16.msra.mxu0 0
      %435 = vmatprep.subr.bf16.mxu0 0
      %436 = vmatpush1.bf16.msra.mxu0 0
      %437 = vmatprep.subr.bf16.mxu0 0
      %438 = vmatpush1.bf16.msra.mxu0 0
      %439 = vmatprep.subr.bf16.mxu0 0
      %440 = vmatpush1.bf16.msra.mxu0 0
      %441 = vmatprep.subr.bf16.mxu0 0
      %442 = vmatpush1.bf16.msra.mxu0 0
      %443 = vmatprep.subr.bf16.mxu0 0
      %444 = vmatpush1.bf16.msra.mxu0 0
      %445 = vmatprep.subr.bf16.mxu0 0
      %446 = vmatpush1.bf16.msra.mxu0 0
      %447 = vmatprep.subr.bf16.mxu0 0
      %448 = vmatpush1.bf16.msra.mxu0 0
      %449 = vmatprep.mubr.bf16.mxu0 0
      %450 = vmatmul.mubr.bf16.gmra.mrb[0].mxu0 %v390
      %v451 = vpop.f32.mrb[0].mxu0
      %v452 = vadd.f32 0.0, %v451
      %v453 = vpop.f32.mrb[0].mxu0
      %v454 = vpop.f32.mrb[0].mxu0
      %v455 = vadd.f32 0.0, %v454
      %v456 = vpop.f32.mrb[0].mxu0
      %457 = vmatprep.mubr.bf16.mxu0 0
      %458 = vmatmul.mubr.bf16.gmra.mrb[0].mxu0 %v393
      %v459 = vpop.f32.mrb[0].mxu0
      %v460 = vadd.f32 0.0, %v459
      %v461 = vpop.f32.mrb[0].mxu0
      %v462 = vpop.f32.mrb[0].mxu0
      %v463 = vadd.f32 0.0, %v462
      %v464 = vpop.f32.mrb[0].mxu0
      %465 = vmatprep.mubr.bf16.mxu0 0
      %466 = vmatmul.mubr.bf16.gmra.mrb[0].mxu0 %v396
      %v467 = vpop.f32.mrb[0].mxu0
      %v468 = vadd.f32 0.0, %v467
      %v469 = vpop.f32.mrb[0].mxu0
      %v470 = vpop.f32.mrb[0].mxu0
      %v471 = vadd.f32 0.0, %v470
      %v472 = vpop.f32.mrb[0].mxu0
      %473 = vmatprep.mubr.bf16.mxu0 0
      %474 = vmatmul.mubr.bf16.gmra.mrb[0].mxu0 %v399
      %v475 = vpop.f32.mrb[0].mxu0
      %v476 = vadd.f32 0.0, %v475
      %v477 = vpop.f32.mrb[0].mxu0
      %v478 = vpop.f32.mrb[0].mxu0
      %v479 = vadd.f32 0.0, %v478
      %v480 = vpop.f32.mrb[0].mxu0
      %481 = vmatprep.mubr.bf16.mxu0 0
      %482 = vmatmul.mubr.bf16.gmra.mrb[0].mxu0 %v402
      %v483 = vpop.f32.mrb[0].mxu0
      %v484 = vadd.f32 0.0, %v483
      %v485 = vpop.f32.mrb[0].mxu0
      %v486 = vpop.f32.mrb[0].mxu0
      %v487 = vadd.f32 0.0, %v486
      %v488 = vpop.f32.mrb[0].mxu0
      %489 = vmatprep.mubr.bf16.mxu0 0
      %490 = vmatmul.mubr.bf16.gmra.mrb[0].mxu0 %v405
      %v491 = vpop.f32.mrb[0].mxu0
      %v492 = vadd.f32 0.0, %v491
      %v493 = vpop.f32.mrb[0].mxu0
      %v494 = vpop.f32.mrb[0].mxu0
      %v495 = vadd.f32 0.0, %v494
      %v496 = vpop.f32.mrb[0].mxu0
      %497 = vmatprep.mubr.bf16.mxu0 0
      %498 = vmatmul.mubr.bf16.gmra.mrb[0].mxu0 %v408
      %v499 = vpop.f32.mrb[0].mxu0
      %v500 = vadd.f32 0.0, %v499
      %v501 = vpop.f32.mrb[0].mxu0
      %v502 = vpop.f32.mrb[0].mxu0
      %v503 = vadd.f32 0.0, %v502
      %v504 = vpop.f32.mrb[0].mxu0
      %505 = vmatprep.mubr.bf16.mxu0 0
      %506 = vmatmul.mubr.bf16.gmra.mrb[0].mxu0 %v411
      %v507 = vpop.f32.mrb[0].mxu0
      %v508 = vadd.f32 0.0, %v507
      %v509 = vpop.f32.mrb[0].mxu0
      %v510 = vpop.f32.mrb[0].mxu0
      %v511 = vadd.f32 0.0, %v510
      %v512 = vpop.f32.mrb[0].mxu0
      %513 = vdwg.mxu0
      %v530 = vunpack.c.l.b16 %v312
      %v531 = vunpack.c.l.b16 %v313
      %v532 = vunpack.c.l.b16 %v314
      %v533 = vunpack.c.l.b16 %v315
      %v534 = vunpack.c.l.b16 %v316
      %v535 = vunpack.c.l.b16 %v317
      %v536 = vunpack.c.l.b16 %v318
      %v537 = vunpack.c.l.b16 %v319
      %v538 = vunpack.c.l.b16 %v320
      %v539 = vunpack.c.l.b16 %v321
      %v540 = vunpack.c.l.b16 %v322
      %v541 = vunpack.c.l.b16 %v323
      %v542 = vunpack.c.l.b16 %v324
      %v543 = vunpack.c.l.b16 %v325
      %v544 = vunpack.c.l.b16 %v326
      %v545 = vunpack.c.l.b16 %v327
      %v546 = vpack.c.b16 %v531, %v530
      %v547 = vpack.c.b16 %v533, %v532
      %v548 = vpack.c.b16 %v535, %v534
      %v549 = vpack.c.b16 %v537, %v536
      %v550 = vpack.c.b16 %v539, %v538
      %v551 = vpack.c.b16 %v541, %v540
      %v552 = vpack.c.b16 %v543, %v542
      %v553 = vpack.c.b16 %v545, %v544
      %v555 = vsel %vm388, %v546, 0
      %v558 = vsel %vm388, %v547, 0
      %v561 = vsel %vm388, %v548, 0
      %v564 = vsel %vm388, %v549, 0
      %v567 = vsel %vm388, %v550, 0
      %v570 = vsel %vm388, %v551, 0
      %v573 = vsel %vm388, %v552, 0
      %v576 = vsel %vm388, %v553, 0
      %v579 = vsel %vm413, %v328, 0
      %581 = vmatprep.subr.bf16.mxu0 0
      %582 = vmatpush1.bf16.msra.mxu0 %v579
      %583 = vmatprep.subr.bf16.mxu0 0
      %584 = vmatpush1.bf16.msra.mxu0 0
      %585 = vmatprep.subr.bf16.mxu0 0
      %586 = vmatpush1.bf16.msra.mxu0 0
      %587 = vmatprep.subr.bf16.mxu0 0
      %588 = vmatpush1.bf16.msra.mxu0 0
      %589 = vmatprep.subr.bf16.mxu0 0
      %590 = vmatpush1.bf16.msra.mxu0 0
      %591 = vmatprep.subr.bf16.mxu0 0
      %592 = vmatpush1.bf16.msra.mxu0 0
      %593 = vmatprep.subr.bf16.mxu0 0
      %594 = vmatpush1.bf16.msra.mxu0 0
      %595 = vmatprep.subr.bf16.mxu0 0
      %596 = vmatpush1.bf16.msra.mxu0 0
      %597 = vmatprep.subr.bf16.mxu0 0
      %598 = vmatpush1.bf16.msra.mxu0 0
      %599 = vmatprep.subr.bf16.mxu0 0
      %600 = vmatpush1.bf16.msra.mxu0 0
      %601 = vmatprep.subr.bf16.mxu0 0
      %602 = vmatpush1.bf16.msra.mxu0 0
      %603 = vmatprep.subr.bf16.mxu0 0
      %604 = vmatpush1.bf16.msra.mxu0 0
      %605 = vmatprep.subr.bf16.mxu0 0
      %606 = vmatpush1.bf16.msra.mxu0 0
      %607 = vmatprep.subr.bf16.mxu0 0
      %608 = vmatpush1.bf16.msra.mxu0 0
      %609 = vmatprep.subr.bf16.mxu0 0
      %610 = vmatpush1.bf16.msra.mxu0 0
      %611 = vmatprep.subr.bf16.mxu0 0
      %612 = vmatpush1.bf16.msra.mxu0 0
      %613 = vmatprep.mubr.bf16.mxu0 0
      %614 = vmatmul.mubr.bf16.gmra.mrb[0].mxu0 %v555
      %v615 = vpop.f32.mrb[0].mxu0
      %v616 = vadd.f32 %v452, %v615
      %v617 = vpop.f32.mrb[0].mxu0
      %v618 = vpop.f32.mrb[0].mxu0
      %v619 = vadd.f32 %v455, %v618
      %v620 = vpop.f32.mrb[0].mxu0
      %621 = vmatprep.mubr.bf16.mxu0 0
      %622 = vmatmul.mubr.bf16.gmra.mrb[0].mxu0 %v558
      %v623 = vpop.f32.mrb[0].mxu0
      %v624 = vadd.f32 %v460, %v623
      %v625 = vpop.f32.mrb[0].mxu0
      %v626 = vpop.f32.mrb[0].mxu0
      %v627 = vadd.f32 %v463, %v626
      %v628 = vpop.f32.mrb[0].mxu0
      %629 = vmatprep.mubr.bf16.mxu0 0
      %630 = vmatmul.mubr.bf16.gmra.mrb[0].mxu0 %v561
      %v631 = vpop.f32.mrb[0].mxu0
      %v632 = vadd.f32 %v468, %v631
      %v633 = vpop.f32.mrb[0].mxu0
      %v634 = vpop.f32.mrb[0].mxu0
      %v635 = vadd.f32 %v471, %v634
      %v636 = vpop.f32.mrb[0].mxu0
      %637 = vmatprep.mubr.bf16.mxu0 0
      %638 = vmatmul.mubr.bf16.gmra.mrb[0].mxu0 %v564
      %v639 = vpop.f32.mrb[0].mxu0
      %v640 = vadd.f32 %v476, %v639
      %v641 = vpop.f32.mrb[0].mxu0
      %v642 = vpop.f32.mrb[0].mxu0
      %v643 = vadd.f32 %v479, %v642
      %v644 = vpop.f32.mrb[0].mxu0
      %645 = vmatprep.mubr.bf16.mxu0 0
      %646 = vmatmul.mubr.bf16.gmra.mrb[0].mxu0 %v567
      %v647 = vpop.f32.mrb[0].mxu0
      %v648 = vadd.f32 %v484, %v647
      %v649 = vpop.f32.mrb[0].mxu0
      %v650 = vpop.f32.mrb[0].mxu0
      %v651 = vadd.f32 %v487, %v650
      %v652 = vpop.f32.mrb[0].mxu0
      %653 = vmatprep.mubr.bf16.mxu0 0
      %654 = vmatmul.mubr.bf16.gmra.mrb[0].mxu0 %v570
      %v655 = vpop.f32.mrb[0].mxu0
      %v656 = vadd.f32 %v492, %v655
      %v657 = vpop.f32.mrb[0].mxu0
      %v658 = vpop.f32.mrb[0].mxu0
      %v659 = vadd.f32 %v495, %v658
      %v660 = vpop.f32.mrb[0].mxu0
      %661 = vmatprep.mubr.bf16.mxu0 0
      %662 = vmatmul.mubr.bf16.gmra.mrb[0].mxu0 %v573
      %v663 = vpop.f32.mrb[0].mxu0
      %v664 = vadd.f32 %v500, %v663
      %v665 = vpop.f32.mrb[0].mxu0
      %v666 = vpop.f32.mrb[0].mxu0
      %v667 = vadd.f32 %v503, %v666
      %v668 = vpop.f32.mrb[0].mxu0
      %669 = vmatprep.mubr.bf16.mxu0 0
      %670 = vmatmul.mubr.bf16.gmra.mrb[0].mxu0 %v576
      %v671 = vpop.f32.mrb[0].mxu0
      %v672 = vadd.f32 %v508, %v671
      %v673 = vpop.f32.mrb[0].mxu0
      %v674 = vpop.f32.mrb[0].mxu0
      %v675 = vadd.f32 %v511, %v674
      %v676 = vpop.f32.mrb[0].mxu0
      %677 = vdwg.mxu0
      %s678 = scalar_lea.vmem %s2, 4
      %v679 = vld [vmem:[%s678] sm:$0x3]
      %v681 = vsel %vm413, %v679, 0
      %683 = vmatprep.subr.bf16.mxu0 0
      %684 = vmatpush1.bf16.msra.mxu0 %v681
      %685 = vmatprep.subr.bf16.mxu0 0
      %686 = vmatpush1.bf16.msra.mxu0 0
      %687 = vmatprep.subr.bf16.mxu0 0
      %688 = vmatpush1.bf16.msra.mxu0 0
      %689 = vmatprep.subr.bf16.mxu0 0
      %690 = vmatpush1.bf16.msra.mxu0 0
      %691 = vmatprep.subr.bf16.mxu0 0
      %692 = vmatpush1.bf16.msra.mxu0 0
      %693 = vmatprep.subr.bf16.mxu0 0
      %694 = vmatpush1.bf16.msra.mxu0 0
      %695 = vmatprep.subr.bf16.mxu0 0
      %696 = vmatpush1.bf16.msra.mxu0 0
      %697 = vmatprep.subr.bf16.mxu0 0
      %698 = vmatpush1.bf16.msra.mxu0 0
      %699 = vmatprep.subr.bf16.mxu0 0
      %700 = vmatpush1.bf16.msra.mxu0 0
      %701 = vmatprep.subr.bf16.mxu0 0
      %702 = vmatpush1.bf16.msra.mxu0 0
      %703 = vmatprep.subr.bf16.mxu0 0
      %704 = vmatpush1.bf16.msra.mxu0 0
      %705 = vmatprep.subr.bf16.mxu0 0
      %706 = vmatpush1.bf16.msra.mxu0 0
      %707 = vmatprep.subr.bf16.mxu0 0
      %708 = vmatpush1.bf16.msra.mxu0 0
      %709 = vmatprep.subr.bf16.mxu0 0
      %710 = vmatpush1.bf16.msra.mxu0 0
      %711 = vmatprep.subr.bf16.mxu0 0
      %712 = vmatpush1.bf16.msra.mxu0 0
      %713 = vmatprep.subr.bf16.mxu0 0
      %714 = vmatpush1.bf16.msra.mxu0 0
      %715 = vmatprep.mubr.bf16.mxu0 0
      %716 = vmatmul.mubr.bf16.gmra.mrb[0].mxu0 %v555
      %v717 = vpop.f32.mrb[0].mxu0
      %v718 = vadd.f32 0.0, %v717
      %v719 = vpop.f32.mrb[0].mxu0
      %v720 = vpop.f32.mrb[0].mxu0
      %v721 = vadd.f32 0.0, %v720
      %v722 = vpop.f32.mrb[0].mxu0
      %723 = vmatprep.mubr.bf16.mxu0 0
      %724 = vmatmul.mubr.bf16.gmra.mrb[0].mxu0 %v558
      %v725 = vpop.f32.mrb[0].mxu0
      %v726 = vadd.f32 0.0, %v725
      %v727 = vpop.f32.mrb[0].mxu0
      %v728 = vpop.f32.mrb[0].mxu0
      %v729 = vadd.f32 0.0, %v728
      %v730 = vpop.f32.mrb[0].mxu0
      %731 = vmatprep.mubr.bf16.mxu0 0
      %732 = vmatmul.mubr.bf16.gmra.mrb[0].mxu0 %v561
      %v733 = vpop.f32.mrb[0].mxu0
      %v734 = vadd.f32 0.0, %v733
      %v735 = vpop.f32.mrb[0].mxu0
      %v736 = vpop.f32.mrb[0].mxu0
      %v737 = vadd.f32 0.0, %v736
      %v738 = vpop.f32.mrb[0].mxu0
      %739 = vmatprep.mubr.bf16.mxu0 0
      %740 = vmatmul.mubr.bf16.gmra.mrb[0].mxu0 %v564
      %v741 = vpop.f32.mrb[0].mxu0
      %v742 = vadd.f32 0.0, %v741
      %v743 = vpop.f32.mrb[0].mxu0
      %v744 = vpop.f32.mrb[0].mxu0
      %v745 = vadd.f32 0.0, %v744
      %v746 = vpop.f32.mrb[0].mxu0
      %747 = vmatprep.mubr.bf16.mxu0 0
      %748 = vmatmul.mubr.bf16.gmra.mrb[0].mxu0 %v567
      %v749 = vpop.f32.mrb[0].mxu0
      %v750 = vadd.f32 0.0, %v749
      %v751 = vpop.f32.mrb[0].mxu0
      %v752 = vpop.f32.mrb[0].mxu0
      %v753 = vadd.f32 0.0, %v752
      %v754 = vpop.f32.mrb[0].mxu0
      %755 = vmatprep.mubr.bf16.mxu0 0
      %756 = vmatmul.mubr.bf16.gmra.mrb[0].mxu0 %v570
      %v757 = vpop.f32.mrb[0].mxu0
      %v758 = vadd.f32 0.0, %v757
      %v759 = vpop.f32.mrb[0].mxu0
      %v760 = vpop.f32.mrb[0].mxu0
      %v761 = vadd.f32 0.0, %v760
      %v762 = vpop.f32.mrb[0].mxu0
      %763 = vmatprep.mubr.bf16.mxu0 0
      %764 = vmatmul.mubr.bf16.gmra.mrb[0].mxu0 %v573
      %v765 = vpop.f32.mrb[0].mxu0
      %v766 = vadd.f32 0.0, %v765
      %v767 = vpop.f32.mrb[0].mxu0
      %v768 = vpop.f32.mrb[0].mxu0
      %v769 = vadd.f32 0.0, %v768
      %v770 = vpop.f32.mrb[0].mxu0
      %771 = vmatprep.mubr.bf16.mxu0 0
      %772 = vmatmul.mubr.bf16.gmra.mrb[0].mxu0 %v576
      %v773 = vpop.f32.mrb[0].mxu0
      %v774 = vadd.f32 0.0, %v773
      %v775 = vpop.f32.mrb[0].mxu0
      %v776 = vpop.f32.mrb[0].mxu0
      %v777 = vadd.f32 0.0, %v776
      %v778 = vpop.f32.mrb[0].mxu0
      %779 = vdwg.mxu0
      %vm796 = vcmask 1046528
      %v797 = vrot.slane %v718, 1
      %v798 = vrot.slane %v721, 1
      %v799 = vsel %vm796, %v797, %v798
      %v800 = vrot.slane %v726, 1
      %v801 = vsel %vm796, %v798, %v800
      %v802 = vrot.slane %v729, 1
      %v803 = vsel %vm796, %v800, %v802
      %v804 = vrot.slane %v734, 1
      %v805 = vsel %vm796, %v802, %v804
      %v806 = vrot.slane %v737, 1
      %v807 = vsel %vm796, %v804, %v806
      %v808 = vrot.slane %v742, 1
      %v809 = vsel %vm796, %v806, %v808
      %v810 = vrot.slane %v745, 1
      %v811 = vsel %vm796, %v808, %v810
      %v812 = vrot.slane %v750, 1
      %v813 = vsel %vm796, %v810, %v812
      %v814 = vrot.slane %v753, 1
      %v815 = vsel %vm796, %v812, %v814
      %v816 = vrot.slane %v758, 1
      %v817 = vsel %vm796, %v814, %v816
      %v818 = vrot.slane %v761, 1
      %v819 = vsel %vm796, %v816, %v818
      %v820 = vrot.slane %v766, 1
      %v821 = vsel %vm796, %v818, %v820
      %v822 = vrot.slane %v769, 1
      %v823 = vsel %vm796, %v820, %v822
      %v824 = vrot.slane %v774, 1
      %v825 = vsel %vm796, %v822, %v824
      %v826 = vrot.slane %v777, 1
      %v827 = vsel %vm796, %v824, %v826
      %v845 = vsel %vm796, %v826, %v797
      %v846 = vadd.f32 %v616, %v799
      %v847 = vadd.f32 %v619, %v801
      %v848 = vadd.f32 %v624, %v803
      %v849 = vadd.f32 %v627, %v805
      %v850 = vadd.f32 %v632, %v807
      %v851 = vadd.f32 %v635, %v809
      %v852 = vadd.f32 %v640, %v811
      %v853 = vadd.f32 %v643, %v813
      %v854 = vadd.f32 %v648, %v815
      %v855 = vadd.f32 %v651, %v817
      %v856 = vadd.f32 %v656, %v819
      %v857 = vadd.f32 %v659, %v821
      %v858 = vadd.f32 %v664, %v823
      %v859 = vadd.f32 %v667, %v825
      %v860 = vadd.f32 %v672, %v827
      %v861 = vadd.f32 %v675, %v845
      %s862 = scalar_lea.vmem %s304, 144
      %v863 = vld [vmem:[%s862] sm:$0xf]
      %v864 = vld [vmem:[%s862 + $0x4] sm:$0xf]
      %v865 = vld [vmem:[%s862 + $0x8] sm:$0xf]
      %v866 = vld [vmem:[%s862 + $0xc] sm:$0xf]
      %v867 = vld [vmem:[%s862 + $0x10] sm:$0xf]
      %v868 = vld [vmem:[%s862 + $0x14] sm:$0xf]
      %v869 = vld [vmem:[%s862 + $0x18] sm:$0xf]
      %v870 = vld [vmem:[%s862 + $0x1c] sm:$0xf]
      %v871 = vld [vmem:[%s862 + $0x20] sm:$0xf]
      %v872 = vld [vmem:[%s862 + $0x24] sm:$0xf]
      %v873 = vld [vmem:[%s862 + $0x28] sm:$0xf]
      %v874 = vld [vmem:[%s862 + $0x2c] sm:$0xf]
      %v875 = vld [vmem:[%s862 + $0x30] sm:$0xf]
      %v876 = vld [vmem:[%s862 + $0x34] sm:$0xf]
      %v877 = vld [vmem:[%s862 + $0x38] sm:$0xf]
      %v878 = vld [vmem:[%s862 + $0x3c] sm:$0xf]
      %s879 = scalar_lea.vmem %s2, 6
      %v880 = vld [vmem:[%s879] sm:$0x3]
      %v897 = vunpack.c.l.b16 %v863
      %v898 = vunpack.c.l.b16 %v864
      %v899 = vunpack.c.l.b16 %v865
      %v900 = vunpack.c.l.b16 %v866
      %v901 = vunpack.c.l.b16 %v867
      %v902 = vunpack.c.l.b16 %v868
      %v903 = vunpack.c.l.b16 %v869
      %v904 = vunpack.c.l.b16 %v870
      %v905 = vunpack.c.l.b16 %v871
      %v906 = vunpack.c.l.b16 %v872
      %v907 = vunpack.c.l.b16 %v873
      %v908 = vunpack.c.l.b16 %v874
      %v909 = vunpack.c.l.b16 %v875
      %v910 = vunpack.c.l.b16 %v876
      %v911 = vunpack.c.l.b16 %v877
      %v912 = vunpack.c.l.b16 %v878
      %v913 = vpack.c.b16 %v898, %v897
      %v914 = vpack.c.b16 %v900, %v899
      %v915 = vpack.c.b16 %v902, %v901
      %v916 = vpack.c.b16 %v904, %v903
      %v917 = vpack.c.b16 %v906, %v905
      %v918 = vpack.c.b16 %v908, %v907
      %v919 = vpack.c.b16 %v910, %v909
      %v920 = vpack.c.b16 %v912, %v911
      %v922 = vsel %vm388, %v913, 0
      %v925 = vsel %vm388, %v914, 0
      %v928 = vsel %vm388, %v915, 0
      %v931 = vsel %vm388, %v916, 0
      %v934 = vsel %vm388, %v917, 0
      %v937 = vsel %vm388, %v918, 0
      %v940 = vsel %vm388, %v919, 0
      %v943 = vsel %vm388, %v920, 0
      %v946 = vsel %vm413, %v880, 0
      %948 = vmatprep.subr.bf16.mxu0 0
      %949 = vmatpush1.bf16.msra.mxu0 %v946
      %950 = vmatprep.subr.bf16.mxu0 0
      %951 = vmatpush1.bf16.msra.mxu0 0
      %952 = vmatprep.subr.bf16.mxu0 0
      %953 = vmatpush1.bf16.msra.mxu0 0
      %954 = vmatprep.subr.bf16.mxu0 0
      %955 = vmatpush1.bf16.msra.mxu0 0
      %956 = vmatprep.subr.bf16.mxu0 0
      %957 = vmatpush1.bf16.msra.mxu0 0
      %958 = vmatprep.subr.bf16.mxu0 0
      %959 = vmatpush1.bf16.msra.mxu0 0
      %960 = vmatprep.subr.bf16.mxu0 0
      %961 = vmatpush1.bf16.msra.mxu0 0
      %962 = vmatprep.subr.bf16.mxu0 0
      %963 = vmatpush1.bf16.msra.mxu0 0
      %964 = vmatprep.subr.bf16.mxu0 0
      %965 = vmatpush1.bf16.msra.mxu0 0
      %966 = vmatprep.subr.bf16.mxu0 0
      %967 = vmatpush1.bf16.msra.mxu0 0
      %968 = vmatprep.subr.bf16.mxu0 0
      %969 = vmatpush1.bf16.msra.mxu0 0
      %970 = vmatprep.subr.bf16.mxu0 0
      %971 = vmatpush1.bf16.msra.mxu0 0
      %972 = vmatprep.subr.bf16.mxu0 0
      %973 = vmatpush1.bf16.msra.mxu0 0
      %974 = vmatprep.subr.bf16.mxu0 0
      %975 = vmatpush1.bf16.msra.mxu0 0
      %976 = vmatprep.subr.bf16.mxu0 0
      %977 = vmatpush1.bf16.msra.mxu0 0
      %978 = vmatprep.subr.bf16.mxu0 0
      %979 = vmatpush1.bf16.msra.mxu0 0
      %980 = vmatprep.mubr.bf16.mxu0 0
      %981 = vmatmul.mubr.bf16.gmra.mrb[0].mxu0 %v922
      %v982 = vpop.f32.mrb[0].mxu0
      %v983 = vadd.f32 0.0, %v982
      %v984 = vpop.f32.mrb[0].mxu0
      %v985 = vpop.f32.mrb[0].mxu0
      %v986 = vadd.f32 0.0, %v985
      %v987 = vpop.f32.mrb[0].mxu0
      %988 = vmatprep.mubr.bf16.mxu0 0
      %989 = vmatmul.mubr.bf16.gmra.mrb[0].mxu0 %v925
      %v990 = vpop.f32.mrb[0].mxu0
      %v991 = vadd.f32 0.0, %v990
      %v992 = vpop.f32.mrb[0].mxu0
      %v993 = vpop.f32.mrb[0].mxu0
      %v994 = vadd.f32 0.0, %v993
      %v995 = vpop.f32.mrb[0].mxu0
      %996 = vmatprep.mubr.bf16.mxu0 0
      %997 = vmatmul.mubr.bf16.gmra.mrb[0].mxu0 %v928
      %v998 = vpop.f32.mrb[0].mxu0
      %v999 = vadd.f32 0.0, %v998
      %v1000 = vpop.f32.mrb[0].mxu0
      %v1001 = vpop.f32.mrb[0].mxu0
      %v1002 = vadd.f32 0.0, %v1001
      %v1003 = vpop.f32.mrb[0].mxu0
      %1004 = vmatprep.mubr.bf16.mxu0 0
      %1005 = vmatmul.mubr.bf16.gmra.mrb[0].mxu0 %v931
      %v1006 = vpop.f32.mrb[0].mxu0
      %v1007 = vadd.f32 0.0, %v1006
      %v1008 = vpop.f32.mrb[0].mxu0
      %v1009 = vpop.f32.mrb[0].mxu0
      %v1010 = vadd.f32 0.0, %v1009
      %v1011 = vpop.f32.mrb[0].mxu0
      %1012 = vmatprep.mubr.bf16.mxu0 0
      %1013 = vmatmul.mubr.bf16.gmra.mrb[0].mxu0 %v934
      %v1014 = vpop.f32.mrb[0].mxu0
      %v1015 = vadd.f32 0.0, %v1014
      %v1016 = vpop.f32.mrb[0].mxu0
      %v1017 = vpop.f32.mrb[0].mxu0
      %v1018 = vadd.f32 0.0, %v1017
      %v1019 = vpop.f32.mrb[0].mxu0
      %1020 = vmatprep.mubr.bf16.mxu0 0
      %1021 = vmatmul.mubr.bf16.gmra.mrb[0].mxu0 %v937
      %v1022 = vpop.f32.mrb[0].mxu0
      %v1023 = vadd.f32 0.0, %v1022
      %v1024 = vpop.f32.mrb[0].mxu0
      %v1025 = vpop.f32.mrb[0].mxu0
      %v1026 = vadd.f32 0.0, %v1025
      %v1027 = vpop.f32.mrb[0].mxu0
      %1028 = vmatprep.mubr.bf16.mxu0 0
      %1029 = vmatmul.mubr.bf16.gmra.mrb[0].mxu0 %v940
      %v1030 = vpop.f32.mrb[0].mxu0
      %v1031 = vadd.f32 0.0, %v1030
      %v1032 = vpop.f32.mrb[0].mxu0
      %v1033 = vpop.f32.mrb[0].mxu0
      %v1034 = vadd.f32 0.0, %v1033
      %v1035 = vpop.f32.mrb[0].mxu0
      %1036 = vmatprep.mubr.bf16.mxu0 0
      %1037 = vmatmul.mubr.bf16.gmra.mrb[0].mxu0 %v943
      %v1038 = vpop.f32.mrb[0].mxu0
      %v1039 = vadd.f32 0.0, %v1038
      %v1040 = vpop.f32.mrb[0].mxu0
      %v1041 = vpop.f32.mrb[0].mxu0
      %v1042 = vadd.f32 0.0, %v1041
      %v1043 = vpop.f32.mrb[0].mxu0
      %1044 = vdwg.mxu0
      %v1045 = vadd.f32 %v846, %v983
      %v1046 = vadd.f32 %v847, %v986
      %v1047 = vadd.f32 %v848, %v991
      %v1048 = vadd.f32 %v849, %v994
      %v1049 = vadd.f32 %v850, %v999
      %v1050 = vadd.f32 %v851, %v1002
      %v1051 = vadd.f32 %v852, %v1007
      %v1052 = vadd.f32 %v853, %v1010
      %v1053 = vadd.f32 %v854, %v1015
      %v1054 = vadd.f32 %v855, %v1018
      %v1055 = vadd.f32 %v856, %v1023
      %v1056 = vadd.f32 %v857, %v1026
      %v1057 = vadd.f32 %v858, %v1031
      %v1058 = vadd.f32 %v859, %v1034
      %v1059 = vadd.f32 %v860, %v1039
      %v1060 = vadd.f32 %v861, %v1042
      %s1061 = scalar_lea.vmem %s304, 216
      %v1062 = vld [vmem:[%s1061] sm:$0xf]
      %v1063 = vld [vmem:[%s1061 + $0x4] sm:$0xf]
      %v1064 = vld [vmem:[%s1061 + $0x8] sm:$0xf]
      %v1065 = vld [vmem:[%s1061 + $0xc] sm:$0xf]
      %v1066 = vld [vmem:[%s1061 + $0x10] sm:$0xf]
      %v1067 = vld [vmem:[%s1061 + $0x14] sm:$0xf]
      %v1068 = vld [vmem:[%s1061 + $0x18] sm:$0xf]
      %v1069 = vld [vmem:[%s1061 + $0x1c] sm:$0xf]
      %v1070 = vld [vmem:[%s1061 + $0x20] sm:$0xf]
      %v1071 = vld [vmem:[%s1061 + $0x24] sm:$0xf]
      %v1072 = vld [vmem:[%s1061 + $0x28] sm:$0xf]
      %v1073 = vld [vmem:[%s1061 + $0x2c] sm:$0xf]
      %v1074 = vld [vmem:[%s1061 + $0x30] sm:$0xf]
      %v1075 = vld [vmem:[%s1061 + $0x34] sm:$0xf]
      %v1076 = vld [vmem:[%s1061 + $0x38] sm:$0xf]
      %v1077 = vld [vmem:[%s1061 + $0x3c] sm:$0xf]
      %s1078 = scalar_lea.vmem %s2, 8
      %v1079 = vld [vmem:[%s1078] sm:$0x3]
      %v1096 = vunpack.c.l.b16 %v1062
      %v1097 = vunpack.c.l.b16 %v1063
      %v1098 = vunpack.c.l.b16 %v1064
      %v1099 = vunpack.c.l.b16 %v1065
      %v1100 = vunpack.c.l.b16 %v1066
      %v1101 = vunpack.c.l.b16 %v1067
      %v1102 = vunpack.c.l.b16 %v1068
      %v1103 = vunpack.c.l.b16 %v1069
      %v1104 = vunpack.c.l.b16 %v1070
      %v1105 = vunpack.c.l.b16 %v1071
      %v1106 = vunpack.c.l.b16 %v1072
      %v1107 = vunpack.c.l.b16 %v1073
      %v1108 = vunpack.c.l.b16 %v1074
      %v1109 = vunpack.c.l.b16 %v1075
      %v1110 = vunpack.c.l.b16 %v1076
      %v1111 = vunpack.c.l.b16 %v1077
      %v1112 = vpack.c.b16 %v1097, %v1096
      %v1113 = vpack.c.b16 %v1099, %v1098
      %v1114 = vpack.c.b16 %v1101, %v1100
      %v1115 = vpack.c.b16 %v1103, %v1102
      %v1116 = vpack.c.b16 %v1105, %v1104
      %v1117 = vpack.c.b16 %v1107, %v1106
      %v1118 = vpack.c.b16 %v1109, %v1108
      %v1119 = vpack.c.b16 %v1111, %v1110
      %v1121 = vsel %vm388, %v1112, 0
      %v1124 = vsel %vm388, %v1113, 0
      %v1127 = vsel %vm388, %v1114, 0
      %v1130 = vsel %vm388, %v1115, 0
      %v1133 = vsel %vm388, %v1116, 0
      %v1136 = vsel %vm388, %v1117, 0
      %v1139 = vsel %vm388, %v1118, 0
      %v1142 = vsel %vm388, %v1119, 0
      %v1145 = vsel %vm413, %v1079, 0
      %1147 = vmatprep.subr.bf16.mxu0 0
      %1148 = vmatpush1.bf16.msra.mxu0 %v1145
      %1149 = vmatprep.subr.bf16.mxu0 0
      %1150 = vmatpush1.bf16.msra.mxu0 0
      %1151 = vmatprep.subr.bf16.mxu0 0
      %1152 = vmatpush1.bf16.msra.mxu0 0
      %1153 = vmatprep.subr.bf16.mxu0 0
      %1154 = vmatpush1.bf16.msra.mxu0 0
      %1155 = vmatprep.subr.bf16.mxu0 0
      %1156 = vmatpush1.bf16.msra.mxu0 0
      %1157 = vmatprep.subr.bf16.mxu0 0
      %1158 = vmatpush1.bf16.msra.mxu0 0
      %1159 = vmatprep.subr.bf16.mxu0 0
      %1160 = vmatpush1.bf16.msra.mxu0 0
      %1161 = vmatprep.subr.bf16.mxu0 0
      %1162 = vmatpush1.bf16.msra.mxu0 0
      %1163 = vmatprep.subr.bf16.mxu0 0
      %1164 = vmatpush1.bf16.msra.mxu0 0
      %1165 = vmatprep.subr.bf16.mxu0 0
      %1166 = vmatpush1.bf16.msra.mxu0 0
      %1167 = vmatprep.subr.bf16.mxu0 0
      %1168 = vmatpush1.bf16.msra.mxu0 0
      %1169 = vmatprep.subr.bf16.mxu0 0
      %1170 = vmatpush1.bf16.msra.mxu0 0
      %1171 = vmatprep.subr.bf16.mxu0 0
      %1172 = vmatpush1.bf16.msra.mxu0 0
      %1173 = vmatprep.subr.bf16.mxu0 0
      %1174 = vmatpush1.bf16.msra.mxu0 0
      %1175 = vmatprep.subr.bf16.mxu0 0
      %1176 = vmatpush1.bf16.msra.mxu0 0
      %1177 = vmatprep.subr.bf16.mxu0 0
      %1178 = vmatpush1.bf16.msra.mxu0 0
      %1179 = vmatprep.mubr.bf16.mxu0 0
      %1180 = vmatmul.mubr.bf16.gmra.mrb[0].mxu0 %v1121
      %v1181 = vpop.f32.mrb[0].mxu0
      %v1182 = vadd.f32 0.0, %v1181
      %v1183 = vpop.f32.mrb[0].mxu0
      %v1184 = vpop.f32.mrb[0].mxu0
      %v1185 = vadd.f32 0.0, %v1184
      %v1186 = vpop.f32.mrb[0].mxu0
      %1187 = vmatprep.mubr.bf16.mxu0 0
      %1188 = vmatmul.mubr.bf16.gmra.mrb[0].mxu0 %v1124
      %v1189 = vpop.f32.mrb[0].mxu0
      %v1190 = vadd.f32 0.0, %v1189
      %v1191 = vpop.f32.mrb[0].mxu0
      %v1192 = vpop.f32.mrb[0].mxu0
      %v1193 = vadd.f32 0.0, %v1192
      %v1194 = vpop.f32.mrb[0].mxu0
      %1195 = vmatprep.mubr.bf16.mxu0 0
      %1196 = vmatmul.mubr.bf16.gmra.mrb[0].mxu0 %v1127
      %v1197 = vpop.f32.mrb[0].mxu0
      %v1198 = vadd.f32 0.0, %v1197
      %v1199 = vpop.f32.mrb[0].mxu0
      %v1200 = vpop.f32.mrb[0].mxu0
      %v1201 = vadd.f32 0.0, %v1200
      %v1202 = vpop.f32.mrb[0].mxu0
      %1203 = vmatprep.mubr.bf16.mxu0 0
      %1204 = vmatmul.mubr.bf16.gmra.mrb[0].mxu0 %v1130
      %v1205 = vpop.f32.mrb[0].mxu0
      %v1206 = vadd.f32 0.0, %v1205
      %v1207 = vpop.f32.mrb[0].mxu0
      %v1208 = vpop.f32.mrb[0].mxu0
      %v1209 = vadd.f32 0.0, %v1208
      %v1210 = vpop.f32.mrb[0].mxu0
      %1211 = vmatprep.mubr.bf16.mxu0 0
      %1212 = vmatmul.mubr.bf16.gmra.mrb[0].mxu0 %v1133
      %v1213 = vpop.f32.mrb[0].mxu0
      %v1214 = vadd.f32 0.0, %v1213
      %v1215 = vpop.f32.mrb[0].mxu0
      %v1216 = vpop.f32.mrb[0].mxu0
      %v1217 = vadd.f32 0.0, %v1216
      %v1218 = vpop.f32.mrb[0].mxu0
      %1219 = vmatprep.mubr.bf16.mxu0 0
      %1220 = vmatmul.mubr.bf16.gmra.mrb[0].mxu0 %v1136
      %v1221 = vpop.f32.mrb[0].mxu0
      %v1222 = vadd.f32 0.0, %v1221
      %v1223 = vpop.f32.mrb[0].mxu0
      %v1224 = vpop.f32.mrb[0].mxu0
      %v1225 = vadd.f32 0.0, %v1224
      %v1226 = vpop.f32.mrb[0].mxu0
      %1227 = vmatprep.mubr.bf16.mxu0 0
      %1228 = vmatmul.mubr.bf16.gmra.mrb[0].mxu0 %v1139
      %v1229 = vpop.f32.mrb[0].mxu0
      %v1230 = vadd.f32 0.0, %v1229
      %v1231 = vpop.f32.mrb[0].mxu0
      %v1232 = vpop.f32.mrb[0].mxu0
      %v1233 = vadd.f32 0.0, %v1232
      %v1234 = vpop.f32.mrb[0].mxu0
      %1235 = vmatprep.mubr.bf16.mxu0 0
      %1236 = vmatmul.mubr.bf16.gmra.mrb[0].mxu0 %v1142
      %v1237 = vpop.f32.mrb[0].mxu0
      %v1238 = vadd.f32 0.0, %v1237
      %v1239 = vpop.f32.mrb[0].mxu0
      %v1240 = vpop.f32.mrb[0].mxu0
      %v1241 = vadd.f32 0.0, %v1240
      %v1242 = vpop.f32.mrb[0].mxu0
      %1243 = vdwg.mxu0
      %v1244 = vadd.f32 %v1045, %v1182
      %v1245 = vadd.f32 %v1046, %v1185
      %v1246 = vadd.f32 %v1047, %v1190
      %v1247 = vadd.f32 %v1048, %v1193
      %v1248 = vadd.f32 %v1049, %v1198
      %v1249 = vadd.f32 %v1050, %v1201
      %v1250 = vadd.f32 %v1051, %v1206
      %v1251 = vadd.f32 %v1052, %v1209
      %v1252 = vadd.f32 %v1053, %v1214
      %v1253 = vadd.f32 %v1054, %v1217
      %v1254 = vadd.f32 %v1055, %v1222
      %v1255 = vadd.f32 %v1056, %v1225
      %v1256 = vadd.f32 %v1057, %v1230
      %v1257 = vadd.f32 %v1058, %v1233
      %v1258 = vadd.f32 %v1059, %v1238
      %v1259 = vadd.f32 %v1060, %v1241
      %s1260 = scalar_lea.vmem %s2, 10
      %v1261 = vld [vmem:[%s1260] sm:$0x3]
      %v1263 = vsel %vm413, %v1261, 0
      %1265 = vmatprep.subr.bf16.mxu0 0
      %1266 = vmatpush1.bf16.msra.mxu0 %v1263
      %1267 = vmatprep.subr.bf16.mxu0 0
      %1268 = vmatpush1.bf16.msra.mxu0 0
      %1269 = vmatprep.subr.bf16.mxu0 0
      %1270 = vmatpush1.bf16.msra.mxu0 0
      %1271 = vmatprep.subr.bf16.mxu0 0
      %1272 = vmatpush1.bf16.msra.mxu0 0
      %1273 = vmatprep.subr.bf16.mxu0 0
      %1274 = vmatpush1.bf16.msra.mxu0 0
      %1275 = vmatprep.subr.bf16.mxu0 0
      %1276 = vmatpush1.bf16.msra.mxu0 0
      %1277 = vmatprep.subr.bf16.mxu0 0
      %1278 = vmatpush1.bf16.msra.mxu0 0
      %1279 = vmatprep.subr.bf16.mxu0 0
      %1280 = vmatpush1.bf16.msra.mxu0 0
      %1281 = vmatprep.subr.bf16.mxu0 0
      %1282 = vmatpush1.bf16.msra.mxu0 0
      %1283 = vmatprep.subr.bf16.mxu0 0
      %1284 = vmatpush1.bf16.msra.mxu0 0
      %1285 = vmatprep.subr.bf16.mxu0 0
      %1286 = vmatpush1.bf16.msra.mxu0 0
      %1287 = vmatprep.subr.bf16.mxu0 0
      %1288 = vmatpush1.bf16.msra.mxu0 0
      %1289 = vmatprep.subr.bf16.mxu0 0
      %1290 = vmatpush1.bf16.msra.mxu0 0
      %1291 = vmatprep.subr.bf16.mxu0 0
      %1292 = vmatpush1.bf16.msra.mxu0 0
      %1293 = vmatprep.subr.bf16.mxu0 0
      %1294 = vmatpush1.bf16.msra.mxu0 0
      %1295 = vmatprep.subr.bf16.mxu0 0
      %1296 = vmatpush1.bf16.msra.mxu0 0
      %1297 = vmatprep.mubr.bf16.mxu0 0
      %1298 = vmatmul.mubr.bf16.gmra.mrb[0].mxu0 %v922
      %v1299 = vpop.f32.mrb[0].mxu0
      %v1300 = vadd.f32 0.0, %v1299
      %v1301 = vpop.f32.mrb[0].mxu0
      %v1302 = vpop.f32.mrb[0].mxu0
      %v1303 = vadd.f32 0.0, %v1302
      %v1304 = vpop.f32.mrb[0].mxu0
      %1305 = vmatprep.mubr.bf16.mxu0 0
      %1306 = vmatmul.mubr.bf16.gmra.mrb[0].mxu0 %v925
      %v1307 = vpop.f32.mrb[0].mxu0
      %v1308 = vadd.f32 0.0, %v1307
      %v1309 = vpop.f32.mrb[0].mxu0
      %v1310 = vpop.f32.mrb[0].mxu0
      %v1311 = vadd.f32 0.0, %v1310
      %v1312 = vpop.f32.mrb[0].mxu0
      %1313 = vmatprep.mubr.bf16.mxu0 0
      %1314 = vmatmul.mubr.bf16.gmra.mrb[0].mxu0 %v928
      %v1315 = vpop.f32.mrb[0].mxu0
      %v1316 = vadd.f32 0.0, %v1315
      %v1317 = vpop.f32.mrb[0].mxu0
      %v1318 = vpop.f32.mrb[0].mxu0
      %v1319 = vadd.f32 0.0, %v1318
      %v1320 = vpop.f32.mrb[0].mxu0
      %1321 = vmatprep.mubr.bf16.mxu0 0
      %1322 = vmatmul.mubr.bf16.gmra.mrb[0].mxu0 %v931
      %v1323 = vpop.f32.mrb[0].mxu0
      %v1324 = vadd.f32 0.0, %v1323
      %v1325 = vpop.f32.mrb[0].mxu0
      %v1326 = vpop.f32.mrb[0].mxu0
      %v1327 = vadd.f32 0.0, %v1326
      %v1328 = vpop.f32.mrb[0].mxu0
      %1329 = vmatprep.mubr.bf16.mxu0 0
      %1330 = vmatmul.mubr.bf16.gmra.mrb[0].mxu0 %v934
      %v1331 = vpop.f32.mrb[0].mxu0
      %v1332 = vadd.f32 0.0, %v1331
      %v1333 = vpop.f32.mrb[0].mxu0
      %v1334 = vpop.f32.mrb[0].mxu0
      %v1335 = vadd.f32 0.0, %v1334
      %v1336 = vpop.f32.mrb[0].mxu0
      %1337 = vmatprep.mubr.bf16.mxu0 0
      %1338 = vmatmul.mubr.bf16.gmra.mrb[0].mxu0 %v937
      %v1339 = vpop.f32.mrb[0].mxu0
      %v1340 = vadd.f32 0.0, %v1339
      %v1341 = vpop.f32.mrb[0].mxu0
      %v1342 = vpop.f32.mrb[0].mxu0
      %v1343 = vadd.f32 0.0, %v1342
      %v1344 = vpop.f32.mrb[0].mxu0
      %1345 = vmatprep.mubr.bf16.mxu0 0
      %1346 = vmatmul.mubr.bf16.gmra.mrb[0].mxu0 %v940
      %v1347 = vpop.f32.mrb[0].mxu0
      %v1348 = vadd.f32 0.0, %v1347
      %v1349 = vpop.f32.mrb[0].mxu0
      %v1350 = vpop.f32.mrb[0].mxu0
      %v1351 = vadd.f32 0.0, %v1350
      %v1352 = vpop.f32.mrb[0].mxu0
      %1353 = vmatprep.mubr.bf16.mxu0 0
      %1354 = vmatmul.mubr.bf16.gmra.mrb[0].mxu0 %v943
      %v1355 = vpop.f32.mrb[0].mxu0
      %v1356 = vadd.f32 0.0, %v1355
      %v1357 = vpop.f32.mrb[0].mxu0
      %v1358 = vpop.f32.mrb[0].mxu0
      %v1359 = vadd.f32 0.0, %v1358
      %v1360 = vpop.f32.mrb[0].mxu0
      %1361 = vdwg.mxu0
      %v1378 = vrot.slane %v1300, 1
      %v1379 = vrot.slane %v1303, 1
      %v1380 = vsel %vm796, %v1378, %v1379
      %v1381 = vrot.slane %v1308, 1
      %v1382 = vsel %vm796, %v1379, %v1381
      %v1383 = vrot.slane %v1311, 1
      %v1384 = vsel %vm796, %v1381, %v1383
      %v1385 = vrot.slane %v1316, 1
      %v1386 = vsel %vm796, %v1383, %v1385
      %v1387 = vrot.slane %v1319, 1
      %v1388 = vsel %vm796, %v1385, %v1387
      %v1389 = vrot.slane %v1324, 1
      %v1390 = vsel %vm796, %v1387, %v1389
      %v1391 = vrot.slane %v1327, 1
      %v1392 = vsel %vm796, %v1389, %v1391
      %v1393 = vrot.slane %v1332, 1
      %v1394 = vsel %vm796, %v1391, %v1393
      %v1395 = vrot.slane %v1335, 1
      %v1396 = vsel %vm796, %v1393, %v1395
      %v1397 = vrot.slane %v1340, 1
      %v1398 = vsel %vm796, %v1395, %v1397
      %v1399 = vrot.slane %v1343, 1
      %v1400 = vsel %vm796, %v1397, %v1399
      %v1401 = vrot.slane %v1348, 1
      %v1402 = vsel %vm796, %v1399, %v1401
      %v1403 = vrot.slane %v1351, 1
      %v1404 = vsel %vm796, %v1401, %v1403
      %v1405 = vrot.slane %v1356, 1
      %v1406 = vsel %vm796, %v1403, %v1405
      %v1407 = vrot.slane %v1359, 1
      %v1408 = vsel %vm796, %v1405, %v1407
      %v1426 = vsel %vm796, %v1407, %v1378
      %v1427 = vadd.f32 %v1244, %v1380
      %v1428 = vadd.f32 %v1245, %v1382
      %v1429 = vadd.f32 %v1246, %v1384
      %v1430 = vadd.f32 %v1247, %v1386
      %v1431 = vadd.f32 %v1248, %v1388
      %v1432 = vadd.f32 %v1249, %v1390
      %v1433 = vadd.f32 %v1250, %v1392
      %v1434 = vadd.f32 %v1251, %v1394
      %v1435 = vadd.f32 %v1252, %v1396
      %v1436 = vadd.f32 %v1253, %v1398
      %v1437 = vadd.f32 %v1254, %v1400
      %v1438 = vadd.f32 %v1255, %v1402
      %v1439 = vadd.f32 %v1256, %v1404
      %v1440 = vadd.f32 %v1257, %v1406
      %v1441 = vadd.f32 %v1258, %v1408
      %v1442 = vadd.f32 %v1259, %v1426
      %v1443 = vld [vmem:[%s304 + $0x8] sm:$0xf]
      %v1444 = vld [vmem:[%s304 + $0xc] sm:$0xf]
      %v1445 = vld [vmem:[%s304 + $0x10] sm:$0xf]
      %v1446 = vld [vmem:[%s304 + $0x14] sm:$0xf]
      %v1447 = vld [vmem:[%s304 + $0x18] sm:$0xf]
      %v1448 = vld [vmem:[%s304 + $0x1c] sm:$0xf]
      %v1449 = vld [vmem:[%s304 + $0x20] sm:$0xf]
      %v1450 = vld [vmem:[%s304 + $0x24] sm:$0xf]
      %v1451 = vld [vmem:[%s304 + $0x28] sm:$0xf]
      %v1452 = vld [vmem:[%s304 + $0x2c] sm:$0xf]
      %v1453 = vld [vmem:[%s304 + $0x30] sm:$0xf]
      %v1454 = vld [vmem:[%s304 + $0x34] sm:$0xf]
      %v1455 = vld [vmem:[%s304 + $0x38] sm:$0xf]
      %v1456 = vld [vmem:[%s304 + $0x3c] sm:$0xf]
      %v1457 = vld [vmem:[%s304 + $0x40] sm:$0xf]
      %v1458 = vld [vmem:[%s304 + $0x44] sm:$0xf]
      %s1459 = scalar_lea.vmem %s2, 12
      %v1460 = vld [vmem:[%s1459] sm:$0x3]
      %v1477 = vunpack.c.l.b16 %v1443
      %v1478 = vunpack.c.l.b16 %v1444
      %v1479 = vunpack.c.l.b16 %v1445
      %v1480 = vunpack.c.l.b16 %v1446
      %v1481 = vunpack.c.l.b16 %v1447
      %v1482 = vunpack.c.l.b16 %v1448
      %v1483 = vunpack.c.l.b16 %v1449
      %v1484 = vunpack.c.l.b16 %v1450
      %v1485 = vunpack.c.l.b16 %v1451
      %v1486 = vunpack.c.l.b16 %v1452
      %v1487 = vunpack.c.l.b16 %v1453
      %v1488 = vunpack.c.l.b16 %v1454
      %v1489 = vunpack.c.l.b16 %v1455
      %v1490 = vunpack.c.l.b16 %v1456
      %v1491 = vunpack.c.l.b16 %v1457
      %v1492 = vunpack.c.l.b16 %v1458
      %v1493 = vpack.c.b16 %v1478, %v1477
      %v1494 = vpack.c.b16 %v1480, %v1479
      %v1495 = vpack.c.b16 %v1482, %v1481
      %v1496 = vpack.c.b16 %v1484, %v1483
      %v1497 = vpack.c.b16 %v1486, %v1485
      %v1498 = vpack.c.b16 %v1488, %v1487
      %v1499 = vpack.c.b16 %v1490, %v1489
      %v1500 = vpack.c.b16 %v1492, %v1491
      %v1502 = vsel %vm388, %v1493, 0
      %v1505 = vsel %vm388, %v1494, 0
      %v1508 = vsel %vm388, %v1495, 0
      %v1511 = vsel %vm388, %v1496, 0
      %v1514 = vsel %vm388, %v1497, 0
      %v1517 = vsel %vm388, %v1498, 0
      %v1520 = vsel %vm388, %v1499, 0
      %v1523 = vsel %vm388, %v1500, 0
      %v1526 = vsel %vm413, %v1460, 0
      %1528 = vmatprep.subr.bf16.mxu0 0
      %1529 = vmatpush1.bf16.msra.mxu0 %v1526
      %1530 = vmatprep.subr.bf16.mxu0 0
      %1531 = vmatpush1.bf16.msra.mxu0 0
      %1532 = vmatprep.subr.bf16.mxu0 0
      %1533 = vmatpush1.bf16.msra.mxu0 0
      %1534 = vmatprep.subr.bf16.mxu0 0
      %1535 = vmatpush1.bf16.msra.mxu0 0
      %1536 = vmatprep.subr.bf16.mxu0 0
      %1537 = vmatpush1.bf16.msra.mxu0 0
      %1538 = vmatprep.subr.bf16.mxu0 0
      %1539 = vmatpush1.bf16.msra.mxu0 0
      %1540 = vmatprep.subr.bf16.mxu0 0
      %1541 = vmatpush1.bf16.msra.mxu0 0
      %1542 = vmatprep.subr.bf16.mxu0 0
      %1543 = vmatpush1.bf16.msra.mxu0 0
      %1544 = vmatprep.subr.bf16.mxu0 0
      %1545 = vmatpush1.bf16.msra.mxu0 0
      %1546 = vmatprep.subr.bf16.mxu0 0
      %1547 = vmatpush1.bf16.msra.mxu0 0
      %1548 = vmatprep.subr.bf16.mxu0 0
      %1549 = vmatpush1.bf16.msra.mxu0 0
      %1550 = vmatprep.subr.bf16.mxu0 0
      %1551 = vmatpush1.bf16.msra.mxu0 0
      %1552 = vmatprep.subr.bf16.mxu0 0
      %1553 = vmatpush1.bf16.msra.mxu0 0
      %1554 = vmatprep.subr.bf16.mxu0 0
      %1555 = vmatpush1.bf16.msra.mxu0 0
      %1556 = vmatprep.subr.bf16.mxu0 0
      %1557 = vmatpush1.bf16.msra.mxu0 0
      %1558 = vmatprep.subr.bf16.mxu0 0
      %1559 = vmatpush1.bf16.msra.mxu0 0
      %1560 = vmatprep.mubr.bf16.mxu0 0
      %1561 = vmatmul.mubr.bf16.gmra.mrb[0].mxu0 %v1502
      %v1562 = vpop.f32.mrb[0].mxu0
      %v1563 = vadd.f32 0.0, %v1562
      %v1564 = vpop.f32.mrb[0].mxu0
      %v1565 = vpop.f32.mrb[0].mxu0
      %v1566 = vadd.f32 0.0, %v1565
      %v1567 = vpop.f32.mrb[0].mxu0
      %1568 = vmatprep.mubr.bf16.mxu0 0
      %1569 = vmatmul.mubr.bf16.gmra.mrb[0].mxu0 %v1505
      %v1570 = vpop.f32.mrb[0].mxu0
      %v1571 = vadd.f32 0.0, %v1570
      %v1572 = vpop.f32.mrb[0].mxu0
      %v1573 = vpop.f32.mrb[0].mxu0
      %v1574 = vadd.f32 0.0, %v1573
      %v1575 = vpop.f32.mrb[0].mxu0
      %1576 = vmatprep.mubr.bf16.mxu0 0
      %1577 = vmatmul.mubr.bf16.gmra.mrb[0].mxu0 %v1508
      %v1578 = vpop.f32.mrb[0].mxu0
      %v1579 = vadd.f32 0.0, %v1578
      %v1580 = vpop.f32.mrb[0].mxu0
      %v1581 = vpop.f32.mrb[0].mxu0
      %v1582 = vadd.f32 0.0, %v1581
      %v1583 = vpop.f32.mrb[0].mxu0
      %1584 = vmatprep.mubr.bf16.mxu0 0
      %1585 = vmatmul.mubr.bf16.gmra.mrb[0].mxu0 %v1511
      %v1586 = vpop.f32.mrb[0].mxu0
      %v1587 = vadd.f32 0.0, %v1586
      %v1588 = vpop.f32.mrb[0].mxu0
      %v1589 = vpop.f32.mrb[0].mxu0
      %v1590 = vadd.f32 0.0, %v1589
      %v1591 = vpop.f32.mrb[0].mxu0
      %1592 = vmatprep.mubr.bf16.mxu0 0
      %1593 = vmatmul.mubr.bf16.gmra.mrb[0].mxu0 %v1514
      %v1594 = vpop.f32.mrb[0].mxu0
      %v1595 = vadd.f32 0.0, %v1594
      %v1596 = vpop.f32.mrb[0].mxu0
      %v1597 = vpop.f32.mrb[0].mxu0
      %v1598 = vadd.f32 0.0, %v1597
      %v1599 = vpop.f32.mrb[0].mxu0
      %1600 = vmatprep.mubr.bf16.mxu0 0
      %1601 = vmatmul.mubr.bf16.gmra.mrb[0].mxu0 %v1517
      %v1602 = vpop.f32.mrb[0].mxu0
      %v1603 = vadd.f32 0.0, %v1602
      %v1604 = vpop.f32.mrb[0].mxu0
      %v1605 = vpop.f32.mrb[0].mxu0
      %v1606 = vadd.f32 0.0, %v1605
      %v1607 = vpop.f32.mrb[0].mxu0
      %1608 = vmatprep.mubr.bf16.mxu0 0
      %1609 = vmatmul.mubr.bf16.gmra.mrb[0].mxu0 %v1520
      %v1610 = vpop.f32.mrb[0].mxu0
      %v1611 = vadd.f32 0.0, %v1610
      %v1612 = vpop.f32.mrb[0].mxu0
      %v1613 = vpop.f32.mrb[0].mxu0
      %v1614 = vadd.f32 0.0, %v1613
      %v1615 = vpop.f32.mrb[0].mxu0
      %1616 = vmatprep.mubr.bf16.mxu0 0
      %1617 = vmatmul.mubr.bf16.gmra.mrb[0].mxu0 %v1523
      %v1618 = vpop.f32.mrb[0].mxu0
      %v1619 = vadd.f32 0.0, %v1618
      %v1620 = vpop.f32.mrb[0].mxu0
      %v1621 = vpop.f32.mrb[0].mxu0
      %v1622 = vadd.f32 0.0, %v1621
      %v1623 = vpop.f32.mrb[0].mxu0
      %1624 = vdwg.mxu0
      %v1625 = vadd.f32 %v1427, %v1563
      %v1626 = vadd.f32 %v1428, %v1566
      %v1627 = vadd.f32 %v1429, %v1571
      %v1628 = vadd.f32 %v1430, %v1574
      %v1629 = vadd.f32 %v1431, %v1579
      %v1630 = vadd.f32 %v1432, %v1582
      %v1631 = vadd.f32 %v1433, %v1587
      %v1632 = vadd.f32 %v1434, %v1590
      %v1633 = vadd.f32 %v1435, %v1595
      %v1634 = vadd.f32 %v1436, %v1598
      %v1635 = vadd.f32 %v1437, %v1603
      %v1636 = vadd.f32 %v1438, %v1606
      %v1637 = vadd.f32 %v1439, %v1611
      %v1638 = vadd.f32 %v1440, %v1614
      %v1639 = vadd.f32 %v1441, %v1619
      %v1640 = vadd.f32 %v1442, %v1622
      %v1641 = vld [vmem:[%s329 + $0x8] sm:$0xf]
      %v1642 = vld [vmem:[%s329 + $0xc] sm:$0xf]
      %v1643 = vld [vmem:[%s329 + $0x10] sm:$0xf]
      %v1644 = vld [vmem:[%s329 + $0x14] sm:$0xf]
      %v1645 = vld [vmem:[%s329 + $0x18] sm:$0xf]
      %v1646 = vld [vmem:[%s329 + $0x1c] sm:$0xf]
      %v1647 = vld [vmem:[%s329 + $0x20] sm:$0xf]
      %v1648 = vld [vmem:[%s329 + $0x24] sm:$0xf]
      %v1649 = vld [vmem:[%s329 + $0x28] sm:$0xf]
      %v1650 = vld [vmem:[%s329 + $0x2c] sm:$0xf]
      %v1651 = vld [vmem:[%s329 + $0x30] sm:$0xf]
      %v1652 = vld [vmem:[%s329 + $0x34] sm:$0xf]
      %v1653 = vld [vmem:[%s329 + $0x38] sm:$0xf]
      %v1654 = vld [vmem:[%s329 + $0x3c] sm:$0xf]
      %v1655 = vld [vmem:[%s329 + $0x40] sm:$0xf]
      %v1656 = vld [vmem:[%s329 + $0x44] sm:$0xf]
      %s1657 = scalar_lea.vmem %s2, 14
      %v1658 = vld [vmem:[%s1657] sm:$0x3]
      %v1675 = vunpack.c.l.b16 %v1641
      %v1676 = vunpack.c.l.b16 %v1642
      %v1677 = vunpack.c.l.b16 %v1643
      %v1678 = vunpack.c.l.b16 %v1644
      %v1679 = vunpack.c.l.b16 %v1645
      %v1680 = vunpack.c.l.b16 %v1646
      %v1681 = vunpack.c.l.b16 %v1647
      %v1682 = vunpack.c.l.b16 %v1648
      %v1683 = vunpack.c.l.b16 %v1649
      %v1684 = vunpack.c.l.b16 %v1650
      %v1685 = vunpack.c.l.b16 %v1651
      %v1686 = vunpack.c.l.b16 %v1652
      %v1687 = vunpack.c.l.b16 %v1653
      %v1688 = vunpack.c.l.b16 %v1654
      %v1689 = vunpack.c.l.b16 %v1655
      %v1690 = vunpack.c.l.b16 %v1656
      %v1691 = vpack.c.b16 %v1676, %v1675
      %v1692 = vpack.c.b16 %v1678, %v1677
      %v1693 = vpack.c.b16 %v1680, %v1679
      %v1694 = vpack.c.b16 %v1682, %v1681
      %v1695 = vpack.c.b16 %v1684, %v1683
      %v1696 = vpack.c.b16 %v1686, %v1685
      %v1697 = vpack.c.b16 %v1688, %v1687
      %v1698 = vpack.c.b16 %v1690, %v1689
      %v1700 = vsel %vm388, %v1691, 0
      %v1703 = vsel %vm388, %v1692, 0
      %v1706 = vsel %vm388, %v1693, 0
      %v1709 = vsel %vm388, %v1694, 0
      %v1712 = vsel %vm388, %v1695, 0
      %v1715 = vsel %vm388, %v1696, 0
      %v1718 = vsel %vm388, %v1697, 0
      %v1721 = vsel %vm388, %v1698, 0
      %v1724 = vsel %vm413, %v1658, 0
      %1726 = vmatprep.subr.bf16.mxu0 0
      %1727 = vmatpush1.bf16.msra.mxu0 %v1724
      %1728 = vmatprep.subr.bf16.mxu0 0
      %1729 = vmatpush1.bf16.msra.mxu0 0
      %1730 = vmatprep.subr.bf16.mxu0 0
      %1731 = vmatpush1.bf16.msra.mxu0 0
      %1732 = vmatprep.subr.bf16.mxu0 0
      %1733 = vmatpush1.bf16.msra.mxu0 0
      %1734 = vmatprep.subr.bf16.mxu0 0
      %1735 = vmatpush1.bf16.msra.mxu0 0
      %1736 = vmatprep.subr.bf16.mxu0 0
      %1737 = vmatpush1.bf16.msra.mxu0 0
      %1738 = vmatprep.subr.bf16.mxu0 0
      %1739 = vmatpush1.bf16.msra.mxu0 0
      %1740 = vmatprep.subr.bf16.mxu0 0
      %1741 = vmatpush1.bf16.msra.mxu0 0
      %1742 = vmatprep.subr.bf16.mxu0 0
      %1743 = vmatpush1.bf16.msra.mxu0 0
      %1744 = vmatprep.subr.bf16.mxu0 0
      %1745 = vmatpush1.bf16.msra.mxu0 0
      %1746 = vmatprep.subr.bf16.mxu0 0
      %1747 = vmatpush1.bf16.msra.mxu0 0
      %1748 = vmatprep.subr.bf16.mxu0 0
      %1749 = vmatpush1.bf16.msra.mxu0 0
      %1750 = vmatprep.subr.bf16.mxu0 0
      %1751 = vmatpush1.bf16.msra.mxu0 0
      %1752 = vmatprep.subr.bf16.mxu0 0
      %1753 = vmatpush1.bf16.msra.mxu0 0
      %1754 = vmatprep.subr.bf16.mxu0 0
      %1755 = vmatpush1.bf16.msra.mxu0 0
      %1756 = vmatprep.subr.bf16.mxu0 0
      %1757 = vmatpush1.bf16.msra.mxu0 0
      %1758 = vmatprep.mubr.bf16.mxu0 0
      %1759 = vmatmul.mubr.bf16.gmra.mrb[0].mxu0 %v1700
      %v1760 = vpop.f32.mrb[0].mxu0
      %v1761 = vadd.f32 0.0, %v1760
      %v1762 = vpop.f32.mrb[0].mxu0
      %v1763 = vpop.f32.mrb[0].mxu0
      %v1764 = vadd.f32 0.0, %v1763
      %v1765 = vpop.f32.mrb[0].mxu0
      %1766 = vmatprep.mubr.bf16.mxu0 0
      %1767 = vmatmul.mubr.bf16.gmra.mrb[0].mxu0 %v1703
      %v1768 = vpop.f32.mrb[0].mxu0
      %v1769 = vadd.f32 0.0, %v1768
      %v1770 = vpop.f32.mrb[0].mxu0
      %v1771 = vpop.f32.mrb[0].mxu0
      %v1772 = vadd.f32 0.0, %v1771
      %v1773 = vpop.f32.mrb[0].mxu0
      %1774 = vmatprep.mubr.bf16.mxu0 0
      %1775 = vmatmul.mubr.bf16.gmra.mrb[0].mxu0 %v1706
      %v1776 = vpop.f32.mrb[0].mxu0
      %v1777 = vadd.f32 0.0, %v1776
      %v1778 = vpop.f32.mrb[0].mxu0
      %v1779 = vpop.f32.mrb[0].mxu0
      %v1780 = vadd.f32 0.0, %v1779
      %v1781 = vpop.f32.mrb[0].mxu0
      %1782 = vmatprep.mubr.bf16.mxu0 0
      %1783 = vmatmul.mubr.bf16.gmra.mrb[0].mxu0 %v1709
      %v1784 = vpop.f32.mrb[0].mxu0
      %v1785 = vadd.f32 0.0, %v1784
      %v1786 = vpop.f32.mrb[0].mxu0
      %v1787 = vpop.f32.mrb[0].mxu0
      %v1788 = vadd.f32 0.0, %v1787
      %v1789 = vpop.f32.mrb[0].mxu0
      %1790 = vmatprep.mubr.bf16.mxu0 0
      %1791 = vmatmul.mubr.bf16.gmra.mrb[0].mxu0 %v1712
      %v1792 = vpop.f32.mrb[0].mxu0
      %v1793 = vadd.f32 0.0, %v1792
      %v1794 = vpop.f32.mrb[0].mxu0
      %v1795 = vpop.f32.mrb[0].mxu0
      %v1796 = vadd.f32 0.0, %v1795
      %v1797 = vpop.f32.mrb[0].mxu0
      %1798 = vmatprep.mubr.bf16.mxu0 0
      %1799 = vmatmul.mubr.bf16.gmra.mrb[0].mxu0 %v1715
      %v1800 = vpop.f32.mrb[0].mxu0
      %v1801 = vadd.f32 0.0, %v1800
      %v1802 = vpop.f32.mrb[0].mxu0
      %v1803 = vpop.f32.mrb[0].mxu0
      %v1804 = vadd.f32 0.0, %v1803
      %v1805 = vpop.f32.mrb[0].mxu0
      %1806 = vmatprep.mubr.bf16.mxu0 0
      %1807 = vmatmul.mubr.bf16.gmra.mrb[0].mxu0 %v1718
      %v1808 = vpop.f32.mrb[0].mxu0
      %v1809 = vadd.f32 0.0, %v1808
      %v1810 = vpop.f32.mrb[0].mxu0
      %v1811 = vpop.f32.mrb[0].mxu0
      %v1812 = vadd.f32 0.0, %v1811
      %v1813 = vpop.f32.mrb[0].mxu0
      %1814 = vmatprep.mubr.bf16.mxu0 0
      %1815 = vmatmul.mubr.bf16.gmra.mrb[0].mxu0 %v1721
      %v1816 = vpop.f32.mrb[0].mxu0
      %v1817 = vadd.f32 0.0, %v1816
      %v1818 = vpop.f32.mrb[0].mxu0
      %v1819 = vpop.f32.mrb[0].mxu0
      %v1820 = vadd.f32 0.0, %v1819
      %v1821 = vpop.f32.mrb[0].mxu0
      %1822 = vdwg.mxu0
      %v1823 = vadd.f32 %v1625, %v1761
      %v1824 = vadd.f32 %v1626, %v1764
      %v1825 = vadd.f32 %v1627, %v1769
      %v1826 = vadd.f32 %v1628, %v1772
      %v1827 = vadd.f32 %v1629, %v1777
      %v1828 = vadd.f32 %v1630, %v1780
      %v1829 = vadd.f32 %v1631, %v1785
      %v1830 = vadd.f32 %v1632, %v1788
      %v1831 = vadd.f32 %v1633, %v1793
      %v1832 = vadd.f32 %v1634, %v1796
      %v1833 = vadd.f32 %v1635, %v1801
      %v1834 = vadd.f32 %v1636, %v1804
      %v1835 = vadd.f32 %v1637, %v1809
      %v1836 = vadd.f32 %v1638, %v1812
      %v1837 = vadd.f32 %v1639, %v1817
      %v1838 = vadd.f32 %v1640, %v1820
      %s1839 = scalar_lea.vmem %s2, 16
      %v1840 = vld [vmem:[%s1839] sm:$0x3]
      %v1842 = vsel %vm413, %v1840, 0
      %1844 = vmatprep.subr.bf16.mxu0 0
      %1845 = vmatpush1.bf16.msra.mxu0 %v1842
      %1846 = vmatprep.subr.bf16.mxu0 0
      %1847 = vmatpush1.bf16.msra.mxu0 0
      %1848 = vmatprep.subr.bf16.mxu0 0
      %1849 = vmatpush1.bf16.msra.mxu0 0
      %1850 = vmatprep.subr.bf16.mxu0 0
      %1851 = vmatpush1.bf16.msra.mxu0 0
      %1852 = vmatprep.subr.bf16.mxu0 0
      %1853 = vmatpush1.bf16.msra.mxu0 0
      %1854 = vmatprep.subr.bf16.mxu0 0
      %1855 = vmatpush1.bf16.msra.mxu0 0
      %1856 = vmatprep.subr.bf16.mxu0 0
      %1857 = vmatpush1.bf16.msra.mxu0 0
      %1858 = vmatprep.subr.bf16.mxu0 0
      %1859 = vmatpush1.bf16.msra.mxu0 0
      %1860 = vmatprep.subr.bf16.mxu0 0
      %1861 = vmatpush1.bf16.msra.mxu0 0
      %1862 = vmatprep.subr.bf16.mxu0 0
      %1863 = vmatpush1.bf16.msra.mxu0 0
      %1864 = vmatprep.subr.bf16.mxu0 0
      %1865 = vmatpush1.bf16.msra.mxu0 0
      %1866 = vmatprep.subr.bf16.mxu0 0
      %1867 = vmatpush1.bf16.msra.mxu0 0
      %1868 = vmatprep.subr.bf16.mxu0 0
      %1869 = vmatpush1.bf16.msra.mxu0 0
      %1870 = vmatprep.subr.bf16.mxu0 0
      %1871 = vmatpush1.bf16.msra.mxu0 0
      %1872 = vmatprep.subr.bf16.mxu0 0
      %1873 = vmatpush1.bf16.msra.mxu0 0
      %1874 = vmatprep.subr.bf16.mxu0 0
      %1875 = vmatpush1.bf16.msra.mxu0 0
      %1876 = vmatprep.mubr.bf16.mxu0 0
      %1877 = vmatmul.mubr.bf16.gmra.mrb[0].mxu0 %v1502
      %v1878 = vpop.f32.mrb[0].mxu0
      %v1879 = vadd.f32 0.0, %v1878
      %v1880 = vpop.f32.mrb[0].mxu0
      %v1881 = vpop.f32.mrb[0].mxu0
      %v1882 = vadd.f32 0.0, %v1881
      %v1883 = vpop.f32.mrb[0].mxu0
      %1884 = vmatprep.mubr.bf16.mxu0 0
      %1885 = vmatmul.mubr.bf16.gmra.mrb[0].mxu0 %v1505
      %v1886 = vpop.f32.mrb[0].mxu0
      %v1887 = vadd.f32 0.0, %v1886
      %v1888 = vpop.f32.mrb[0].mxu0
      %v1889 = vpop.f32.mrb[0].mxu0
      %v1890 = vadd.f32 0.0, %v1889
      %v1891 = vpop.f32.mrb[0].mxu0
      %1892 = vmatprep.mubr.bf16.mxu0 0
      %1893 = vmatmul.mubr.bf16.gmra.mrb[0].mxu0 %v1508
      %v1894 = vpop.f32.mrb[0].mxu0
      %v1895 = vadd.f32 0.0, %v1894
      %v1896 = vpop.f32.mrb[0].mxu0
      %v1897 = vpop.f32.mrb[0].mxu0
      %v1898 = vadd.f32 0.0, %v1897
      %v1899 = vpop.f32.mrb[0].mxu0
      %1900 = vmatprep.mubr.bf16.mxu0 0
      %1901 = vmatmul.mubr.bf16.gmra.mrb[0].mxu0 %v1511
      %v1902 = vpop.f32.mrb[0].mxu0
      %v1903 = vadd.f32 0.0, %v1902
      %v1904 = vpop.f32.mrb[0].mxu0
      %v1905 = vpop.f32.mrb[0].mxu0
      %v1906 = vadd.f32 0.0, %v1905
      %v1907 = vpop.f32.mrb[0].mxu0
      %1908 = vmatprep.mubr.bf16.mxu0 0
      %1909 = vmatmul.mubr.bf16.gmra.mrb[0].mxu0 %v1514
      %v1910 = vpop.f32.mrb[0].mxu0
      %v1911 = vadd.f32 0.0, %v1910
      %v1912 = vpop.f32.mrb[0].mxu0
      %v1913 = vpop.f32.mrb[0].mxu0
      %v1914 = vadd.f32 0.0, %v1913
      %v1915 = vpop.f32.mrb[0].mxu0
      %1916 = vmatprep.mubr.bf16.mxu0 0
      %1917 = vmatmul.mubr.bf16.gmra.mrb[0].mxu0 %v1517
      %v1918 = vpop.f32.mrb[0].mxu0
      %v1919 = vadd.f32 0.0, %v1918
      %v1920 = vpop.f32.mrb[0].mxu0
      %v1921 = vpop.f32.mrb[0].mxu0
      %v1922 = vadd.f32 0.0, %v1921
      %v1923 = vpop.f32.mrb[0].mxu0
      %1924 = vmatprep.mubr.bf16.mxu0 0
      %1925 = vmatmul.mubr.bf16.gmra.mrb[0].mxu0 %v1520
      %v1926 = vpop.f32.mrb[0].mxu0
      %v1927 = vadd.f32 0.0, %v1926
      %v1928 = vpop.f32.mrb[0].mxu0
      %v1929 = vpop.f32.mrb[0].mxu0
      %v1930 = vadd.f32 0.0, %v1929
      %v1931 = vpop.f32.mrb[0].mxu0
      %1932 = vmatprep.mubr.bf16.mxu0 0
      %1933 = vmatmul.mubr.bf16.gmra.mrb[0].mxu0 %v1523
      %v1934 = vpop.f32.mrb[0].mxu0
      %v1935 = vadd.f32 0.0, %v1934
      %v1936 = vpop.f32.mrb[0].mxu0
      %v1937 = vpop.f32.mrb[0].mxu0
      %v1938 = vadd.f32 0.0, %v1937
      %v1939 = vpop.f32.mrb[0].mxu0
      %1940 = vdwg.mxu0
      %v1957 = vrot.slane %v1879, 1
      %v1958 = vrot.slane %v1882, 1
      %v1959 = vsel %vm796, %v1957, %v1958
      %v1960 = vrot.slane %v1887, 1
      %v1961 = vsel %vm796, %v1958, %v1960
      %v1962 = vrot.slane %v1890, 1
      %v1963 = vsel %vm796, %v1960, %v1962
      %v1964 = vrot.slane %v1895, 1
      %v1965 = vsel %vm796, %v1962, %v1964
      %v1966 = vrot.slane %v1898, 1
      %v1967 = vsel %vm796, %v1964, %v1966
      %v1968 = vrot.slane %v1903, 1
      %v1969 = vsel %vm796, %v1966, %v1968
      %v1970 = vrot.slane %v1906, 1
      %v1971 = vsel %vm796, %v1968, %v1970
      %v1972 = vrot.slane %v1911, 1
      %v1973 = vsel %vm796, %v1970, %v1972
      %v1974 = vrot.slane %v1914, 1
      %v1975 = vsel %vm796, %v1972, %v1974
      %v1976 = vrot.slane %v1919, 1
      %v1977 = vsel %vm796, %v1974, %v1976
      %v1978 = vrot.slane %v1922, 1
      %v1979 = vsel %vm796, %v1976, %v1978
      %v1980 = vrot.slane %v1927, 1
      %v1981 = vsel %vm796, %v1978, %v1980
      %v1982 = vrot.slane %v1930, 1
      %v1983 = vsel %vm796, %v1980, %v1982
      %v1984 = vrot.slane %v1935, 1
      %v1985 = vsel %vm796, %v1982, %v1984
      %v1986 = vrot.slane %v1938, 1
      %v1987 = vsel %vm796, %v1984, %v1986
      %v2005 = vsel %vm796, %v1986, %v1957
      %v2006 = vadd.f32 %v1823, %v1959
      %v2007 = vadd.f32 %v1824, %v1961
      %v2008 = vadd.f32 %v1825, %v1963
      %v2009 = vadd.f32 %v1826, %v1965
      %v2010 = vadd.f32 %v1827, %v1967
      %v2011 = vadd.f32 %v1828, %v1969
      %v2012 = vadd.f32 %v1829, %v1971
      %v2013 = vadd.f32 %v1830, %v1973
      %v2014 = vadd.f32 %v1831, %v1975
      %v2015 = vadd.f32 %v1832, %v1977
      %v2016 = vadd.f32 %v1833, %v1979
      %v2017 = vadd.f32 %v1834, %v1981
      %v2018 = vadd.f32 %v1835, %v1983
      %v2019 = vadd.f32 %v1836, %v1985
      %v2020 = vadd.f32 %v1837, %v1987
      %v2021 = vadd.f32 %v1838, %v2005
      %v2022 = vld [vmem:[%s3] sm:$0x1]
      %v2024 = vlaneseq
      %v2025 = vshrl.u32 %v2024, 7
      %v2026 = vsub.s32 0, %v2025
      %v2027 = vrot.slane %v2022, %v2026
      %v2029 = vadd.f32 %v2006, %v2027
      %v2030 = vadd.f32 %v2007, %v2027
      %v2031 = vadd.f32 %v2008, %v2027
      %v2032 = vadd.f32 %v2009, %v2027
      %v2033 = vadd.f32 %v2010, %v2027
      %v2034 = vadd.f32 %v2011, %v2027
      %v2035 = vadd.f32 %v2012, %v2027
      %v2036 = vadd.f32 %v2013, %v2027
      %v2037 = vadd.f32 %v2014, %v2027
      %v2038 = vadd.f32 %v2015, %v2027
      %v2039 = vadd.f32 %v2016, %v2027
      %v2040 = vadd.f32 %v2017, %v2027
      %v2041 = vadd.f32 %v2018, %v2027
      %v2042 = vadd.f32 %v2019, %v2027
      %v2043 = vadd.f32 %v2020, %v2027
      %v2044 = vadd.f32 %v2021, %v2027
      %v2045 = vmax.f32 %v2029, 0.0
      %v2046 = vmax.f32 %v2030, 0.0
      %v2047 = vmax.f32 %v2031, 0.0
      %v2048 = vmax.f32 %v2032, 0.0
      %v2049 = vmax.f32 %v2033, 0.0
      %v2050 = vmax.f32 %v2034, 0.0
      %v2051 = vmax.f32 %v2035, 0.0
      %v2052 = vmax.f32 %v2036, 0.0
      %v2053 = vmax.f32 %v2037, 0.0
      %v2054 = vmax.f32 %v2038, 0.0
      %v2055 = vmax.f32 %v2039, 0.0
      %v2056 = vmax.f32 %v2040, 0.0
      %v2057 = vmax.f32 %v2041, 0.0
      %v2058 = vmax.f32 %v2042, 0.0
      %v2059 = vmax.f32 %v2043, 0.0
      %v2060 = vmax.f32 %v2044, 0.0
      %v2061 = vld [vmem:[%s1] sm:$0xff]
      %v2062 = vld [vmem:[%s1 + $0x8] sm:$0xff]
      %v2063 = vld [vmem:[%s1 + $0x10] sm:$0xff]
      %v2064 = vld [vmem:[%s1 + $0x18] sm:$0xff]
      %v2065 = vld [vmem:[%s1 + $0x20] sm:$0xff]
      %v2066 = vld [vmem:[%s1 + $0x28] sm:$0xff]
      %v2067 = vld [vmem:[%s1 + $0x30] sm:$0xff]
      %v2068 = vld [vmem:[%s1 + $0x38] sm:$0xff]
      %v2069 = vld [vmem:[%s1 + $0x40] sm:$0xff]
      %v2070 = vld [vmem:[%s1 + $0x48] sm:$0xff]
      %v2071 = vld [vmem:[%s1 + $0x50] sm:$0xff]
      %v2072 = vld [vmem:[%s1 + $0x58] sm:$0xff]
      %v2073 = vld [vmem:[%s1 + $0x60] sm:$0xff]
      %v2074 = vld [vmem:[%s1 + $0x68] sm:$0xff]
      %v2075 = vld [vmem:[%s1 + $0x70] sm:$0xff]
      %v2076 = vld [vmem:[%s1 + $0x78] sm:$0xff]
      %2078 = vset.pattern.permute.xlu0 0
      %2079 = vperm.xlu0 %2078, %v2061
      %v2080 = vpop.permute.xlu0 %2079
      %2083 = vset.pattern.permute.xlu0 0
      %2084 = vperm.xlu0 %2083, %v2062
      %v2085 = vpop.permute.xlu0 %2084
      %2088 = vset.pattern.permute.xlu0 0
      %2089 = vperm.xlu0 %2088, %v2063
      %v2090 = vpop.permute.xlu0 %2089
      %2093 = vset.pattern.permute.xlu0 0
      %2094 = vperm.xlu0 %2093, %v2064
      %v2095 = vpop.permute.xlu0 %2094
      %2098 = vset.pattern.permute.xlu0 0
      %2099 = vperm.xlu0 %2098, %v2065
      %v2100 = vpop.permute.xlu0 %2099
      %2103 = vset.pattern.permute.xlu0 0
      %2104 = vperm.xlu0 %2103, %v2066
      %v2105 = vpop.permute.xlu0 %2104
      %2108 = vset.pattern.permute.xlu0 0
      %2109 = vperm.xlu0 %2108, %v2067
      %v2110 = vpop.permute.xlu0 %2109
      %2113 = vset.pattern.permute.xlu0 0
      %2114 = vperm.xlu0 %2113, %v2068
      %v2115 = vpop.permute.xlu0 %2114
      %2118 = vset.pattern.permute.xlu0 0
      %2119 = vperm.xlu0 %2118, %v2069
      %v2120 = vpop.permute.xlu0 %2119
      %2123 = vset.pattern.permute.xlu0 0
      %2124 = vperm.xlu0 %2123, %v2070
      %v2125 = vpop.permute.xlu0 %2124
      %2128 = vset.pattern.permute.xlu0 0
      %2129 = vperm.xlu0 %2128, %v2071
      %v2130 = vpop.permute.xlu0 %2129
      %2133 = vset.pattern.permute.xlu0 0
      %2134 = vperm.xlu0 %2133, %v2072
      %v2135 = vpop.permute.xlu0 %2134
      %2138 = vset.pattern.permute.xlu0 0
      %2139 = vperm.xlu0 %2138, %v2073
      %v2140 = vpop.permute.xlu0 %2139
      %2143 = vset.pattern.permute.xlu0 0
      %2144 = vperm.xlu0 %2143, %v2074
      %v2145 = vpop.permute.xlu0 %2144
      %2148 = vset.pattern.permute.xlu0 0
      %2149 = vperm.xlu0 %2148, %v2075
      %v2150 = vpop.permute.xlu0 %2149
      %2153 = vset.pattern.permute.xlu0 0
      %2154 = vperm.xlu0 %2153, %v2076
      %v2155 = vpop.permute.xlu0 %2154
      %v2157 = vmul.f32 %v2045, %v2080
      %v2158 = vmul.f32 %v2046, %v2085
      %v2159 = vmul.f32 %v2047, %v2090
      %v2160 = vmul.f32 %v2048, %v2095
      %v2161 = vmul.f32 %v2049, %v2100
      %v2162 = vmul.f32 %v2050, %v2105
      %v2163 = vmul.f32 %v2051, %v2110
      %v2164 = vmul.f32 %v2052, %v2115
      %v2165 = vmul.f32 %v2053, %v2120
      %v2166 = vmul.f32 %v2054, %v2125
      %v2167 = vmul.f32 %v2055, %v2130
      %v2168 = vmul.f32 %v2056, %v2135
      %v2169 = vmul.f32 %v2057, %v2140
      %v2170 = vmul.f32 %v2058, %v2145
      %v2171 = vmul.f32 %v2059, %v2150
      %v2172 = vmul.f32 %v2060, %v2155
      %vm2173 = vcmask 64512
      %2174 = vst.msk [vmem:[#allocation2] sm:$0xff] %vm2173, 0
      %2175 = vst.msk [vmem:[#allocation2 + $0x48] sm:$0xff] %vm2173, 0
      %v2176 = vpack.c.bf16 %v2158, %v2157
      %v2177 = vpack.c.bf16 %v2160, %v2159
      %v2178 = vpack.c.bf16 %v2162, %v2161
      %v2179 = vpack.c.bf16 %v2164, %v2163
      %v2180 = vpack.c.bf16 %v2166, %v2165
      %v2181 = vpack.c.bf16 %v2168, %v2167
      %v2182 = vpack.c.bf16 %v2170, %v2169
      %v2183 = vpack.c.bf16 %v2172, %v2171
      %2184 = vst.msk [vmem:[#allocation2 + $0x8] sm:$0xff] %vm2173, %v2176
      %2185 = vst.msk [vmem:[#allocation2 + $0x10] sm:$0xff] %vm2173, %v2177
      %2186 = vst.msk [vmem:[#allocation2 + $0x18] sm:$0xff] %vm2173, %v2178
      %2187 = vst.msk [vmem:[#allocation2 + $0x20] sm:$0xff] %vm2173, %v2179
      %2188 = vst.msk [vmem:[#allocation2 + $0x28] sm:$0xff] %vm2173, %v2180
      %2189 = vst.msk [vmem:[#allocation2 + $0x30] sm:$0xff] %vm2173, %v2181
      %2190 = vst.msk [vmem:[#allocation2 + $0x38] sm:$0xff] %vm2173, %v2182
      %2191 = vst.msk [vmem:[#allocation2 + $0x40] sm:$0xff] %vm2173, %v2183
      %v2192 = vld [vmem:[#allocation2] sm:$0xff]
      %v2193 = vld [vmem:[#allocation2 + $0x8] sm:$0xff]
      %v2194 = vld [vmem:[#allocation2 + $0x10] sm:$0xff]
      %v2195 = vld [vmem:[#allocation2 + $0x18] sm:$0xff]
      %v2196 = vld [vmem:[#allocation2 + $0x20] sm:$0xff]
      %v2197 = vld [vmem:[#allocation2 + $0x28] sm:$0xff]
      %v2198 = vld [vmem:[#allocation2 + $0x30] sm:$0xff]
      %v2199 = vld [vmem:[#allocation2 + $0x38] sm:$0xff]
      %v2200 = vld [vmem:[%s4] sm:$0xf]
      %v2202 = vsel %vm2173, %v2192, 0
      %v2205 = vsel %vm2173, %v2193, 0
      %v2208 = vsel %vm2173, %v2194, 0
      %v2211 = vsel %vm2173, %v2195, 0
      %v2214 = vsel %vm2173, %v2196, 0
      %v2217 = vsel %vm2173, %v2197, 0
      %v2220 = vsel %vm2173, %v2198, 0
      %v2223 = vsel %vm2173, %v2199, 0
      %vm2225 = vcmask 1043456
      %v2227 = vsel %vm2225, %v2200, 0
      %2229 = vmatprep.subr.bf16.mxu0 0
      %2230 = vmatpush1.bf16.msra.mxu0 %v2227
      %2231 = vmatprep.subr.bf16.mxu0 0
      %2232 = vmatpush1.bf16.msra.mxu0 0
      %2233 = vmatprep.subr.bf16.mxu0 0
      %2234 = vmatpush1.bf16.msra.mxu0 0
      %2235 = vmatprep.subr.bf16.mxu0 0
      %2236 = vmatpush1.bf16.msra.mxu0 0
      %2237 = vmatprep.subr.bf16.mxu0 0
      %2238 = vmatpush1.bf16.msra.mxu0 0
      %2239 = vmatprep.subr.bf16.mxu0 0
      %2240 = vmatpush1.bf16.msra.mxu0 0
      %2241 = vmatprep.subr.bf16.mxu0 0
      %2242 = vmatpush1.bf16.msra.mxu0 0
      %2243 = vmatprep.subr.bf16.mxu0 0
      %2244 = vmatpush1.bf16.msra.mxu0 0
      %2245 = vmatprep.subr.bf16.mxu0 0
      %2246 = vmatpush1.bf16.msra.mxu0 0
      %2247 = vmatprep.subr.bf16.mxu0 0
      %2248 = vmatpush1.bf16.msra.mxu0 0
      %2249 = vmatprep.subr.bf16.mxu0 0
      %2250 = vmatpush1.bf16.msra.mxu0 0
      %2251 = vmatprep.subr.bf16.mxu0 0
      %2252 = vmatpush1.bf16.msra.mxu0 0
      %2253 = vmatprep.subr.bf16.mxu0 0
      %2254 = vmatpush1.bf16.msra.mxu0 0
      %2255 = vmatprep.subr.bf16.mxu0 0
      %2256 = vmatpush1.bf16.msra.mxu0 0
      %2257 = vmatprep.subr.bf16.mxu0 0
      %2258 = vmatpush1.bf16.msra.mxu0 0
      %2259 = vmatprep.subr.bf16.mxu0 0
      %2260 = vmatpush1.bf16.msra.mxu0 0
      %2261 = vmatprep.mubr.bf16.mxu0 0
      %2262 = vmatmul.mubr.bf16.gmra.mrb[0].mxu0 %v2202
      %v2263 = vpop.f32.mrb[0].mxu0
      %v2264 = vadd.f32 0.0, %v2263
      %v2265 = vpop.f32.mrb[0].mxu0
      %v2266 = vpop.f32.mrb[0].mxu0
      %v2267 = vadd.f32 0.0, %v2266
      %v2268 = vpop.f32.mrb[0].mxu0
      %2269 = vmatprep.mubr.bf16.mxu0 0
      %2270 = vmatmul.mubr.bf16.gmra.mrb[0].mxu0 %v2205
      %v2271 = vpop.f32.mrb[0].mxu0
      %v2272 = vadd.f32 0.0, %v2271
      %v2273 = vpop.f32.mrb[0].mxu0
      %v2274 = vpop.f32.mrb[0].mxu0
      %v2275 = vadd.f32 0.0, %v2274
      %v2276 = vpop.f32.mrb[0].mxu0
      %2277 = vmatprep.mubr.bf16.mxu0 0
      %2278 = vmatmul.mubr.bf16.gmra.mrb[0].mxu0 %v2208
      %v2279 = vpop.f32.mrb[0].mxu0
      %v2280 = vadd.f32 0.0, %v2279
      %v2281 = vpop.f32.mrb[0].mxu0
      %v2282 = vpop.f32.mrb[0].mxu0
      %v2283 = vadd.f32 0.0, %v2282
      %v2284 = vpop.f32.mrb[0].mxu0
      %2285 = vmatprep.mubr.bf16.mxu0 0
      %2286 = vmatmul.mubr.bf16.gmra.mrb[0].mxu0 %v2211
      %v2287 = vpop.f32.mrb[0].mxu0
      %v2288 = vadd.f32 0.0, %v2287
      %v2289 = vpop.f32.mrb[0].mxu0
      %v2290 = vpop.f32.mrb[0].mxu0
      %v2291 = vadd.f32 0.0, %v2290
      %v2292 = vpop.f32.mrb[0].mxu0
      %2293 = vmatprep.mubr.bf16.mxu0 0
      %2294 = vmatmul.mubr.bf16.gmra.mrb[0].mxu0 %v2214
      %v2295 = vpop.f32.mrb[0].mxu0
      %v2296 = vadd.f32 0.0, %v2295
      %v2297 = vpop.f32.mrb[0].mxu0
      %v2298 = vpop.f32.mrb[0].mxu0
      %v2299 = vadd.f32 0.0, %v2298
      %v2300 = vpop.f32.mrb[0].mxu0
      %2301 = vmatprep.mubr.bf16.mxu0 0
      %2302 = vmatmul.mubr.bf16.gmra.mrb[0].mxu0 %v2217
      %v2303 = vpop.f32.mrb[0].mxu0
      %v2304 = vadd.f32 0.0, %v2303
      %v2305 = vpop.f32.mrb[0].mxu0
      %v2306 = vpop.f32.mrb[0].mxu0
      %v2307 = vadd.f32 0.0, %v2306
      %v2308 = vpop.f32.mrb[0].mxu0
      %2309 = vmatprep.mubr.bf16.mxu0 0
      %2310 = vmatmul.mubr.bf16.gmra.mrb[0].mxu0 %v2220
      %v2311 = vpop.f32.mrb[0].mxu0
      %v2312 = vadd.f32 0.0, %v2311
      %v2313 = vpop.f32.mrb[0].mxu0
      %v2314 = vpop.f32.mrb[0].mxu0
      %v2315 = vadd.f32 0.0, %v2314
      %v2316 = vpop.f32.mrb[0].mxu0
      %2317 = vmatprep.mubr.bf16.mxu0 0
      %2318 = vmatmul.mubr.bf16.gmra.mrb[0].mxu0 %v2223
      %v2319 = vpop.f32.mrb[0].mxu0
      %v2320 = vadd.f32 0.0, %v2319
      %v2321 = vpop.f32.mrb[0].mxu0
      %v2322 = vpop.f32.mrb[0].mxu0
      %v2323 = vadd.f32 0.0, %v2322
      %v2324 = vpop.f32.mrb[0].mxu0
      %2325 = vdwg.mxu0
      %v2327 = vrot.slane %v2323, 7
      %vm2344 = vcmask 1040384
      %v2345 = vrot.slane %v2264, 7
      %v2346 = vrot.slane %v2267, 7
      %v2347 = vsel %vm2344, %v2345, %v2346
      %v2348 = vrot.slane %v2272, 7
      %v2349 = vsel %vm2344, %v2346, %v2348
      %v2350 = vrot.slane %v2275, 7
      %v2351 = vsel %vm2344, %v2348, %v2350
      %v2352 = vrot.slane %v2280, 7
      %v2353 = vsel %vm2344, %v2350, %v2352
      %v2354 = vrot.slane %v2283, 7
      %v2355 = vsel %vm2344, %v2352, %v2354
      %v2356 = vrot.slane %v2288, 7
      %v2357 = vsel %vm2344, %v2354, %v2356
      %v2358 = vrot.slane %v2291, 7
      %v2359 = vsel %vm2344, %v2356, %v2358
      %v2360 = vrot.slane %v2296, 7
      %v2361 = vsel %vm2344, %v2358, %v2360
      %v2362 = vrot.slane %v2299, 7
      %v2363 = vsel %vm2344, %v2360, %v2362
      %v2364 = vrot.slane %v2304, 7
      %v2365 = vsel %vm2344, %v2362, %v2364
      %v2366 = vrot.slane %v2307, 7
      %v2367 = vsel %vm2344, %v2364, %v2366
      %v2368 = vrot.slane %v2312, 7
      %v2369 = vsel %vm2344, %v2366, %v2368
      %v2370 = vrot.slane %v2315, 7
      %v2371 = vsel %vm2344, %v2368, %v2370
      %v2372 = vrot.slane %v2320, 7
      %v2373 = vsel %vm2344, %v2370, %v2372
      %v2374 = vsel %vm2344, %v2372, %v2327
      %v2391 = vsel %vm2344, %v2327, %v2345
      %v2392 = vadd.f32 %v2391, 0.0
      %v2393 = vadd.f32 %v2347, 0.0
      %v2394 = vadd.f32 %v2349, 0.0
      %v2395 = vadd.f32 %v2351, 0.0
      %v2396 = vadd.f32 %v2353, 0.0
      %v2397 = vadd.f32 %v2355, 0.0
      %v2398 = vadd.f32 %v2357, 0.0
      %v2399 = vadd.f32 %v2359, 0.0
      %v2400 = vadd.f32 %v2361, 0.0
      %v2401 = vadd.f32 %v2363, 0.0
      %v2402 = vadd.f32 %v2365, 0.0
      %v2403 = vadd.f32 %v2367, 0.0
      %v2404 = vadd.f32 %v2369, 0.0
      %v2405 = vadd.f32 %v2371, 0.0
      %v2406 = vadd.f32 %v2373, 0.0
      %v2407 = vadd.f32 %v2374, 0.0
      %s2408 = scalar_lea.vmem %s4, 4
      %v2409 = vld [vmem:[%s2408] sm:$0xf]
      %v2411 = vsel %vm2225, %v2409, 0
      %2413 = vmatprep.subr.bf16.mxu0 0
      %2414 = vmatpush1.bf16.msra.mxu0 %v2411
      %2415 = vmatprep.subr.bf16.mxu0 0
      %2416 = vmatpush1.bf16.msra.mxu0 0
      %2417 = vmatprep.subr.bf16.mxu0 0
      %2418 = vmatpush1.bf16.msra.mxu0 0
      %2419 = vmatprep.subr.bf16.mxu0 0
      %2420 = vmatpush1.bf16.msra.mxu0 0
      %2421 = vmatprep.subr.bf16.mxu0 0
      %2422 = vmatpush1.bf16.msra.mxu0 0
      %2423 = vmatprep.subr.bf16.mxu0 0
      %2424 = vmatpush1.bf16.msra.mxu0 0
      %2425 = vmatprep.subr.bf16.mxu0 0
      %2426 = vmatpush1.bf16.msra.mxu0 0
      %2427 = vmatprep.subr.bf16.mxu0 0
      %2428 = vmatpush1.bf16.msra.mxu0 0
      %2429 = vmatprep.subr.bf16.mxu0 0
      %2430 = vmatpush1.bf16.msra.mxu0 0
      %2431 = vmatprep.subr.bf16.mxu0 0
      %2432 = vmatpush1.bf16.msra.mxu0 0
      %2433 = vmatprep.subr.bf16.mxu0 0
      %2434 = vmatpush1.bf16.msra.mxu0 0
      %2435 = vmatprep.subr.bf16.mxu0 0
      %2436 = vmatpush1.bf16.msra.mxu0 0
      %2437 = vmatprep.subr.bf16.mxu0 0
      %2438 = vmatpush1.bf16.msra.mxu0 0
      %2439 = vmatprep.subr.bf16.mxu0 0
      %2440 = vmatpush1.bf16.msra.mxu0 0
      %2441 = vmatprep.subr.bf16.mxu0 0
      %2442 = vmatpush1.bf16.msra.mxu0 0
      %2443 = vmatprep.subr.bf16.mxu0 0
      %2444 = vmatpush1.bf16.msra.mxu0 0
      %2445 = vmatprep.mubr.bf16.mxu0 0
      %2446 = vmatmul.mubr.bf16.gmra.mrb[0].mxu0 %v2202
      %v2447 = vpop.f32.mrb[0].mxu0
      %v2448 = vadd.f32 0.0, %v2447
      %v2449 = vpop.f32.mrb[0].mxu0
      %v2450 = vpop.f32.mrb[0].mxu0
      %v2451 = vadd.f32 0.0, %v2450
      %v2452 = vpop.f32.mrb[0].mxu0
      %2453 = vmatprep.mubr.bf16.mxu0 0
      %2454 = vmatmul.mubr.bf16.gmra.mrb[0].mxu0 %v2205
      %v2455 = vpop.f32.mrb[0].mxu0
      %v2456 = vadd.f32 0.0, %v2455
      %v2457 = vpop.f32.mrb[0].mxu0
      %v2458 = vpop.f32.mrb[0].mxu0
      %v2459 = vadd.f32 0.0, %v2458
      %v2460 = vpop.f32.mrb[0].mxu0
      %2461 = vmatprep.mubr.bf16.mxu0 0
      %2462 = vmatmul.mubr.bf16.gmra.mrb[0].mxu0 %v2208
      %v2463 = vpop.f32.mrb[0].mxu0
      %v2464 = vadd.f32 0.0, %v2463
      %v2465 = vpop.f32.mrb[0].mxu0
      %v2466 = vpop.f32.mrb[0].mxu0
      %v2467 = vadd.f32 0.0, %v2466
      %v2468 = vpop.f32.mrb[0].mxu0
      %2469 = vmatprep.mubr.bf16.mxu0 0
      %2470 = vmatmul.mubr.bf16.gmra.mrb[0].mxu0 %v2211
      %v2471 = vpop.f32.mrb[0].mxu0
      %v2472 = vadd.f32 0.0, %v2471
      %v2473 = vpop.f32.mrb[0].mxu0
      %v2474 = vpop.f32.mrb[0].mxu0
      %v2475 = vadd.f32 0.0, %v2474
      %v2476 = vpop.f32.mrb[0].mxu0
      %2477 = vmatprep.mubr.bf16.mxu0 0
      %2478 = vmatmul.mubr.bf16.gmra.mrb[0].mxu0 %v2214
      %v2479 = vpop.f32.mrb[0].mxu0
      %v2480 = vadd.f32 0.0, %v2479
      %v2481 = vpop.f32.mrb[0].mxu0
      %v2482 = vpop.f32.mrb[0].mxu0
      %v2483 = vadd.f32 0.0, %v2482
      %v2484 = vpop.f32.mrb[0].mxu0
      %2485 = vmatprep.mubr.bf16.mxu0 0
      %2486 = vmatmul.mubr.bf16.gmra.mrb[0].mxu0 %v2217
      %v2487 = vpop.f32.mrb[0].mxu0
      %v2488 = vadd.f32 0.0, %v2487
      %v2489 = vpop.f32.mrb[0].mxu0
      %v2490 = vpop.f32.mrb[0].mxu0
      %v2491 = vadd.f32 0.0, %v2490
      %v2492 = vpop.f32.mrb[0].mxu0
      %2493 = vmatprep.mubr.bf16.mxu0 0
      %2494 = vmatmul.mubr.bf16.gmra.mrb[0].mxu0 %v2220
      %v2495 = vpop.f32.mrb[0].mxu0
      %v2496 = vadd.f32 0.0, %v2495
      %v2497 = vpop.f32.mrb[0].mxu0
      %v2498 = vpop.f32.mrb[0].mxu0
      %v2499 = vadd.f32 0.0, %v2498
      %v2500 = vpop.f32.mrb[0].mxu0
      %2501 = vmatprep.mubr.bf16.mxu0 0
      %2502 = vmatmul.mubr.bf16.gmra.mrb[0].mxu0 %v2223
      %v2503 = vpop.f32.mrb[0].mxu0
      %v2504 = vadd.f32 0.0, %v2503
      %v2505 = vpop.f32.mrb[0].mxu0
      %v2506 = vpop.f32.mrb[0].mxu0
      %v2507 = vadd.f32 0.0, %v2506
      %v2508 = vpop.f32.mrb[0].mxu0
      %2509 = vdwg.mxu0
      %v2510 = vadd.f32 %v2392, %v2448
      %v2511 = vadd.f32 %v2393, %v2451
      %v2512 = vadd.f32 %v2394, %v2456
      %v2513 = vadd.f32 %v2395, %v2459
      %v2514 = vadd.f32 %v2396, %v2464
      %v2515 = vadd.f32 %v2397, %v2467
      %v2516 = vadd.f32 %v2398, %v2472
      %v2517 = vadd.f32 %v2399, %v2475
      %v2518 = vadd.f32 %v2400, %v2480
      %v2519 = vadd.f32 %v2401, %v2483
      %v2520 = vadd.f32 %v2402, %v2488
      %v2521 = vadd.f32 %v2403, %v2491
      %v2522 = vadd.f32 %v2404, %v2496
      %v2523 = vadd.f32 %v2405, %v2499
      %v2524 = vadd.f32 %v2406, %v2504
      %v2525 = vadd.f32 %v2407, %v2507
      %s2526 = scalar_lea.vmem %s4, 8
      %v2527 = vld [vmem:[%s2526] sm:$0xf]
      %v2529 = vsel %vm2225, %v2527, 0
      %2531 = vmatprep.subr.bf16.mxu0 0
      %2532 = vmatpush1.bf16.msra.mxu0 %v2529
      %2533 = vmatprep.subr.bf16.mxu0 0
      %2534 = vmatpush1.bf16.msra.mxu0 0
      %2535 = vmatprep.subr.bf16.mxu0 0
      %2536 = vmatpush1.bf16.msra.mxu0 0
      %2537 = vmatprep.subr.bf16.mxu0 0
      %2538 = vmatpush1.bf16.msra.mxu0 0
      %2539 = vmatprep.subr.bf16.mxu0 0
      %2540 = vmatpush1.bf16.msra.mxu0 0
      %2541 = vmatprep.subr.bf16.mxu0 0
      %2542 = vmatpush1.bf16.msra.mxu0 0
      %2543 = vmatprep.subr.bf16.mxu0 0
      %2544 = vmatpush1.bf16.msra.mxu0 0
      %2545 = vmatprep.subr.bf16.mxu0 0
      %2546 = vmatpush1.bf16.msra.mxu0 0
      %2547 = vmatprep.subr.bf16.mxu0 0
      %2548 = vmatpush1.bf16.msra.mxu0 0
      %2549 = vmatprep.subr.bf16.mxu0 0
      %2550 = vmatpush1.bf16.msra.mxu0 0
      %2551 = vmatprep.subr.bf16.mxu0 0
      %2552 = vmatpush1.bf16.msra.mxu0 0
      %2553 = vmatprep.subr.bf16.mxu0 0
      %2554 = vmatpush1.bf16.msra.mxu0 0
      %2555 = vmatprep.subr.bf16.mxu0 0
      %2556 = vmatpush1.bf16.msra.mxu0 0
      %2557 = vmatprep.subr.bf16.mxu0 0
      %2558 = vmatpush1.bf16.msra.mxu0 0
      %2559 = vmatprep.subr.bf16.mxu0 0
      %2560 = vmatpush1.bf16.msra.mxu0 0
      %2561 = vmatprep.subr.bf16.mxu0 0
      %2562 = vmatpush1.bf16.msra.mxu0 0
      %2563 = vmatprep.mubr.bf16.mxu0 0
      %2564 = vmatmul.mubr.bf16.gmra.mrb[0].mxu0 %v2202
      %v2565 = vpop.f32.mrb[0].mxu0
      %v2566 = vadd.f32 0.0, %v2565
      %v2567 = vpop.f32.mrb[0].mxu0
      %v2568 = vpop.f32.mrb[0].mxu0
      %v2569 = vadd.f32 0.0, %v2568
      %v2570 = vpop.f32.mrb[0].mxu0
      %2571 = vmatprep.mubr.bf16.mxu0 0
      %2572 = vmatmul.mubr.bf16.gmra.mrb[0].mxu0 %v2205
      %v2573 = vpop.f32.mrb[0].mxu0
      %v2574 = vadd.f32 0.0, %v2573
      %v2575 = vpop.f32.mrb[0].mxu0
      %v2576 = vpop.f32.mrb[0].mxu0
      %v2577 = vadd.f32 0.0, %v2576
      %v2578 = vpop.f32.mrb[0].mxu0
      %2579 = vmatprep.mubr.bf16.mxu0 0
      %2580 = vmatmul.mubr.bf16.gmra.mrb[0].mxu0 %v2208
      %v2581 = vpop.f32.mrb[0].mxu0
      %v2582 = vadd.f32 0.0, %v2581
      %v2583 = vpop.f32.mrb[0].mxu0
      %v2584 = vpop.f32.mrb[0].mxu0
      %v2585 = vadd.f32 0.0, %v2584
      %v2586 = vpop.f32.mrb[0].mxu0
      %2587 = vmatprep.mubr.bf16.mxu0 0
      %2588 = vmatmul.mubr.bf16.gmra.mrb[0].mxu0 %v2211
      %v2589 = vpop.f32.mrb[0].mxu0
      %v2590 = vadd.f32 0.0, %v2589
      %v2591 = vpop.f32.mrb[0].mxu0
      %v2592 = vpop.f32.mrb[0].mxu0
      %v2593 = vadd.f32 0.0, %v2592
      %v2594 = vpop.f32.mrb[0].mxu0
      %2595 = vmatprep.mubr.bf16.mxu0 0
      %2596 = vmatmul.mubr.bf16.gmra.mrb[0].mxu0 %v2214
      %v2597 = vpop.f32.mrb[0].mxu0
      %v2598 = vadd.f32 0.0, %v2597
      %v2599 = vpop.f32.mrb[0].mxu0
      %v2600 = vpop.f32.mrb[0].mxu0
      %v2601 = vadd.f32 0.0, %v2600
      %v2602 = vpop.f32.mrb[0].mxu0
      %2603 = vmatprep.mubr.bf16.mxu0 0
      %2604 = vmatmul.mubr.bf16.gmra.mrb[0].mxu0 %v2217
      %v2605 = vpop.f32.mrb[0].mxu0
      %v2606 = vadd.f32 0.0, %v2605
      %v2607 = vpop.f32.mrb[0].mxu0
      %v2608 = vpop.f32.mrb[0].mxu0
      %v2609 = vadd.f32 0.0, %v2608
      %v2610 = vpop.f32.mrb[0].mxu0
      %2611 = vmatprep.mubr.bf16.mxu0 0
      %2612 = vmatmul.mubr.bf16.gmra.mrb[0].mxu0 %v2220
      %v2613 = vpop.f32.mrb[0].mxu0
      %v2614 = vadd.f32 0.0, %v2613
      %v2615 = vpop.f32.mrb[0].mxu0
      %v2616 = vpop.f32.mrb[0].mxu0
      %v2617 = vadd.f32 0.0, %v2616
      %v2618 = vpop.f32.mrb[0].mxu0
      %2619 = vmatprep.mubr.bf16.mxu0 0
      %2620 = vmatmul.mubr.bf16.gmra.mrb[0].mxu0 %v2223
      %v2621 = vpop.f32.mrb[0].mxu0
      %v2622 = vadd.f32 0.0, %v2621
      %v2623 = vpop.f32.mrb[0].mxu0
      %v2624 = vpop.f32.mrb[0].mxu0
      %v2625 = vadd.f32 0.0, %v2624
      %v2626 = vpop.f32.mrb[0].mxu0
      %2627 = vdwg.mxu0
      %v2644 = vrot.slane %v2566, 1
      %v2645 = vrot.slane %v2569, 1
      %v2646 = vsel %vm796, %v2644, %v2645
      %v2647 = vrot.slane %v2574, 1
      %v2648 = vsel %vm796, %v2645, %v2647
      %v2649 = vrot.slane %v2577, 1
      %v2650 = vsel %vm796, %v2647, %v2649
      %v2651 = vrot.slane %v2582, 1
      %v2652 = vsel %vm796, %v2649, %v2651
      %v2653 = vrot.slane %v2585, 1
      %v2654 = vsel %vm796, %v2651, %v2653
      %v2655 = vrot.slane %v2590, 1
      %v2656 = vsel %vm796, %v2653, %v2655
      %v2657 = vrot.slane %v2593, 1
      %v2658 = vsel %vm796, %v2655, %v2657
      %v2659 = vrot.slane %v2598, 1
      %v2660 = vsel %vm796, %v2657, %v2659
      %v2661 = vrot.slane %v2601, 1
      %v2662 = vsel %vm796, %v2659, %v2661
      %v2663 = vrot.slane %v2606, 1
      %v2664 = vsel %vm796, %v2661, %v2663
      %v2665 = vrot.slane %v2609, 1
      %v2666 = vsel %vm796, %v2663, %v2665
      %v2667 = vrot.slane %v2614, 1
      %v2668 = vsel %vm796, %v2665, %v2667
      %v2669 = vrot.slane %v2617, 1
      %v2670 = vsel %vm796, %v2667, %v2669
      %v2671 = vrot.slane %v2622, 1
      %v2672 = vsel %vm796, %v2669, %v2671
      %v2673 = vrot.slane %v2625, 1
      %v2674 = vsel %vm796, %v2671, %v2673
      %v2692 = vsel %vm796, %v2673, %v2644
      %v2693 = vadd.f32 %v2510, %v2646
      %v2694 = vadd.f32 %v2511, %v2648
      %v2695 = vadd.f32 %v2512, %v2650
      %v2696 = vadd.f32 %v2513, %v2652
      %v2697 = vadd.f32 %v2514, %v2654
      %v2698 = vadd.f32 %v2515, %v2656
      %v2699 = vadd.f32 %v2516, %v2658
      %v2700 = vadd.f32 %v2517, %v2660
      %v2701 = vadd.f32 %v2518, %v2662
      %v2702 = vadd.f32 %v2519, %v2664
      %v2703 = vadd.f32 %v2520, %v2666
      %v2704 = vadd.f32 %v2521, %v2668
      %v2705 = vadd.f32 %v2522, %v2670
      %v2706 = vadd.f32 %v2523, %v2672
      %v2707 = vadd.f32 %v2524, %v2674
      %v2708 = vadd.f32 %v2525, %v2692
      %v2709 = vld [vmem:[#allocation2 + $0x8] sm:$0xff]
      %v2710 = vld [vmem:[#allocation2 + $0x10] sm:$0xff]
      %v2711 = vld [vmem:[#allocation2 + $0x18] sm:$0xff]
      %v2712 = vld [vmem:[#allocation2 + $0x20] sm:$0xff]
      %v2713 = vld [vmem:[#allocation2 + $0x28] sm:$0xff]
      %v2714 = vld [vmem:[#allocation2 + $0x30] sm:$0xff]
      %v2715 = vld [vmem:[#allocation2 + $0x38] sm:$0xff]
      %v2716 = vld [vmem:[#allocation2 + $0x40] sm:$0xff]
      %s2717 = scalar_lea.vmem %s4, 12
      %v2718 = vld [vmem:[%s2717] sm:$0xf]
      %v2720 = vsel %vm2173, %v2709, 0
      %v2723 = vsel %vm2173, %v2710, 0
      %v2726 = vsel %vm2173, %v2711, 0
      %v2729 = vsel %vm2173, %v2712, 0
      %v2732 = vsel %vm2173, %v2713, 0
      %v2735 = vsel %vm2173, %v2714, 0
      %v2738 = vsel %vm2173, %v2715, 0
      %v2741 = vsel %vm2173, %v2716, 0
      %v2744 = vsel %vm2225, %v2718, 0
      %2746 = vmatprep.subr.bf16.mxu0 0
      %2747 = vmatpush1.bf16.msra.mxu0 %v2744
      %2748 = vmatprep.subr.bf16.mxu0 0
      %2749 = vmatpush1.bf16.msra.mxu0 0
      %2750 = vmatprep.subr.bf16.mxu0 0
      %2751 = vmatpush1.bf16.msra.mxu0 0
      %2752 = vmatprep.subr.bf16.mxu0 0
      %2753 = vmatpush1.bf16.msra.mxu0 0
      %2754 = vmatprep.subr.bf16.mxu0 0
      %2755 = vmatpush1.bf16.msra.mxu0 0
      %2756 = vmatprep.subr.bf16.mxu0 0
      %2757 = vmatpush1.bf16.msra.mxu0 0
      %2758 = vmatprep.subr.bf16.mxu0 0
      %2759 = vmatpush1.bf16.msra.mxu0 0
      %2760 = vmatprep.subr.bf16.mxu0 0
      %2761 = vmatpush1.bf16.msra.mxu0 0
      %2762 = vmatprep.subr.bf16.mxu0 0
      %2763 = vmatpush1.bf16.msra.mxu0 0
      %2764 = vmatprep.subr.bf16.mxu0 0
      %2765 = vmatpush1.bf16.msra.mxu0 0
      %2766 = vmatprep.subr.bf16.mxu0 0
      %2767 = vmatpush1.bf16.msra.mxu0 0
      %2768 = vmatprep.subr.bf16.mxu0 0
      %2769 = vmatpush1.bf16.msra.mxu0 0
      %2770 = vmatprep.subr.bf16.mxu0 0
      %2771 = vmatpush1.bf16.msra.mxu0 0
      %2772 = vmatprep.subr.bf16.mxu0 0
      %2773 = vmatpush1.bf16.msra.mxu0 0
      %2774 = vmatprep.subr.bf16.mxu0 0
      %2775 = vmatpush1.bf16.msra.mxu0 0
      %2776 = vmatprep.subr.bf16.mxu0 0
      %2777 = vmatpush1.bf16.msra.mxu0 0
      %2778 = vmatprep.mubr.bf16.mxu0 0
      %2779 = vmatmul.mubr.bf16.gmra.mrb[0].mxu0 %v2720
      %v2780 = vpop.f32.mrb[0].mxu0
      %v2781 = vadd.f32 0.0, %v2780
      %v2782 = vpop.f32.mrb[0].mxu0
      %v2783 = vpop.f32.mrb[0].mxu0
      %v2784 = vadd.f32 0.0, %v2783
      %v2785 = vpop.f32.mrb[0].mxu0
      %2786 = vmatprep.mubr.bf16.mxu0 0
      %2787 = vmatmul.mubr.bf16.gmra.mrb[0].mxu0 %v2723
      %v2788 = vpop.f32.mrb[0].mxu0
      %v2789 = vadd.f32 0.0, %v2788
      %v2790 = vpop.f32.mrb[0].mxu0
      %v2791 = vpop.f32.mrb[0].mxu0
      %v2792 = vadd.f32 0.0, %v2791
      %v2793 = vpop.f32.mrb[0].mxu0
      %2794 = vmatprep.mubr.bf16.mxu0 0
      %2795 = vmatmul.mubr.bf16.gmra.mrb[0].mxu0 %v2726
      %v2796 = vpop.f32.mrb[0].mxu0
      %v2797 = vadd.f32 0.0, %v2796
      %v2798 = vpop.f32.mrb[0].mxu0
      %v2799 = vpop.f32.mrb[0].mxu0
      %v2800 = vadd.f32 0.0, %v2799
      %v2801 = vpop.f32.mrb[0].mxu0
      %2802 = vmatprep.mubr.bf16.mxu0 0
      %2803 = vmatmul.mubr.bf16.gmra.mrb[0].mxu0 %v2729
      %v2804 = vpop.f32.mrb[0].mxu0
      %v2805 = vadd.f32 0.0, %v2804
      %v2806 = vpop.f32.mrb[0].mxu0
      %v2807 = vpop.f32.mrb[0].mxu0
      %v2808 = vadd.f32 0.0, %v2807
      %v2809 = vpop.f32.mrb[0].mxu0
      %2810 = vmatprep.mubr.bf16.mxu0 0
      %2811 = vmatmul.mubr.bf16.gmra.mrb[0].mxu0 %v2732
      %v2812 = vpop.f32.mrb[0].mxu0
      %v2813 = vadd.f32 0.0, %v2812
      %v2814 = vpop.f32.mrb[0].mxu0
      %v2815 = vpop.f32.mrb[0].mxu0
      %v2816 = vadd.f32 0.0, %v2815
      %v2817 = vpop.f32.mrb[0].mxu0
      %2818 = vmatprep.mubr.bf16.mxu0 0
      %2819 = vmatmul.mubr.bf16.gmra.mrb[0].mxu0 %v2735
      %v2820 = vpop.f32.mrb[0].mxu0
      %v2821 = vadd.f32 0.0, %v2820
      %v2822 = vpop.f32.mrb[0].mxu0
      %v2823 = vpop.f32.mrb[0].mxu0
      %v2824 = vadd.f32 0.0, %v2823
      %v2825 = vpop.f32.mrb[0].mxu0
      %2826 = vmatprep.mubr.bf16.mxu0 0
      %2827 = vmatmul.mubr.bf16.gmra.mrb[0].mxu0 %v2738
      %v2828 = vpop.f32.mrb[0].mxu0
      %v2829 = vadd.f32 0.0, %v2828
      %v2830 = vpop.f32.mrb[0].mxu0
      %v2831 = vpop.f32.mrb[0].mxu0
      %v2832 = vadd.f32 0.0, %v2831
      %v2833 = vpop.f32.mrb[0].mxu0
      %2834 = vmatprep.mubr.bf16.mxu0 0
      %2835 = vmatmul.mubr.bf16.gmra.mrb[0].mxu0 %v2741
      %v2836 = vpop.f32.mrb[0].mxu0
      %v2837 = vadd.f32 0.0, %v2836
      %v2838 = vpop.f32.mrb[0].mxu0
      %v2839 = vpop.f32.mrb[0].mxu0
      %v2840 = vadd.f32 0.0, %v2839
      %v2841 = vpop.f32.mrb[0].mxu0
      %2842 = vdwg.mxu0
      %v2844 = vrot.slane %v2840, 7
      %v2861 = vrot.slane %v2781, 7
      %v2862 = vrot.slane %v2784, 7
      %v2863 = vsel %vm2344, %v2861, %v2862
      %v2864 = vrot.slane %v2789, 7
      %v2865 = vsel %vm2344, %v2862, %v2864
      %v2866 = vrot.slane %v2792, 7
      %v2867 = vsel %vm2344, %v2864, %v2866
      %v2868 = vrot.slane %v2797, 7
      %v2869 = vsel %vm2344, %v2866, %v2868
      %v2870 = vrot.slane %v2800, 7
      %v2871 = vsel %vm2344, %v2868, %v2870
      %v2872 = vrot.slane %v2805, 7
      %v2873 = vsel %vm2344, %v2870, %v2872
      %v2874 = vrot.slane %v2808, 7
      %v2875 = vsel %vm2344, %v2872, %v2874
      %v2876 = vrot.slane %v2813, 7
      %v2877 = vsel %vm2344, %v2874, %v2876
      %v2878 = vrot.slane %v2816, 7
      %v2879 = vsel %vm2344, %v2876, %v2878
      %v2880 = vrot.slane %v2821, 7
      %v2881 = vsel %vm2344, %v2878, %v2880
      %v2882 = vrot.slane %v2824, 7
      %v2883 = vsel %vm2344, %v2880, %v2882
      %v2884 = vrot.slane %v2829, 7
      %v2885 = vsel %vm2344, %v2882, %v2884
      %v2886 = vrot.slane %v2832, 7
      %v2887 = vsel %vm2344, %v2884, %v2886
      %v2888 = vrot.slane %v2837, 7
      %v2889 = vsel %vm2344, %v2886, %v2888
      %v2890 = vsel %vm2344, %v2888, %v2844
      %v2907 = vsel %vm2344, %v2844, %v2861
      %v2908 = vadd.f32 %v2693, %v2907
      %v2909 = vadd.f32 %v2694, %v2863
      %v2910 = vadd.f32 %v2695, %v2865
      %v2911 = vadd.f32 %v2696, %v2867
      %v2912 = vadd.f32 %v2697, %v2869
      %v2913 = vadd.f32 %v2698, %v2871
      %v2914 = vadd.f32 %v2699, %v2873
      %v2915 = vadd.f32 %v2700, %v2875
      %v2916 = vadd.f32 %v2701, %v2877
      %v2917 = vadd.f32 %v2702, %v2879
      %v2918 = vadd.f32 %v2703, %v2881
      %v2919 = vadd.f32 %v2704, %v2883
      %v2920 = vadd.f32 %v2705, %v2885
      %v2921 = vadd.f32 %v2706, %v2887
      %v2922 = vadd.f32 %v2707, %v2889
      %v2923 = vadd.f32 %v2708, %v2890
      %s2924 = scalar_lea.vmem %s4, 16
      %v2925 = vld [vmem:[%s2924] sm:$0xf]
      %v2927 = vsel %vm2225, %v2925, 0
      %2929 = vmatprep.subr.bf16.mxu0 0
      %2930 = vmatpush1.bf16.msra.mxu0 %v2927
      %2931 = vmatprep.subr.bf16.mxu0 0
      %2932 = vmatpush1.bf16.msra.mxu0 0
      %2933 = vmatprep.subr.bf16.mxu0 0
      %2934 = vmatpush1.bf16.msra.mxu0 0
      %2935 = vmatprep.subr.bf16.mxu0 0
      %2936 = vmatpush1.bf16.msra.mxu0 0
      %2937 = vmatprep.subr.bf16.mxu0 0
      %2938 = vmatpush1.bf16.msra.mxu0 0
      %2939 = vmatprep.subr.bf16.mxu0 0
      %2940 = vmatpush1.bf16.msra.mxu0 0
      %2941 = vmatprep.subr.bf16.mxu0 0
      %2942 = vmatpush1.bf16.msra.mxu0 0
      %2943 = vmatprep.subr.bf16.mxu0 0
      %2944 = vmatpush1.bf16.msra.mxu0 0
      %2945 = vmatprep.subr.bf16.mxu0 0
      %2946 = vmatpush1.bf16.msra.mxu0 0
      %2947 = vmatprep.subr.bf16.mxu0 0
      %2948 = vmatpush1.bf16.msra.mxu0 0
      %2949 = vmatprep.subr.bf16.mxu0 0
      %2950 = vmatpush1.bf16.msra.mxu0 0
      %2951 = vmatprep.subr.bf16.mxu0 0
      %2952 = vmatpush1.bf16.msra.mxu0 0
      %2953 = vmatprep.subr.bf16.mxu0 0
      %2954 = vmatpush1.bf16.msra.mxu0 0
      %2955 = vmatprep.subr.bf16.mxu0 0
      %2956 = vmatpush1.bf16.msra.mxu0 0
      %2957 = vmatprep.subr.bf16.mxu0 0
      %2958 = vmatpush1.bf16.msra.mxu0 0
      %2959 = vmatprep.subr.bf16.mxu0 0
      %2960 = vmatpush1.bf16.msra.mxu0 0
      %2961 = vmatprep.mubr.bf16.mxu0 0
      %2962 = vmatmul.mubr.bf16.gmra.mrb[0].mxu0 %v2720
      %v2963 = vpop.f32.mrb[0].mxu0
      %v2964 = vadd.f32 0.0, %v2963
      %v2965 = vpop.f32.mrb[0].mxu0
      %v2966 = vpop.f32.mrb[0].mxu0
      %v2967 = vadd.f32 0.0, %v2966
      %v2968 = vpop.f32.mrb[0].mxu0
      %2969 = vmatprep.mubr.bf16.mxu0 0
      %2970 = vmatmul.mubr.bf16.gmra.mrb[0].mxu0 %v2723
      %v2971 = vpop.f32.mrb[0].mxu0
      %v2972 = vadd.f32 0.0, %v2971
      %v2973 = vpop.f32.mrb[0].mxu0
      %v2974 = vpop.f32.mrb[0].mxu0
      %v2975 = vadd.f32 0.0, %v2974
      %v2976 = vpop.f32.mrb[0].mxu0
      %2977 = vmatprep.mubr.bf16.mxu0 0
      %2978 = vmatmul.mubr.bf16.gmra.mrb[0].mxu0 %v2726
      %v2979 = vpop.f32.mrb[0].mxu0
      %v2980 = vadd.f32 0.0, %v2979
      %v2981 = vpop.f32.mrb[0].mxu0
      %v2982 = vpop.f32.mrb[0].mxu0
      %v2983 = vadd.f32 0.0, %v2982
      %v2984 = vpop.f32.mrb[0].mxu0
      %2985 = vmatprep.mubr.bf16.mxu0 0
      %2986 = vmatmul.mubr.bf16.gmra.mrb[0].mxu0 %v2729
      %v2987 = vpop.f32.mrb[0].mxu0
      %v2988 = vadd.f32 0.0, %v2987
      %v2989 = vpop.f32.mrb[0].mxu0
      %v2990 = vpop.f32.mrb[0].mxu0
      %v2991 = vadd.f32 0.0, %v2990
      %v2992 = vpop.f32.mrb[0].mxu0
      %2993 = vmatprep.mubr.bf16.mxu0 0
      %2994 = vmatmul.mubr.bf16.gmra.mrb[0].mxu0 %v2732
      %v2995 = vpop.f32.mrb[0].mxu0
      %v2996 = vadd.f32 0.0, %v2995
      %v2997 = vpop.f32.mrb[0].mxu0
      %v2998 = vpop.f32.mrb[0].mxu0
      %v2999 = vadd.f32 0.0, %v2998
      %v3000 = vpop.f32.mrb[0].mxu0
      %3001 = vmatprep.mubr.bf16.mxu0 0
      %3002 = vmatmul.mubr.bf16.gmra.mrb[0].mxu0 %v2735
      %v3003 = vpop.f32.mrb[0].mxu0
      %v3004 = vadd.f32 0.0, %v3003
      %v3005 = vpop.f32.mrb[0].mxu0
      %v3006 = vpop.f32.mrb[0].mxu0
      %v3007 = vadd.f32 0.0, %v3006
      %v3008 = vpop.f32.mrb[0].mxu0
      %3009 = vmatprep.mubr.bf16.mxu0 0
      %3010 = vmatmul.mubr.bf16.gmra.mrb[0].mxu0 %v2738
      %v3011 = vpop.f32.mrb[0].mxu0
      %v3012 = vadd.f32 0.0, %v3011
      %v3013 = vpop.f32.mrb[0].mxu0
      %v3014 = vpop.f32.mrb[0].mxu0
      %v3015 = vadd.f32 0.0, %v3014
      %v3016 = vpop.f32.mrb[0].mxu0
      %3017 = vmatprep.mubr.bf16.mxu0 0
      %3018 = vmatmul.mubr.bf16.gmra.mrb[0].mxu0 %v2741
      %v3019 = vpop.f32.mrb[0].mxu0
      %v3020 = vadd.f32 0.0, %v3019
      %v3021 = vpop.f32.mrb[0].mxu0
      %v3022 = vpop.f32.mrb[0].mxu0
      %v3023 = vadd.f32 0.0, %v3022
      %v3024 = vpop.f32.mrb[0].mxu0
      %3025 = vdwg.mxu0
      %v3026 = vadd.f32 %v2908, %v2964
      %v3027 = vadd.f32 %v2909, %v2967
      %v3028 = vadd.f32 %v2910, %v2972
      %v3029 = vadd.f32 %v2911, %v2975
      %v3030 = vadd.f32 %v2912, %v2980
      %v3031 = vadd.f32 %v2913, %v2983
      %v3032 = vadd.f32 %v2914, %v2988
      %v3033 = vadd.f32 %v2915, %v2991
      %v3034 = vadd.f32 %v2916, %v2996
      %v3035 = vadd.f32 %v2917, %v2999
      %v3036 = vadd.f32 %v2918, %v3004
      %v3037 = vadd.f32 %v2919, %v3007
      %v3038 = vadd.f32 %v2920, %v3012
      %v3039 = vadd.f32 %v2921, %v3015
      %v3040 = vadd.f32 %v2922, %v3020
      %v3041 = vadd.f32 %v2923, %v3023
      %s3042 = scalar_lea.vmem %s4, 20
      %v3043 = vld [vmem:[%s3042] sm:$0xf]
      %v3045 = vsel %vm2225, %v3043, 0
      %3047 = vmatprep.subr.bf16.mxu0 0
      %3048 = vmatpush1.bf16.msra.mxu0 %v3045
      %3049 = vmatprep.subr.bf16.mxu0 0
      %3050 = vmatpush1.bf16.msra.mxu0 0
      %3051 = vmatprep.subr.bf16.mxu0 0
      %3052 = vmatpush1.bf16.msra.mxu0 0
      %3053 = vmatprep.subr.bf16.mxu0 0
      %3054 = vmatpush1.bf16.msra.mxu0 0
      %3055 = vmatprep.subr.bf16.mxu0 0
      %3056 = vmatpush1.bf16.msra.mxu0 0
      %3057 = vmatprep.subr.bf16.mxu0 0
      %3058 = vmatpush1.bf16.msra.mxu0 0
      %3059 = vmatprep.subr.bf16.mxu0 0
      %3060 = vmatpush1.bf16.msra.mxu0 0
      %3061 = vmatprep.subr.bf16.mxu0 0
      %3062 = vmatpush1.bf16.msra.mxu0 0
      %3063 = vmatprep.subr.bf16.mxu0 0
      %3064 = vmatpush1.bf16.msra.mxu0 0
      %3065 = vmatprep.subr.bf16.mxu0 0
      %3066 = vmatpush1.bf16.msra.mxu0 0
      %3067 = vmatprep.subr.bf16.mxu0 0
      %3068 = vmatpush1.bf16.msra.mxu0 0
      %3069 = vmatprep.subr.bf16.mxu0 0
      %3070 = vmatpush1.bf16.msra.mxu0 0
      %3071 = vmatprep.subr.bf16.mxu0 0
      %3072 = vmatpush1.bf16.msra.mxu0 0
      %3073 = vmatprep.subr.bf16.mxu0 0
      %3074 = vmatpush1.bf16.msra.mxu0 0
      %3075 = vmatprep.subr.bf16.mxu0 0
      %3076 = vmatpush1.bf16.msra.mxu0 0
      %3077 = vmatprep.subr.bf16.mxu0 0
      %3078 = vmatpush1.bf16.msra.mxu0 0
      %3079 = vmatprep.mubr.bf16.mxu0 0
      %3080 = vmatmul.mubr.bf16.gmra.mrb[0].mxu0 %v2720
      %v3081 = vpop.f32.mrb[0].mxu0
      %v3082 = vadd.f32 0.0, %v3081
      %v3083 = vpop.f32.mrb[0].mxu0
      %v3084 = vpop.f32.mrb[0].mxu0
      %v3085 = vadd.f32 0.0, %v3084
      %v3086 = vpop.f32.mrb[0].mxu0
      %3087 = vmatprep.mubr.bf16.mxu0 0
      %3088 = vmatmul.mubr.bf16.gmra.mrb[0].mxu0 %v2723
      %v3089 = vpop.f32.mrb[0].mxu0
      %v3090 = vadd.f32 0.0, %v3089
      %v3091 = vpop.f32.mrb[0].mxu0
      %v3092 = vpop.f32.mrb[0].mxu0
      %v3093 = vadd.f32 0.0, %v3092
      %v3094 = vpop.f32.mrb[0].mxu0
      %3095 = vmatprep.mubr.bf16.mxu0 0
      %3096 = vmatmul.mubr.bf16.gmra.mrb[0].mxu0 %v2726
      %v3097 = vpop.f32.mrb[0].mxu0
      %v3098 = vadd.f32 0.0, %v3097
      %v3099 = vpop.f32.mrb[0].mxu0
      %v3100 = vpop.f32.mrb[0].mxu0
      %v3101 = vadd.f32 0.0, %v3100
      %v3102 = vpop.f32.mrb[0].mxu0
      %3103 = vmatprep.mubr.bf16.mxu0 0
      %3104 = vmatmul.mubr.bf16.gmra.mrb[0].mxu0 %v2729
      %v3105 = vpop.f32.mrb[0].mxu0
      %v3106 = vadd.f32 0.0, %v3105
      %v3107 = vpop.f32.mrb[0].mxu0
      %v3108 = vpop.f32.mrb[0].mxu0
      %v3109 = vadd.f32 0.0, %v3108
      %v3110 = vpop.f32.mrb[0].mxu0
      %3111 = vmatprep.mubr.bf16.mxu0 0
      %3112 = vmatmul.mubr.bf16.gmra.mrb[0].mxu0 %v2732
      %v3113 = vpop.f32.mrb[0].mxu0
      %v3114 = vadd.f32 0.0, %v3113
      %v3115 = vpop.f32.mrb[0].mxu0
      %v3116 = vpop.f32.mrb[0].mxu0
      %v3117 = vadd.f32 0.0, %v3116
      %v3118 = vpop.f32.mrb[0].mxu0
      %3119 = vmatprep.mubr.bf16.mxu0 0
      %3120 = vmatmul.mubr.bf16.gmra.mrb[0].mxu0 %v2735
      %v3121 = vpop.f32.mrb[0].mxu0
      %v3122 = vadd.f32 0.0, %v3121
      %v3123 = vpop.f32.mrb[0].mxu0
      %v3124 = vpop.f32.mrb[0].mxu0
      %v3125 = vadd.f32 0.0, %v3124
      %v3126 = vpop.f32.mrb[0].mxu0
      %3127 = vmatprep.mubr.bf16.mxu0 0
      %3128 = vmatmul.mubr.bf16.gmra.mrb[0].mxu0 %v2738
      %v3129 = vpop.f32.mrb[0].mxu0
      %v3130 = vadd.f32 0.0, %v3129
      %v3131 = vpop.f32.mrb[0].mxu0
      %v3132 = vpop.f32.mrb[0].mxu0
      %v3133 = vadd.f32 0.0, %v3132
      %v3134 = vpop.f32.mrb[0].mxu0
      %3135 = vmatprep.mubr.bf16.mxu0 0
      %3136 = vmatmul.mubr.bf16.gmra.mrb[0].mxu0 %v2741
      %v3137 = vpop.f32.mrb[0].mxu0
      %v3138 = vadd.f32 0.0, %v3137
      %v3139 = vpop.f32.mrb[0].mxu0
      %v3140 = vpop.f32.mrb[0].mxu0
      %v3141 = vadd.f32 0.0, %v3140
      %v3142 = vpop.f32.mrb[0].mxu0
      %3143 = vdwg.mxu0
      %v3160 = vrot.slane %v3082, 1
      %v3161 = vrot.slane %v3085, 1
      %v3162 = vsel %vm796, %v3160, %v3161
      %v3163 = vrot.slane %v3090, 1
      %v3164 = vsel %vm796, %v3161, %v3163
      %v3165 = vrot.slane %v3093, 1
      %v3166 = vsel %vm796, %v3163, %v3165
      %v3167 = vrot.slane %v3098, 1
      %v3168 = vsel %vm796, %v3165, %v3167
      %v3169 = vrot.slane %v3101, 1
      %v3170 = vsel %vm796, %v3167, %v3169
      %v3171 = vrot.slane %v3106, 1
      %v3172 = vsel %vm796, %v3169, %v3171
      %v3173 = vrot.slane %v3109, 1
      %v3174 = vsel %vm796, %v3171, %v3173
      %v3175 = vrot.slane %v3114, 1
      %v3176 = vsel %vm796, %v3173, %v3175
      %v3177 = vrot.slane %v3117, 1
      %v3178 = vsel %vm796, %v3175, %v3177
      %v3179 = vrot.slane %v3122, 1
      %v3180 = vsel %vm796, %v3177, %v3179
      %v3181 = vrot.slane %v3125, 1
      %v3182 = vsel %vm796, %v3179, %v3181
      %v3183 = vrot.slane %v3130, 1
      %v3184 = vsel %vm796, %v3181, %v3183
      %v3185 = vrot.slane %v3133, 1
      %v3186 = vsel %vm796, %v3183, %v3185
      %v3187 = vrot.slane %v3138, 1
      %v3188 = vsel %vm796, %v3185, %v3187
      %v3189 = vrot.slane %v3141, 1
      %v3190 = vsel %vm796, %v3187, %v3189
      %v3208 = vsel %vm796, %v3189, %v3160
      %v3209 = vadd.f32 %v3026, %v3162
      %v3210 = vadd.f32 %v3027, %v3164
      %v3211 = vadd.f32 %v3028, %v3166
      %v3212 = vadd.f32 %v3029, %v3168
      %v3213 = vadd.f32 %v3030, %v3170
      %v3214 = vadd.f32 %v3031, %v3172
      %v3215 = vadd.f32 %v3032, %v3174
      %v3216 = vadd.f32 %v3033, %v3176
      %v3217 = vadd.f32 %v3034, %v3178
      %v3218 = vadd.f32 %v3035, %v3180
      %v3219 = vadd.f32 %v3036, %v3182
      %v3220 = vadd.f32 %v3037, %v3184
      %v3221 = vadd.f32 %v3038, %v3186
      %v3222 = vadd.f32 %v3039, %v3188
      %v3223 = vadd.f32 %v3040, %v3190
      %v3224 = vadd.f32 %v3041, %v3208
      %v3225 = vld [vmem:[#allocation2 + $0x10] sm:$0xff]
      %v3226 = vld [vmem:[#allocation2 + $0x18] sm:$0xff]
      %v3227 = vld [vmem:[#allocation2 + $0x20] sm:$0xff]
      %v3228 = vld [vmem:[#allocation2 + $0x28] sm:$0xff]
      %v3229 = vld [vmem:[#allocation2 + $0x30] sm:$0xff]
      %v3230 = vld [vmem:[#allocation2 + $0x38] sm:$0xff]
      %v3231 = vld [vmem:[#allocation2 + $0x40] sm:$0xff]
      %v3232 = vld [vmem:[#allocation2 + $0x48] sm:$0xff]
      %s3233 = scalar_lea.vmem %s4, 24
      %v3234 = vld [vmem:[%s3233] sm:$0xf]
      %v3236 = vsel %vm2173, %v3225, 0
      %v3239 = vsel %vm2173, %v3226, 0
      %v3242 = vsel %vm2173, %v3227, 0
      %v3245 = vsel %vm2173, %v3228, 0
      %v3248 = vsel %vm2173, %v3229, 0
      %v3251 = vsel %vm2173, %v3230, 0
      %v3254 = vsel %vm2173, %v3231, 0
      %v3257 = vsel %vm2173, %v3232, 0
      %v3260 = vsel %vm2225, %v3234, 0
      %3262 = vmatprep.subr.bf16.mxu0 0
      %3263 = vmatpush1.bf16.msra.mxu0 %v3260
      %3264 = vmatprep.subr.bf16.mxu0 0
      %3265 = vmatpush1.bf16.msra.mxu0 0
      %3266 = vmatprep.subr.bf16.mxu0 0
      %3267 = vmatpush1.bf16.msra.mxu0 0
      %3268 = vmatprep.subr.bf16.mxu0 0
      %3269 = vmatpush1.bf16.msra.mxu0 0
      %3270 = vmatprep.subr.bf16.mxu0 0
      %3271 = vmatpush1.bf16.msra.mxu0 0
      %3272 = vmatprep.subr.bf16.mxu0 0
      %3273 = vmatpush1.bf16.msra.mxu0 0
      %3274 = vmatprep.subr.bf16.mxu0 0
      %3275 = vmatpush1.bf16.msra.mxu0 0
      %3276 = vmatprep.subr.bf16.mxu0 0
      %3277 = vmatpush1.bf16.msra.mxu0 0
      %3278 = vmatprep.subr.bf16.mxu0 0
      %3279 = vmatpush1.bf16.msra.mxu0 0
      %3280 = vmatprep.subr.bf16.mxu0 0
      %3281 = vmatpush1.bf16.msra.mxu0 0
      %3282 = vmatprep.subr.bf16.mxu0 0
      %3283 = vmatpush1.bf16.msra.mxu0 0
      %3284 = vmatprep.subr.bf16.mxu0 0
      %3285 = vmatpush1.bf16.msra.mxu0 0
      %3286 = vmatprep.subr.bf16.mxu0 0
      %3287 = vmatpush1.bf16.msra.mxu0 0
      %3288 = vmatprep.subr.bf16.mxu0 0
      %3289 = vmatpush1.bf16.msra.mxu0 0
      %3290 = vmatprep.subr.bf16.mxu0 0
      %3291 = vmatpush1.bf16.msra.mxu0 0
      %3292 = vmatprep.subr.bf16.mxu0 0
      %3293 = vmatpush1.bf16.msra.mxu0 0
      %3294 = vmatprep.mubr.bf16.mxu0 0
      %3295 = vmatmul.mubr.bf16.gmra.mrb[0].mxu0 %v3236
      %v3296 = vpop.f32.mrb[0].mxu0
      %v3297 = vadd.f32 0.0, %v3296
      %v3298 = vpop.f32.mrb[0].mxu0
      %v3299 = vpop.f32.mrb[0].mxu0
      %v3300 = vadd.f32 0.0, %v3299
      %v3301 = vpop.f32.mrb[0].mxu0
      %3302 = vmatprep.mubr.bf16.mxu0 0
      %3303 = vmatmul.mubr.bf16.gmra.mrb[0].mxu0 %v3239
      %v3304 = vpop.f32.mrb[0].mxu0
      %v3305 = vadd.f32 0.0, %v3304
      %v3306 = vpop.f32.mrb[0].mxu0
      %v3307 = vpop.f32.mrb[0].mxu0
      %v3308 = vadd.f32 0.0, %v3307
      %v3309 = vpop.f32.mrb[0].mxu0
      %3310 = vmatprep.mubr.bf16.mxu0 0
      %3311 = vmatmul.mubr.bf16.gmra.mrb[0].mxu0 %v3242
      %v3312 = vpop.f32.mrb[0].mxu0
      %v3313 = vadd.f32 0.0, %v3312
      %v3314 = vpop.f32.mrb[0].mxu0
      %v3315 = vpop.f32.mrb[0].mxu0
      %v3316 = vadd.f32 0.0, %v3315
      %v3317 = vpop.f32.mrb[0].mxu0
      %3318 = vmatprep.mubr.bf16.mxu0 0
      %3319 = vmatmul.mubr.bf16.gmra.mrb[0].mxu0 %v3245
      %v3320 = vpop.f32.mrb[0].mxu0
      %v3321 = vadd.f32 0.0, %v3320
      %v3322 = vpop.f32.mrb[0].mxu0
      %v3323 = vpop.f32.mrb[0].mxu0
      %v3324 = vadd.f32 0.0, %v3323
      %v3325 = vpop.f32.mrb[0].mxu0
      %3326 = vmatprep.mubr.bf16.mxu0 0
      %3327 = vmatmul.mubr.bf16.gmra.mrb[0].mxu0 %v3248
      %v3328 = vpop.f32.mrb[0].mxu0
      %v3329 = vadd.f32 0.0, %v3328
      %v3330 = vpop.f32.mrb[0].mxu0
      %v3331 = vpop.f32.mrb[0].mxu0
      %v3332 = vadd.f32 0.0, %v3331
      %v3333 = vpop.f32.mrb[0].mxu0
      %3334 = vmatprep.mubr.bf16.mxu0 0
      %3335 = vmatmul.mubr.bf16.gmra.mrb[0].mxu0 %v3251
      %v3336 = vpop.f32.mrb[0].mxu0
      %v3337 = vadd.f32 0.0, %v3336
      %v3338 = vpop.f32.mrb[0].mxu0
      %v3339 = vpop.f32.mrb[0].mxu0
      %v3340 = vadd.f32 0.0, %v3339
      %v3341 = vpop.f32.mrb[0].mxu0
      %3342 = vmatprep.mubr.bf16.mxu0 0
      %3343 = vmatmul.mubr.bf16.gmra.mrb[0].mxu0 %v3254
      %v3344 = vpop.f32.mrb[0].mxu0
      %v3345 = vadd.f32 0.0, %v3344
      %v3346 = vpop.f32.mrb[0].mxu0
      %v3347 = vpop.f32.mrb[0].mxu0
      %v3348 = vadd.f32 0.0, %v3347
      %v3349 = vpop.f32.mrb[0].mxu0
      %3350 = vmatprep.mubr.bf16.mxu0 0
      %3351 = vmatmul.mubr.bf16.gmra.mrb[0].mxu0 %v3257
      %v3352 = vpop.f32.mrb[0].mxu0
      %v3353 = vadd.f32 0.0, %v3352
      %v3354 = vpop.f32.mrb[0].mxu0
      %v3355 = vpop.f32.mrb[0].mxu0
      %v3356 = vadd.f32 0.0, %v3355
      %v3357 = vpop.f32.mrb[0].mxu0
      %3358 = vdwg.mxu0
      %v3360 = vrot.slane %v3356, 7
      %v3377 = vrot.slane %v3297, 7
      %v3378 = vrot.slane %v3300, 7
      %v3379 = vsel %vm2344, %v3377, %v3378
      %v3380 = vrot.slane %v3305, 7
      %v3381 = vsel %vm2344, %v3378, %v3380
      %v3382 = vrot.slane %v3308, 7
      %v3383 = vsel %vm2344, %v3380, %v3382
      %v3384 = vrot.slane %v3313, 7
      %v3385 = vsel %vm2344, %v3382, %v3384
      %v3386 = vrot.slane %v3316, 7
      %v3387 = vsel %vm2344, %v3384, %v3386
      %v3388 = vrot.slane %v3321, 7
      %v3389 = vsel %vm2344, %v3386, %v3388
      %v3390 = vrot.slane %v3324, 7
      %v3391 = vsel %vm2344, %v3388, %v3390
      %v3392 = vrot.slane %v3329, 7
      %v3393 = vsel %vm2344, %v3390, %v3392
      %v3394 = vrot.slane %v3332, 7
      %v3395 = vsel %vm2344, %v3392, %v3394
      %v3396 = vrot.slane %v3337, 7
      %v3397 = vsel %vm2344, %v3394, %v3396
      %v3398 = vrot.slane %v3340, 7
      %v3399 = vsel %vm2344, %v3396, %v3398
      %v3400 = vrot.slane %v3345, 7
      %v3401 = vsel %vm2344, %v3398, %v3400
      %v3402 = vrot.slane %v3348, 7
      %v3403 = vsel %vm2344, %v3400, %v3402
      %v3404 = vrot.slane %v3353, 7
      %v3405 = vsel %vm2344, %v3402, %v3404
      %v3406 = vsel %vm2344, %v3404, %v3360
      %v3423 = vsel %vm2344, %v3360, %v3377
      %v3424 = vadd.f32 %v3209, %v3423
      %v3425 = vadd.f32 %v3210, %v3379
      %v3426 = vadd.f32 %v3211, %v3381
      %v3427 = vadd.f32 %v3212, %v3383
      %v3428 = vadd.f32 %v3213, %v3385
      %v3429 = vadd.f32 %v3214, %v3387
      %v3430 = vadd.f32 %v3215, %v3389
      %v3431 = vadd.f32 %v3216, %v3391
      %v3432 = vadd.f32 %v3217, %v3393
      %v3433 = vadd.f32 %v3218, %v3395
      %v3434 = vadd.f32 %v3219, %v3397
      %v3435 = vadd.f32 %v3220, %v3399
      %v3436 = vadd.f32 %v3221, %v3401
      %v3437 = vadd.f32 %v3222, %v3403
      %v3438 = vadd.f32 %v3223, %v3405
      %v3439 = vadd.f32 %v3224, %v3406
      %s3440 = scalar_lea.vmem %s4, 28
      %v3441 = vld [vmem:[%s3440] sm:$0xf]
      %v3443 = vsel %vm2225, %v3441, 0
      %3445 = vmatprep.subr.bf16.mxu0 0
      %3446 = vmatpush1.bf16.msra.mxu0 %v3443
      %3447 = vmatprep.subr.bf16.mxu0 0
      %3448 = vmatpush1.bf16.msra.mxu0 0
      %3449 = vmatprep.subr.bf16.mxu0 0
      %3450 = vmatpush1.bf16.msra.mxu0 0
      %3451 = vmatprep.subr.bf16.mxu0 0
      %3452 = vmatpush1.bf16.msra.mxu0 0
      %3453 = vmatprep.subr.bf16.mxu0 0
      %3454 = vmatpush1.bf16.msra.mxu0 0
      %3455 = vmatprep.subr.bf16.mxu0 0
      %3456 = vmatpush1.bf16.msra.mxu0 0
      %3457 = vmatprep.subr.bf16.mxu0 0
      %3458 = vmatpush1.bf16.msra.mxu0 0
      %3459 = vmatprep.subr.bf16.mxu0 0
      %3460 = vmatpush1.bf16.msra.mxu0 0
      %3461 = vmatprep.subr.bf16.mxu0 0
      %3462 = vmatpush1.bf16.msra.mxu0 0
      %3463 = vmatprep.subr.bf16.mxu0 0
      %3464 = vmatpush1.bf16.msra.mxu0 0
      %3465 = vmatprep.subr.bf16.mxu0 0
      %3466 = vmatpush1.bf16.msra.mxu0 0
      %3467 = vmatprep.subr.bf16.mxu0 0
      %3468 = vmatpush1.bf16.msra.mxu0 0
      %3469 = vmatprep.subr.bf16.mxu0 0
      %3470 = vmatpush1.bf16.msra.mxu0 0
      %3471 = vmatprep.subr.bf16.mxu0 0
      %3472 = vmatpush1.bf16.msra.mxu0 0
      %3473 = vmatprep.subr.bf16.mxu0 0
      %3474 = vmatpush1.bf16.msra.mxu0 0
      %3475 = vmatprep.subr.bf16.mxu0 0
      %3476 = vmatpush1.bf16.msra.mxu0 0
      %3477 = vmatprep.mubr.bf16.mxu0 0
      %3478 = vmatmul.mubr.bf16.gmra.mrb[0].mxu0 %v3236
      %v3479 = vpop.f32.mrb[0].mxu0
      %v3480 = vadd.f32 0.0, %v3479
      %v3481 = vpop.f32.mrb[0].mxu0
      %v3482 = vpop.f32.mrb[0].mxu0
      %v3483 = vadd.f32 0.0, %v3482
      %v3484 = vpop.f32.mrb[0].mxu0
      %3485 = vmatprep.mubr.bf16.mxu0 0
      %3486 = vmatmul.mubr.bf16.gmra.mrb[0].mxu0 %v3239
      %v3487 = vpop.f32.mrb[0].mxu0
      %v3488 = vadd.f32 0.0, %v3487
      %v3489 = vpop.f32.mrb[0].mxu0
      %v3490 = vpop.f32.mrb[0].mxu0
      %v3491 = vadd.f32 0.0, %v3490
      %v3492 = vpop.f32.mrb[0].mxu0
      %3493 = vmatprep.mubr.bf16.mxu0 0
      %3494 = vmatmul.mubr.bf16.gmra.mrb[0].mxu0 %v3242
      %v3495 = vpop.f32.mrb[0].mxu0
      %v3496 = vadd.f32 0.0, %v3495
      %v3497 = vpop.f32.mrb[0].mxu0
      %v3498 = vpop.f32.mrb[0].mxu0
      %v3499 = vadd.f32 0.0, %v3498
      %v3500 = vpop.f32.mrb[0].mxu0
      %3501 = vmatprep.mubr.bf16.mxu0 0
      %3502 = vmatmul.mubr.bf16.gmra.mrb[0].mxu0 %v3245
      %v3503 = vpop.f32.mrb[0].mxu0
      %v3504 = vadd.f32 0.0, %v3503
      %v3505 = vpop.f32.mrb[0].mxu0
      %v3506 = vpop.f32.mrb[0].mxu0
      %v3507 = vadd.f32 0.0, %v3506
      %v3508 = vpop.f32.mrb[0].mxu0
      %3509 = vmatprep.mubr.bf16.mxu0 0
      %3510 = vmatmul.mubr.bf16.gmra.mrb[0].mxu0 %v3248
      %v3511 = vpop.f32.mrb[0].mxu0
      %v3512 = vadd.f32 0.0, %v3511
      %v3513 = vpop.f32.mrb[0].mxu0
      %v3514 = vpop.f32.mrb[0].mxu0
      %v3515 = vadd.f32 0.0, %v3514
      %v3516 = vpop.f32.mrb[0].mxu0
      %3517 = vmatprep.mubr.bf16.mxu0 0
      %3518 = vmatmul.mubr.bf16.gmra.mrb[0].mxu0 %v3251
      %v3519 = vpop.f32.mrb[0].mxu0
      %v3520 = vadd.f32 0.0, %v3519
      %v3521 = vpop.f32.mrb[0].mxu0
      %v3522 = vpop.f32.mrb[0].mxu0
      %v3523 = vadd.f32 0.0, %v3522
      %v3524 = vpop.f32.mrb[0].mxu0
      %3525 = vmatprep.mubr.bf16.mxu0 0
      %3526 = vmatmul.mubr.bf16.gmra.mrb[0].mxu0 %v3254
      %v3527 = vpop.f32.mrb[0].mxu0
      %v3528 = vadd.f32 0.0, %v3527
      %v3529 = vpop.f32.mrb[0].mxu0
      %v3530 = vpop.f32.mrb[0].mxu0
      %v3531 = vadd.f32 0.0, %v3530
      %v3532 = vpop.f32.mrb[0].mxu0
      %3533 = vmatprep.mubr.bf16.mxu0 0
      %3534 = vmatmul.mubr.bf16.gmra.mrb[0].mxu0 %v3257
      %v3535 = vpop.f32.mrb[0].mxu0
      %v3536 = vadd.f32 0.0, %v3535
      %v3537 = vpop.f32.mrb[0].mxu0
      %v3538 = vpop.f32.mrb[0].mxu0
      %v3539 = vadd.f32 0.0, %v3538
      %v3540 = vpop.f32.mrb[0].mxu0
      %3541 = vdwg.mxu0
      %v3542 = vadd.f32 %v3424, %v3480
      %v3543 = vadd.f32 %v3425, %v3483
      %v3544 = vadd.f32 %v3426, %v3488
      %v3545 = vadd.f32 %v3427, %v3491
      %v3546 = vadd.f32 %v3428, %v3496
      %v3547 = vadd.f32 %v3429, %v3499
      %v3548 = vadd.f32 %v3430, %v3504
      %v3549 = vadd.f32 %v3431, %v3507
      %v3550 = vadd.f32 %v3432, %v3512
      %v3551 = vadd.f32 %v3433, %v3515
      %v3552 = vadd.f32 %v3434, %v3520
      %v3553 = vadd.f32 %v3435, %v3523
      %v3554 = vadd.f32 %v3436, %v3528
      %v3555 = vadd.f32 %v3437, %v3531
      %v3556 = vadd.f32 %v3438, %v3536
      %v3557 = vadd.f32 %v3439, %v3539
      %s3558 = scalar_lea.vmem %s4, 32
      %v3559 = vld [vmem:[%s3558] sm:$0xf]
      %v3561 = vsel %vm2225, %v3559, 0
      %3563 = vmatprep.subr.bf16.mxu0 0
      %3564 = vmatpush1.bf16.msra.mxu0 %v3561
      %3565 = vmatprep.subr.bf16.mxu0 0
      %3566 = vmatpush1.bf16.msra.mxu0 0
      %3567 = vmatprep.subr.bf16.mxu0 0
      %3568 = vmatpush1.bf16.msra.mxu0 0
      %3569 = vmatprep.subr.bf16.mxu0 0
      %3570 = vmatpush1.bf16.msra.mxu0 0
      %3571 = vmatprep.subr.bf16.mxu0 0
      %3572 = vmatpush1.bf16.msra.mxu0 0
      %3573 = vmatprep.subr.bf16.mxu0 0
      %3574 = vmatpush1.bf16.msra.mxu0 0
      %3575 = vmatprep.subr.bf16.mxu0 0
      %3576 = vmatpush1.bf16.msra.mxu0 0
      %3577 = vmatprep.subr.bf16.mxu0 0
      %3578 = vmatpush1.bf16.msra.mxu0 0
      %3579 = vmatprep.subr.bf16.mxu0 0
      %3580 = vmatpush1.bf16.msra.mxu0 0
      %3581 = vmatprep.subr.bf16.mxu0 0
      %3582 = vmatpush1.bf16.msra.mxu0 0
      %3583 = vmatprep.subr.bf16.mxu0 0
      %3584 = vmatpush1.bf16.msra.mxu0 0
      %3585 = vmatprep.subr.bf16.mxu0 0
      %3586 = vmatpush1.bf16.msra.mxu0 0
      %3587 = vmatprep.subr.bf16.mxu0 0
      %3588 = vmatpush1.bf16.msra.mxu0 0
      %3589 = vmatprep.subr.bf16.mxu0 0
      %3590 = vmatpush1.bf16.msra.mxu0 0
      %3591 = vmatprep.subr.bf16.mxu0 0
      %3592 = vmatpush1.bf16.msra.mxu0 0
      %3593 = vmatprep.subr.bf16.mxu0 0
      %3594 = vmatpush1.bf16.msra.mxu0 0
      %3595 = vmatprep.mubr.bf16.mxu0 0
      %3596 = vmatmul.mubr.bf16.gmra.mrb[0].mxu0 %v3236
      %v3597 = vpop.f32.mrb[0].mxu0
      %v3598 = vadd.f32 0.0, %v3597
      %v3599 = vpop.f32.mrb[0].mxu0
      %v3600 = vpop.f32.mrb[0].mxu0
      %v3601 = vadd.f32 0.0, %v3600
      %v3602 = vpop.f32.mrb[0].mxu0
      %3603 = vmatprep.mubr.bf16.mxu0 0
      %3604 = vmatmul.mubr.bf16.gmra.mrb[0].mxu0 %v3239
      %v3605 = vpop.f32.mrb[0].mxu0
      %v3606 = vadd.f32 0.0, %v3605
      %v3607 = vpop.f32.mrb[0].mxu0
      %v3608 = vpop.f32.mrb[0].mxu0
      %v3609 = vadd.f32 0.0, %v3608
      %v3610 = vpop.f32.mrb[0].mxu0
      %3611 = vmatprep.mubr.bf16.mxu0 0
      %3612 = vmatmul.mubr.bf16.gmra.mrb[0].mxu0 %v3242
      %v3613 = vpop.f32.mrb[0].mxu0
      %v3614 = vadd.f32 0.0, %v3613
      %v3615 = vpop.f32.mrb[0].mxu0
      %v3616 = vpop.f32.mrb[0].mxu0
      %v3617 = vadd.f32 0.0, %v3616
      %v3618 = vpop.f32.mrb[0].mxu0
      %3619 = vmatprep.mubr.bf16.mxu0 0
      %3620 = vmatmul.mubr.bf16.gmra.mrb[0].mxu0 %v3245
      %v3621 = vpop.f32.mrb[0].mxu0
      %v3622 = vadd.f32 0.0, %v3621
      %v3623 = vpop.f32.mrb[0].mxu0
      %v3624 = vpop.f32.mrb[0].mxu0
      %v3625 = vadd.f32 0.0, %v3624
      %v3626 = vpop.f32.mrb[0].mxu0
      %3627 = vmatprep.mubr.bf16.mxu0 0
      %3628 = vmatmul.mubr.bf16.gmra.mrb[0].mxu0 %v3248
      %v3629 = vpop.f32.mrb[0].mxu0
      %v3630 = vadd.f32 0.0, %v3629
      %v3631 = vpop.f32.mrb[0].mxu0
      %v3632 = vpop.f32.mrb[0].mxu0
      %v3633 = vadd.f32 0.0, %v3632
      %v3634 = vpop.f32.mrb[0].mxu0
      %3635 = vmatprep.mubr.bf16.mxu0 0
      %3636 = vmatmul.mubr.bf16.gmra.mrb[0].mxu0 %v3251
      %v3637 = vpop.f32.mrb[0].mxu0
      %v3638 = vadd.f32 0.0, %v3637
      %v3639 = vpop.f32.mrb[0].mxu0
      %v3640 = vpop.f32.mrb[0].mxu0
      %v3641 = vadd.f32 0.0, %v3640
      %v3642 = vpop.f32.mrb[0].mxu0
      %3643 = vmatprep.mubr.bf16.mxu0 0
      %3644 = vmatmul.mubr.bf16.gmra.mrb[0].mxu0 %v3254
      %v3645 = vpop.f32.mrb[0].mxu0
      %v3646 = vadd.f32 0.0, %v3645
      %v3647 = vpop.f32.mrb[0].mxu0
      %v3648 = vpop.f32.mrb[0].mxu0
      %v3649 = vadd.f32 0.0, %v3648
      %v3650 = vpop.f32.mrb[0].mxu0
      %3651 = vmatprep.mubr.bf16.mxu0 0
      %3652 = vmatmul.mubr.bf16.gmra.mrb[0].mxu0 %v3257
      %v3653 = vpop.f32.mrb[0].mxu0
      %v3654 = vadd.f32 0.0, %v3653
      %v3655 = vpop.f32.mrb[0].mxu0
      %v3656 = vpop.f32.mrb[0].mxu0
      %v3657 = vadd.f32 0.0, %v3656
      %v3658 = vpop.f32.mrb[0].mxu0
      %3659 = vdwg.mxu0
      %v3676 = vrot.slane %v3598, 1
      %v3677 = vrot.slane %v3601, 1
      %v3678 = vsel %vm796, %v3676, %v3677
      %v3679 = vrot.slane %v3606, 1
      %v3680 = vsel %vm796, %v3677, %v3679
      %v3681 = vrot.slane %v3609, 1
      %v3682 = vsel %vm796, %v3679, %v3681
      %v3683 = vrot.slane %v3614, 1
      %v3684 = vsel %vm796, %v3681, %v3683
      %v3685 = vrot.slane %v3617, 1
      %v3686 = vsel %vm796, %v3683, %v3685
      %v3687 = vrot.slane %v3622, 1
      %v3688 = vsel %vm796, %v3685, %v3687
      %v3689 = vrot.slane %v3625, 1
      %v3690 = vsel %vm796, %v3687, %v3689
      %v3691 = vrot.slane %v3630, 1
      %v3692 = vsel %vm796, %v3689, %v3691
      %v3693 = vrot.slane %v3633, 1
      %v3694 = vsel %vm796, %v3691, %v3693
      %v3695 = vrot.slane %v3638, 1
      %v3696 = vsel %vm796, %v3693, %v3695
      %v3697 = vrot.slane %v3641, 1
      %v3698 = vsel %vm796, %v3695, %v3697
      %v3699 = vrot.slane %v3646, 1
      %v3700 = vsel %vm796, %v3697, %v3699
      %v3701 = vrot.slane %v3649, 1
      %v3702 = vsel %vm796, %v3699, %v3701
      %v3703 = vrot.slane %v3654, 1
      %v3704 = vsel %vm796, %v3701, %v3703
      %v3705 = vrot.slane %v3657, 1
      %v3706 = vsel %vm796, %v3703, %v3705
      %v3724 = vsel %vm796, %v3705, %v3676
      %v3725 = vadd.f32 %v3542, %v3678
      %v3726 = vadd.f32 %v3543, %v3680
      %v3727 = vadd.f32 %v3544, %v3682
      %v3728 = vadd.f32 %v3545, %v3684
      %v3729 = vadd.f32 %v3546, %v3686
      %v3730 = vadd.f32 %v3547, %v3688
      %v3731 = vadd.f32 %v3548, %v3690
      %v3732 = vadd.f32 %v3549, %v3692
      %v3733 = vadd.f32 %v3550, %v3694
      %v3734 = vadd.f32 %v3551, %v3696
      %v3735 = vadd.f32 %v3552, %v3698
      %v3736 = vadd.f32 %v3553, %v3700
      %v3737 = vadd.f32 %v3554, %v3702
      %v3738 = vadd.f32 %v3555, %v3704
      %v3739 = vadd.f32 %v3556, %v3706
      %v3740 = vadd.f32 %v3557, %v3724
      %v3741 = vld [vmem:[%s5] sm:$0x1]
      %v3743 = vlaneseq
      %v3744 = vshrl.u32 %v3743, 7
      %v3745 = vsub.s32 0, %v3744
      %v3746 = vrot.slane %v3741, %v3745
      %v3748 = vadd.f32 %v3725, %v3746
      %v3749 = vadd.f32 %v3726, %v3746
      %v3750 = vadd.f32 %v3727, %v3746
      %v3751 = vadd.f32 %v3728, %v3746
      %v3752 = vadd.f32 %v3729, %v3746
      %v3753 = vadd.f32 %v3730, %v3746
      %v3754 = vadd.f32 %v3731, %v3746
      %v3755 = vadd.f32 %v3732, %v3746
      %v3756 = vadd.f32 %v3733, %v3746
      %v3757 = vadd.f32 %v3734, %v3746
      %v3758 = vadd.f32 %v3735, %v3746
      %v3759 = vadd.f32 %v3736, %v3746
      %v3760 = vadd.f32 %v3737, %v3746
      %v3761 = vadd.f32 %v3738, %v3746
      %v3762 = vadd.f32 %v3739, %v3746
      %v3763 = vadd.f32 %v3740, %v3746
      %v3764 = vld [vmem:[%s1061] sm:$0xf]
      %v3765 = vld [vmem:[%s1061 + $0x4] sm:$0xf]
      %v3766 = vld [vmem:[%s1061 + $0x8] sm:$0xf]
      %v3767 = vld [vmem:[%s1061 + $0xc] sm:$0xf]
      %v3768 = vld [vmem:[%s1061 + $0x10] sm:$0xf]
      %v3769 = vld [vmem:[%s1061 + $0x14] sm:$0xf]
      %v3770 = vld [vmem:[%s1061 + $0x18] sm:$0xf]
      %v3771 = vld [vmem:[%s1061 + $0x1c] sm:$0xf]
      %v3772 = vld [vmem:[%s1061 + $0x20] sm:$0xf]
      %v3773 = vld [vmem:[%s1061 + $0x24] sm:$0xf]
      %v3774 = vld [vmem:[%s1061 + $0x28] sm:$0xf]
      %v3775 = vld [vmem:[%s1061 + $0x2c] sm:$0xf]
      %v3776 = vld [vmem:[%s1061 + $0x30] sm:$0xf]
      %v3777 = vld [vmem:[%s1061 + $0x34] sm:$0xf]
      %v3778 = vld [vmem:[%s1061 + $0x38] sm:$0xf]
      %v3779 = vld [vmem:[%s1061 + $0x3c] sm:$0xf]
      %v3780 = vld [vmem:[%s6] sm:$0x3]
      %v3781 = vld [vmem:[%s7] sm:$0x1]
      %v3783 = vlaneseq
      %v3784 = vshrl.u32 %v3783, 7
      %v3785 = vsub.s32 0, %v3784
      %v3786 = vrot.slane %v3781, %v3785
      %v3804 = vunpack.c.l.b16 %v3764
      %v3805 = vunpack.c.l.b16 %v3765
      %v3806 = vunpack.c.l.b16 %v3766
      %v3807 = vunpack.c.l.b16 %v3767
      %v3808 = vunpack.c.l.b16 %v3768
      %v3809 = vunpack.c.l.b16 %v3769
      %v3810 = vunpack.c.l.b16 %v3770
      %v3811 = vunpack.c.l.b16 %v3771
      %v3812 = vunpack.c.l.b16 %v3772
      %v3813 = vunpack.c.l.b16 %v3773
      %v3814 = vunpack.c.l.b16 %v3774
      %v3815 = vunpack.c.l.b16 %v3775
      %v3816 = vunpack.c.l.b16 %v3776
      %v3817 = vunpack.c.l.b16 %v3777
      %v3818 = vunpack.c.l.b16 %v3778
      %v3819 = vunpack.c.l.b16 %v3779
      %v3820 = vpack.c.b16 %v3805, %v3804
      %v3821 = vpack.c.b16 %v3807, %v3806
      %v3822 = vpack.c.b16 %v3809, %v3808
      %v3823 = vpack.c.b16 %v3811, %v3810
      %v3824 = vpack.c.b16 %v3813, %v3812
      %v3825 = vpack.c.b16 %v3815, %v3814
      %v3826 = vpack.c.b16 %v3817, %v3816
      %v3827 = vpack.c.b16 %v3819, %v3818
      %v3829 = vsel %vm388, %v3820, 0
      %v3832 = vsel %vm388, %v3821, 0
      %v3835 = vsel %vm388, %v3822, 0
      %v3838 = vsel %vm388, %v3823, 0
      %v3841 = vsel %vm388, %v3824, 0
      %v3844 = vsel %vm388, %v3825, 0
      %v3847 = vsel %vm388, %v3826, 0
      %v3850 = vsel %vm388, %v3827, 0
      %v3853 = vsel %vm413, %v3780, 0
      %3855 = vmatprep.subr.bf16.mxu0 0
      %3856 = vmatpush1.bf16.msra.mxu0 %v3853
      %3857 = vmatprep.subr.bf16.mxu0 0
      %3858 = vmatpush1.bf16.msra.mxu0 0
      %3859 = vmatprep.subr.bf16.mxu0 0
      %3860 = vmatpush1.bf16.msra.mxu0 0
      %3861 = vmatprep.subr.bf16.mxu0 0
      %3862 = vmatpush1.bf16.msra.mxu0 0
      %3863 = vmatprep.subr.bf16.mxu0 0
      %3864 = vmatpush1.bf16.msra.mxu0 0
      %3865 = vmatprep.subr.bf16.mxu0 0
      %3866 = vmatpush1.bf16.msra.mxu0 0
      %3867 = vmatprep.subr.bf16.mxu0 0
      %3868 = vmatpush1.bf16.msra.mxu0 0
      %3869 = vmatprep.subr.bf16.mxu0 0
      %3870 = vmatpush1.bf16.msra.mxu0 0
      %3871 = vmatprep.subr.bf16.mxu0 0
      %3872 = vmatpush1.bf16.msra.mxu0 0
      %3873 = vmatprep.subr.bf16.mxu0 0
      %3874 = vmatpush1.bf16.msra.mxu0 0
      %3875 = vmatprep.subr.bf16.mxu0 0
      %3876 = vmatpush1.bf16.msra.mxu0 0
      %3877 = vmatprep.subr.bf16.mxu0 0
      %3878 = vmatpush1.bf16.msra.mxu0 0
      %3879 = vmatprep.subr.bf16.mxu0 0
      %3880 = vmatpush1.bf16.msra.mxu0 0
      %3881 = vmatprep.subr.bf16.mxu0 0
      %3882 = vmatpush1.bf16.msra.mxu0 0
      %3883 = vmatprep.subr.bf16.mxu0 0
      %3884 = vmatpush1.bf16.msra.mxu0 0
      %3885 = vmatprep.subr.bf16.mxu0 0
      %3886 = vmatpush1.bf16.msra.mxu0 0
      %3887 = vmatprep.mubr.bf16.mxu0 0
      %3888 = vmatmul.mubr.bf16.gmra.mrb[0].mxu0 %v3829
      %v3889 = vpop.f32.mrb[0].mxu0
      %v3890 = vadd.f32 %v3786, %v3889
      %v3891 = vpop.f32.mrb[0].mxu0
      %v3892 = vpop.f32.mrb[0].mxu0
      %v3893 = vadd.f32 %v3786, %v3892
      %v3894 = vpop.f32.mrb[0].mxu0
      %3895 = vmatprep.mubr.bf16.mxu0 0
      %3896 = vmatmul.mubr.bf16.gmra.mrb[0].mxu0 %v3832
      %v3897 = vpop.f32.mrb[0].mxu0
      %v3898 = vadd.f32 %v3786, %v3897
      %v3899 = vpop.f32.mrb[0].mxu0
      %v3900 = vpop.f32.mrb[0].mxu0
      %v3901 = vadd.f32 %v3786, %v3900
      %v3902 = vpop.f32.mrb[0].mxu0
      %3903 = vmatprep.mubr.bf16.mxu0 0
      %3904 = vmatmul.mubr.bf16.gmra.mrb[0].mxu0 %v3835
      %v3905 = vpop.f32.mrb[0].mxu0
      %v3906 = vadd.f32 %v3786, %v3905
      %v3907 = vpop.f32.mrb[0].mxu0
      %v3908 = vpop.f32.mrb[0].mxu0
      %v3909 = vadd.f32 %v3786, %v3908
      %v3910 = vpop.f32.mrb[0].mxu0
      %3911 = vmatprep.mubr.bf16.mxu0 0
      %3912 = vmatmul.mubr.bf16.gmra.mrb[0].mxu0 %v3838
      %v3913 = vpop.f32.mrb[0].mxu0
      %v3914 = vadd.f32 %v3786, %v3913
      %v3915 = vpop.f32.mrb[0].mxu0
      %v3916 = vpop.f32.mrb[0].mxu0
      %v3917 = vadd.f32 %v3786, %v3916
      %v3918 = vpop.f32.mrb[0].mxu0
      %3919 = vmatprep.mubr.bf16.mxu0 0
      %3920 = vmatmul.mubr.bf16.gmra.mrb[0].mxu0 %v3841
      %v3921 = vpop.f32.mrb[0].mxu0
      %v3922 = vadd.f32 %v3786, %v3921
      %v3923 = vpop.f32.mrb[0].mxu0
      %v3924 = vpop.f32.mrb[0].mxu0
      %v3925 = vadd.f32 %v3786, %v3924
      %v3926 = vpop.f32.mrb[0].mxu0
      %3927 = vmatprep.mubr.bf16.mxu0 0
      %3928 = vmatmul.mubr.bf16.gmra.mrb[0].mxu0 %v3844
      %v3929 = vpop.f32.mrb[0].mxu0
      %v3930 = vadd.f32 %v3786, %v3929
      %v3931 = vpop.f32.mrb[0].mxu0
      %v3932 = vpop.f32.mrb[0].mxu0
      %v3933 = vadd.f32 %v3786, %v3932
      %v3934 = vpop.f32.mrb[0].mxu0
      %3935 = vmatprep.mubr.bf16.mxu0 0
      %3936 = vmatmul.mubr.bf16.gmra.mrb[0].mxu0 %v3847
      %v3937 = vpop.f32.mrb[0].mxu0
      %v3938 = vadd.f32 %v3786, %v3937
      %v3939 = vpop.f32.mrb[0].mxu0
      %v3940 = vpop.f32.mrb[0].mxu0
      %v3941 = vadd.f32 %v3786, %v3940
      %v3942 = vpop.f32.mrb[0].mxu0
      %3943 = vmatprep.mubr.bf16.mxu0 0
      %3944 = vmatmul.mubr.bf16.gmra.mrb[0].mxu0 %v3850
      %v3945 = vpop.f32.mrb[0].mxu0
      %v3946 = vadd.f32 %v3786, %v3945
      %v3947 = vpop.f32.mrb[0].mxu0
      %v3948 = vpop.f32.mrb[0].mxu0
      %v3949 = vadd.f32 %v3786, %v3948
      %v3950 = vpop.f32.mrb[0].mxu0
      %3951 = vdwg.mxu0
      %v3952 = vadd.f32 %v3748, %v3890
      %v3953 = vadd.f32 %v3749, %v3893
      %v3954 = vadd.f32 %v3750, %v3898
      %v3955 = vadd.f32 %v3751, %v3901
      %v3956 = vadd.f32 %v3752, %v3906
      %v3957 = vadd.f32 %v3753, %v3909
      %v3958 = vadd.f32 %v3754, %v3914
      %v3959 = vadd.f32 %v3755, %v3917
      %v3960 = vadd.f32 %v3756, %v3922
      %v3961 = vadd.f32 %v3757, %v3925
      %v3962 = vadd.f32 %v3758, %v3930
      %v3963 = vadd.f32 %v3759, %v3933
      %v3964 = vadd.f32 %v3760, %v3938
      %v3965 = vadd.f32 %v3761, %v3941
      %v3966 = vadd.f32 %v3762, %v3946
      %v3967 = vadd.f32 %v3763, %v3949
      %v3968 = vmax.f32 %v3952, 0.0
      %v3969 = vmax.f32 %v3953, 0.0
      %v3970 = vmax.f32 %v3954, 0.0
      %v3971 = vmax.f32 %v3955, 0.0
      %v3972 = vmax.f32 %v3956, 0.0
      %v3973 = vmax.f32 %v3957, 0.0
      %v3974 = vmax.f32 %v3958, 0.0
      %v3975 = vmax.f32 %v3959, 0.0
      %v3976 = vmax.f32 %v3960, 0.0
      %v3977 = vmax.f32 %v3961, 0.0
      %v3978 = vmax.f32 %v3962, 0.0
      %v3979 = vmax.f32 %v3963, 0.0
      %v3980 = vmax.f32 %v3964, 0.0
      %v3981 = vmax.f32 %v3965, 0.0
      %v3982 = vmax.f32 %v3966, 0.0
      %v3983 = vmax.f32 %v3967, 0.0
      %v3984 = vpack.c.bf16 %v3969, %v3968
      %v3985 = vpack.c.bf16 %v3971, %v3970
      %v3986 = vpack.c.bf16 %v3973, %v3972
      %v3987 = vpack.c.bf16 %v3975, %v3974
      %v3988 = vpack.c.bf16 %v3977, %v3976
      %v3989 = vpack.c.bf16 %v3979, %v3978
      %v3990 = vpack.c.bf16 %v3981, %v3980
      %v3991 = vpack.c.bf16 %v3983, %v3982
      %v4000 = vunpack.c.l.b16 %v3984
      %v4001 = vunpack.c.h.b16 %v3984
      %v4002 = vunpack.c.l.b16 %v3985
      %v4003 = vunpack.c.h.b16 %v3985
      %v4004 = vunpack.c.l.b16 %v3986
      %v4005 = vunpack.c.h.b16 %v3986
      %v4006 = vunpack.c.l.b16 %v3987
      %v4007 = vunpack.c.h.b16 %v3987
      %v4008 = vunpack.c.l.b16 %v3988
      %v4009 = vunpack.c.h.b16 %v3988
      %v4010 = vunpack.c.l.b16 %v3989
      %v4011 = vunpack.c.h.b16 %v3989
      %v4012 = vunpack.c.l.b16 %v3990
      %v4013 = vunpack.c.h.b16 %v3990
      %v4014 = vunpack.c.l.b16 %v3991
      %v4015 = vunpack.c.h.b16 %v3991
      %v4016 = vpack.c.b16 %v4000, %v4000
      %v4017 = vpack.c.b16 %v4001, %v4001
      %v4018 = vpack.c.b16 %v4002, %v4002
      %v4019 = vpack.c.b16 %v4003, %v4003
      %v4020 = vpack.c.b16 %v4004, %v4004
      %v4021 = vpack.c.b16 %v4005, %v4005
      %v4022 = vpack.c.b16 %v4006, %v4006
      %v4023 = vpack.c.b16 %v4007, %v4007
      %v4024 = vpack.c.b16 %v4008, %v4008
      %v4025 = vpack.c.b16 %v4009, %v4009
      %v4026 = vpack.c.b16 %v4010, %v4010
      %v4027 = vpack.c.b16 %v4011, %v4011
      %v4028 = vpack.c.b16 %v4012, %v4012
      %v4029 = vpack.c.b16 %v4013, %v4013
      %v4030 = vpack.c.b16 %v4014, %v4014
      %v4031 = vpack.c.b16 %v4015, %v4015
      %vm4048 = vcmask 60416
      %4049 = vst.msk [vmem:[%s310] sm:$0xf] %vm4048, %v4016
      %4050 = vst.msk [vmem:[%s310 + $0x4] sm:$0xf] %vm4048, %v4017
      %4051 = vst.msk [vmem:[%s310 + $0x8] sm:$0xf] %vm4048, %v4018
      %4052 = vst.msk [vmem:[%s310 + $0xc] sm:$0xf] %vm4048, %v4019
      %4053 = vst.msk [vmem:[%s310 + $0x10] sm:$0xf] %vm4048, %v4020
      %4054 = vst.msk [vmem:[%s310 + $0x14] sm:$0xf] %vm4048, %v4021
      %4055 = vst.msk [vmem:[%s310 + $0x18] sm:$0xf] %vm4048, %v4022
      %4056 = vst.msk [vmem:[%s310 + $0x1c] sm:$0xf] %vm4048, %v4023
      %4057 = vst.msk [vmem:[%s310 + $0x20] sm:$0xf] %vm4048, %v4024
      %4058 = vst.msk [vmem:[%s310 + $0x24] sm:$0xf] %vm4048, %v4025
      %4059 = vst.msk [vmem:[%s310 + $0x28] sm:$0xf] %vm4048, %v4026
      %4060 = vst.msk [vmem:[%s310 + $0x2c] sm:$0xf] %vm4048, %v4027
      %4061 = vst.msk [vmem:[%s310 + $0x30] sm:$0xf] %vm4048, %v4028
      %4062 = vst.msk [vmem:[%s310 + $0x34] sm:$0xf] %vm4048, %v4029
      %4063 = vst.msk [vmem:[%s310 + $0x38] sm:$0xf] %vm4048, %v4030
      %4064 = vst.msk [vmem:[%s310 + $0x3c] sm:$0xf] %vm4048, %v4031
      %p4065 = scmp.lt.s32.totalorder %s19, 1
      %s4066 = scalar_select %p4065, %s19, 1
      %s4067 = smul.addr %s4066, 16
      %s4068 = smul.addr %s4067, 4
      %s4069 = scalar_lea.vmem %s8, %s4068
      // Predicated region
      $region53: #{basic_block_forward.1} parent=51 // pred_check
        %p4070 = pneg %p210
      $region54: #{basic_block_forward.1} parent=51 // pred_check_branch
        %4072 = sbr.rel (%p4070) target = $region56
      $region55: #{basic_block_forward.1} parent=51 // pred_region
        _
      $region56: #{basic_block_forward.1} parent=51 // pred_fallthru
        _
    $region52: #{basic_block_forward.1} parent=5 // pred_fallthru
      _
    %p4073 = scmp.le.s32.totalorder 2, %s14
    // Predicated region
    $region57: #{basic_block_forward.1} parent=5 // pred_check
      %p4074 = pneg %p4073
    $region58: #{basic_block_forward.1} parent=5 // pred_check_branch
      %4076 = sbr.rel (%p4074) target = $region60
    $region59: #{basic_block_forward.1} parent=5 // pred_region
      %s4077 = ssub.s32 %s14, 2
      // Predicated region
      $region61: #{basic_block_forward.1} parent=59 // pred_check
        %p4078 = pneg %p216
      $region62: #{basic_block_forward.1} parent=59 // pred_check_branch
        %4080 = sbr.rel (%p4078) target = $region64
      $region63: #{basic_block_forward.1} parent=59 // pred_region
        %p4081 = scmp.lt.s32.totalorder %s20, 1
        %s4082 = scalar_select %p4081, %s20, 1
        %s4083 = smul.addr %s4082, 16
        %s4084 = smul.addr %s4083, 4
        %s4085 = scalar_lea.vmem %s8, %s4084
      $region64: #{basic_block_forward.1} parent=59 // pred_fallthru
        _
    $region60: #{basic_block_forward.1} parent=5 // pred_fallthru
      _
  $region6: #{basic_block_forward.1} parent=0 // loop_footer
    %s18 = sadd.s32 1, %s14
  $region7: #{basic_block_forward.1} parent=0 // loop_footer_branch
    %13 = sbr.rel target = $region3
  $region8: #{basic_block_forward.1} parent=0 // loop_exit
    _

</llo_original>
